<compile_context>
chip_gen: v7x
topology: tpu7x:2x2x1
jax: 0.10.0
libtpu: 0.0.40
codegen_flags: <defaults>
</compile_context>

<pallas_src>
import functools

import jax
import jax.numpy as jnp
import numpy as np
from jax.experimental import pallas as pl
from jax.experimental.pallas import tpu as pltpu

_LANE = 128  # TPU lane width.


def _round_up(x, m):
    return (x + m - 1) // m * m


def _wn_base(hop_p):
    """base[h]: index of the first w_n weight used by the chain started at hop h."""
    base, acc = [], 0
    for h in range(hop_p - 1):
        base.append(acc)
        acc += hop_p - 1 - h
    return base


def _pick_tile(dim, cands=(512, 256, 128)):
    for c in cands:
        if dim % c == 0:
            return c
    return dim


def _vmem_limit_bytes():
    try:
        cap = int(pltpu.get_tpu_info().vmem_capacity_bytes)
    except Exception:
        cap = 64 * 1024 * 1024  # conservative (v7x-sized) default
    # leave ~8 MiB headroom for compiler-internal scratch; cap at ~110 MiB.
    return max(32 * 1024 * 1024, min(cap - 8 * 1024 * 1024, 110 * 1024 * 1024))


def _pick_feature_tile(d_pad):
    """256-wide feature tiles fill the 256x256 MXU on v6e/v7x; keep 128 on v5e."""
    try:
        kind = jax.devices()[0].device_kind.lower()
    except Exception:
        kind = ""
    old_gen = any(s in kind for s in ("v2", "v3", "v4", "v5"))
    if (not old_gen) and d_pad % 256 == 0 and d_pad >= 512:
        return 256
    return _LANE


def _resident_vmem_bytes(n_pad, td, hop_p):
    """Rough VMEM footprint of the resident-adjacency kernel."""
    slabs = max(2, hop_p)
    adj = 2 * n_pad * n_pad * 2            # a_p + a_n, bf16, single-buffered
    scr = n_pad * slabs * td * 2           # persistent bf16 state slab
    io = (2 + 2) * 2 * n_pad * td * 4      # x / feat blocks, f32, double-buffered
    tmp = 4 * n_pad * slabs * td * 4       # wide-matmul f32 result + casts (rough)
    return adj + scr + io + tmp


# ------------------------- resident-adjacency kernel ------------------------

def _simpa_kernel(w_p_ref, w_n_ref,                    # SMEM (scalar prefetch)
                  a_p_ref, a_n_ref, x_p_ref, x_n_ref,  # VMEM inputs
                  feat_p_ref, feat_n_ref,              # VMEM outputs (f32)
                  rhs_ref,                             # VMEM scratch, bf16 slabs
                  *, hop_p: int):
    """Undirected SIMPA forward for one lane-dense feature-column tile.

    a_p_ref, a_n_ref : (Np, Np) bf16 dense row-normalised adjacencies
    x_p_ref, x_n_ref : (Np, TD) f32 positive / negative feature column tiles
    rhs_ref          : (Np, max(2,H)*TD) bf16 persistent state slabs:
                       [ curr_p | curr_n_aux | chain_0 | chain_1 | ... ]
    """
    H = hop_p
    D = x_p_ref.shape[1]

    # Hoist every SMEM scalar read out of the loops (one read per weight).
    wp = [w_p_ref[h] for h in range(H)]
    wn = [w_n_ref[j] for j in range(H * (H - 1) // 2)]
    base = _wn_base(H)

    x_p = x_p_ref[...]                    # f32
    feat_p_ref[...] = wp[0] * x_p         # seed positive path

    if H == 1:                            # static: no negative path at all
        feat_n_ref[...] = jnp.zeros_like(x_p)
        return

    a_p = a_p_ref[...]                    # bf16
    a_n = a_n_ref[...]                    # bf16

    # Initialise the persistent bf16 state slabs.
    rhs_ref[:, 0:D] = x_p.astype(jnp.bfloat16)
    rhs_ref[:, D:2 * D] = x_n_ref[...].astype(jnp.bfloat16)

    for t in range(H - 1):                # static -> fully unrolled
        # Start the negative chain of hop t with one A_n propagation.
        c = jnp.dot(a_n, rhs_ref[:, D:2 * D], preferred_element_type=jnp.float32)
        delta_n = wn[base[t]] * c

        if t <= H - 3:
            # Fused advance: ONE wide A_p matmul pushes curr_p, curr_n_aux and
            # every live chain forward (shared LHS).  State is read from and
            # written back to the persistent bf16 slab exactly once per hop.
            rhs_ref[:, (2 + t) * D:(3 + t) * D] = c.astype(jnp.bfloat16)
            w = (3 + t) * D
            out = jnp.dot(a_p, rhs_ref[:, 0:w], preferred_element_type=jnp.float32)
            rhs_ref[:, 0:w] = out.astype(jnp.bfloat16)
            feat_p_ref[...] += wp[t + 1] * out[:, 0:D]
            for h in range(t + 1):
                delta_n = delta_n + (wn[base[h] + (t + 1 - h)]
                                     * out[:, (2 + h) * D:(3 + h) * D])
        else:
            # Last hop: only the positive chain is still live (the reference
            # code's final curr_n_aux propagation is dead -> dropped).
            curr_p = jnp.dot(a_p, rhs_ref[:, 0:D],
                             preferred_element_type=jnp.float32)
            feat_p_ref[...] += wp[t + 1] * curr_p

        # One read-modify-write of feat_n per hop (seeded at t == 0).
        if t == 0:
            feat_n_ref[...] = delta_n
        else:
            feat_n_ref[...] += delta_n


# ----------------------- large-N K-tiled fallback path ----------------------

def _matmul_kernel(a_ref, b_ref, o_ref, acc_ref):
    @pl.when(pl.program_id(2) == 0)
    def _():
        acc_ref[...] = jnp.zeros_like(acc_ref)
    acc_ref[...] += jnp.dot(a_ref[...], b_ref[...],
                            preferred_element_type=jnp.float32)

    @pl.when(pl.program_id(2) == pl.num_programs(2) - 1)
    def _():
        o_ref[...] = acc_ref[...]


def _tiled_matmul_f32(a_bf16, b_bf16):
    """(M,K) bf16 @ (K,N) bf16 -> (M,N) f32; all dims multiples of 128."""
    m, k = a_bf16.shape
    _, n = b_bf16.shape
    tm, tn, tk = _pick_tile(m), _pick_tile(n), _pick_tile(k)
    return pl.pallas_call(
        _matmul_kernel,
        out_shape=jax.ShapeDtypeStruct((m, n), jnp.float32),
        grid_spec=pltpu.PrefetchScalarGridSpec(
            num_scalar_prefetch=0,
            grid=(m // tm, n // tn, k // tk),
            in_specs=[pl.BlockSpec((tm, tk), lambda i, j, l: (i, l)),
                      pl.BlockSpec((tk, tn), lambda i, j, l: (l, j))],
            out_specs=pl.BlockSpec((tm, tn), lambda i, j, l: (i, j)),
            scratch_shapes=[pltpu.VMEM((tm, tn), jnp.float32)]),
        compiler_params=pltpu.CompilerParams(
            dimension_semantics=("parallel", "parallel", "arbitrary")),
    )(a_bf16, b_bf16)


def _simpa_tiled(a_p_bf, a_n_bf, x_p_pad, x_n_pad, w_p, w_n, hop_p):
    """Per-hop K-tiled path (adjacency never resident); same fused-RHS hops."""
    H = hop_p
    d = x_p_pad.shape[1]
    base = _wn_base(H)
    feat_p = w_p[0] * x_p_pad
    feat_n = jnp.zeros_like(x_p_pad)
    curr_p, curr_n_aux, chains = x_p_pad, x_n_pad, []
    for t in range(H):
        if t < H - 1:
            c = _tiled_matmul_f32(a_n_bf, curr_n_aux.astype(jnp.bfloat16))
            feat_n = feat_n + w_n[base[t]] * c
            chains.append(c)
        if t + 1 > H - 1:
            break
        if t + 1 <= H - 2:
            rhs = jnp.concatenate([curr_p, curr_n_aux] + chains,
                                  axis=1).astype(jnp.bfloat16)
            out = _tiled_matmul_f32(a_p_bf, rhs)
            curr_p = out[:, 0:d]
            curr_n_aux = out[:, d:2 * d]
            for h in range(len(chains)):
                chains[h] = out[:, (2 + h) * d:(3 + h) * d]
                feat_n = feat_n + w_n[base[h] + (t + 1 - h)] * chains[h]
        else:
            curr_p = _tiled_matmul_f32(a_p_bf, curr_p.astype(jnp.bfloat16))
        feat_p = feat_p + w_p[t + 1] * curr_p
    return feat_p, feat_n


# --------------------------------- wrapper ----------------------------------

def simpa_pallas(a_p, a_n, x_p, x_n, w_p, w_n, hop: int, *, force_tiled=False):
    hop_p = hop + 1
    n, d = x_p.shape
    n_pad = _round_up(n, _LANE)
    d_pad = _round_up(d, _LANE)
    td = _pick_feature_tile(d_pad)        # d_pad is a multiple of td by construction

    def pad2(x, r, c):
        return jnp.zeros((r, c), x.dtype).at[:x.shape[0], :x.shape[1]].set(x)

    a_p_b = pad2(a_p.astype(jnp.float32), n_pad, n_pad).astype(jnp.bfloat16)
    a_n_b = pad2(a_n.astype(jnp.float32), n_pad, n_pad).astype(jnp.bfloat16)
    x_p_pad = pad2(x_p.astype(jnp.float32), n_pad, d_pad)
    x_n_pad = pad2(x_n.astype(jnp.float32), n_pad, d_pad)

    w_p = w_p.astype(jnp.float32).reshape(-1)
    w_n = w_n.astype(jnp.float32).reshape(-1)
    # keep the scalar-prefetch operand non-empty even when hop == 0
    w_n_arg = w_n if w_n.shape[0] > 0 else jnp.zeros((1,), jnp.float32)

    vmem_limit = _vmem_limit_bytes()

    if force_tiled or _resident_vmem_bytes(n_pad, td, hop_p) > int(0.85 * vmem_limit):
        # Adjacency no longer fits resident VMEM: K-tiled per-hop path.
        feat_p_full, feat_n_full = _simpa_tiled(a_p_b, a_n_b, x_p_pad, x_n_pad,
                                                w_p, w_n, hop_p)
    else:
        kernel = functools.partial(_simpa_kernel, hop_p=hop_p)

        def run(single_buffer_adj):
            adj_kw = dict(pipeline_mode=pl.Buffered(1)) if single_buffer_adj else {}
            return pl.pallas_call(
                kernel,
                out_shape=(jax.ShapeDtypeStruct((n_pad, d_pad), jnp.float32),
                           jax.ShapeDtypeStruct((n_pad, d_pad), jnp.float32)),
                grid_spec=pltpu.PrefetchScalarGridSpec(
                    num_scalar_prefetch=2,                       # w_p, w_n -> SMEM
                    grid=(d_pad // td,),
                    in_specs=[
                        pl.BlockSpec((n_pad, n_pad),
                                     lambda j, wp, wn: (0, 0), **adj_kw),   # a_p
                        pl.BlockSpec((n_pad, n_pad),
                                     lambda j, wp, wn: (0, 0), **adj_kw),   # a_n
                        pl.BlockSpec((n_pad, td), lambda j, wp, wn: (0, j)),  # x_p
                        pl.BlockSpec((n_pad, td), lambda j, wp, wn: (0, j)),  # x_n
                    ],
                    out_specs=[
                        pl.BlockSpec((n_pad, td), lambda j, wp, wn: (0, j)),  # feat_p
                        pl.BlockSpec((n_pad, td), lambda j, wp, wn: (0, j)),  # feat_n
                    ],
                    scratch_shapes=[
                        pltpu.VMEM((n_pad, max(2, hop_p) * td), jnp.bfloat16)],
                ),
                compiler_params=pltpu.CompilerParams(
                    dimension_semantics=("parallel",),
                    vmem_limit_bytes=vmem_limit,
                ),
            )(w_p, w_n_arg, a_p_b, a_n_b, x_p_pad, x_n_pad)

        try:
            feat_p_full, feat_n_full = run(True)
        except Exception:
            # TODO(synk): drop this retry once Buffered(1) single-buffering is
            # confirmed on the deployed jaxlib; it only costs VMEM, not speed.
            feat_p_full, feat_n_full = run(False)

    # Un-pad and assemble the module's (N, 2*D) output layout.
    return jnp.concatenate([feat_p_full[:n, :d], feat_n_full[:n, :d]], axis=1)


# ------------------------- JAX glue (normalisation) -------------------------
# Dense equivalent of conv_norm_rw + MessagePassing(aggr='add',
# flow='target_to_source'): out = D_row^{-1} (A + remaining-self-loops*fill) @ x.

def conv_norm_rw_dense(edge_index, edge_weight, num_nodes, fill_value):
    row, col = edge_index[0], edge_index[1]
    a = jnp.zeros((num_nodes, num_nodes), jnp.float32)
    a = a.at[row, col].add(edge_weight)
    has_self = (jnp.zeros((num_nodes,), jnp.float32)
                .at[row].add(jnp.where(row == col, 1.0, 0.0)) > 0)
    a = a + jnp.diag(jnp.where(has_self, 0.0, jnp.float32(fill_value)))
    row_deg = a.sum(axis=1)
    deg_inv = jnp.where(row_deg == 0.0, 0.0, 1.0 / row_deg)   # inf -> 0
    return deg_inv[:, None] * a


# ---------------------------- pure-JAX references ---------------------------

def _prop_f32(a, x):
    return jnp.dot(a, x, preferred_element_type=jnp.float32)


def _prop_bf16(a_bf, x):
    # Same numerics as the kernel: bf16 operands, f32 accumulation.
    return jnp.dot(a_bf, x.astype(jnp.bfloat16),
                   preferred_element_type=jnp.float32)


def simpa_ref(a_p, a_n, x_p, x_n, w_p, w_n, hop, prop):
    """Follows the original torch loop order exactly."""
    hop_p = hop + 1
    feat_p = w_p[0] * x_p
    feat_n = jnp.zeros_like(feat_p)
    curr_p, curr_n_aux = x_p, x_n
    j = 0
    for h in range(hop_p):
        if h > 0:
            curr_p = prop(a_p, curr_p)
            curr_n_aux = prop(a_p, curr_n_aux)
            feat_p = feat_p + w_p[h] * curr_p
        if h != hop_p - 1:
            curr_n = prop(a_n, curr_n_aux)
            feat_n = feat_n + w_n[j] * curr_n
            j += 1
            for _ in range(hop_p - 2 - h):
                curr_n = prop(a_p, curr_n)
                feat_n = feat_n + w_n[j] * curr_n
                j += 1
    return jnp.concatenate([feat_p, feat_n], axis=1)


# ----------------------------------- main ------------------------------------

if __name__ == "__main__":
    hop = 2
    fill_value = 0.5
    hop_p = hop + 1                     # 3
    hop_n = (1 + hop) * hop // 2        # 3

    N, D, E_P, E_N = 16, 32, 40, 30

    key = jax.random.PRNGKey(0)
    k1, k2, k3, k4, k5, k6, k7, k8 = jax.random.split(key, 8)

    edge_index_p = jax.random.randint(k1, (2, E_P), 0, N, dtype=jnp.int32)
    edge_weight_p = jax.random.uniform(k2, (E_P,), jnp.float32, 0.1, 1.0)
    edge_index_n = jax.random.randint(k3, (2, E_N), 0, N, dtype=jnp.int32)
    edge_weight_n = jax.random.uniform(k4, (E_N,), jnp.float32, 0.1, 1.0)
    x_p = jax.random.normal(k5, (N, D), jnp.float32)
    x_n = jax.random.normal(k6, (N, D), jnp.float32)

    # Module parameters exactly as in _reset_parameters_undirected (1.0).
    w_p = jnp.ones((hop_p,), jnp.float32)
    w_n = jnp.ones((hop_n,), jnp.float32)

    # Glue: dense row-normalised adjacencies (positive: fill_value self-loops;
    # negative: fill_value = 0, matching SIMPA_Base(0)).
    a_p = conv_norm_rw_dense(edge_index_p, edge_weight_p, N, fill_value)
    a_n = conv_norm_rw_dense(edge_index_n, edge_weight_n, N, 0.0)

    feat = jax.block_until_ready(simpa_pallas(a_p, a_n, x_p, x_n, w_p, w_n, hop))
    assert feat.shape == (N, 2 * D)

    a_p_bf = a_p.astype(jnp.bfloat16)
    a_n_bf = a_n.astype(jnp.bfloat16)

    # Strict check: same numerics as the kernel (bf16 matmuls, f32 accumulate),
    # original (unfused) loop order -> validates the fused restructuring.
    ref_bf16 = simpa_ref(a_p_bf, a_n_bf, x_p, x_n, w_p, w_n, hop, _prop_bf16)
    np.testing.assert_allclose(np.asarray(feat), np.asarray(ref_bf16),
                               rtol=1e-3, atol=1e-3)

    # Loose sanity check vs full-f32 module semantics (bf16 adjacency drift).
    ref_f32 = simpa_ref(a_p, a_n, x_p, x_n, w_p, w_n, hop, _prop_f32)
    np.testing.assert_allclose(np.asarray(feat), np.asarray(ref_f32),
                               rtol=1e-1, atol=1e-1)

    # Extra validation: non-trivial hop weights (checks the fused weight-index
    # mapping) and the forced large-N K-tiled fallback path.
    w_p_r = jax.random.uniform(k7, (hop_p,), jnp.float32, 0.5, 1.5)
    w_n_r = jax.random.uniform(k8, (hop_n,), jnp.float32, 0.5, 1.5)
    ref_r = simpa_ref(a_p_bf, a_n_bf, x_p, x_n, w_p_r, w_n_r, hop, _prop_bf16)

    feat_r = jax.block_until_ready(
        simpa_pallas(a_p, a_n, x_p, x_n, w_p_r, w_n_r, hop))
    np.testing.assert_allclose(np.asarray(feat_r), np.asarray(ref_r),
                               rtol=1e-3, atol=1e-3)

    feat_t = jax.block_until_ready(
        simpa_pallas(a_p, a_n, x_p, x_n, w_p_r, w_n_r, hop, force_tiled=True))
    np.testing.assert_allclose(np.asarray(feat_t), np.asarray(ref_r),
                               rtol=1e-3, atol=1e-3)

    print("KERNEL_OK")
</pallas_src>

<mosaic_0001>
module attributes {stable_mosaic.version = 11 : i64} {
  func.func @_simpa_kernel(%arg0: i32, %arg1: memref<3xf32, #tpu.memory_space<smem>>, %arg2: memref<3xf32, #tpu.memory_space<smem>>, %arg3: memref<128x128xbf16, #tpu.memory_space<vmem>>, %arg4: memref<128x128xbf16, #tpu.memory_space<vmem>>, %arg5: memref<128x128xf32, #tpu.memory_space<vmem>>, %arg6: memref<128x128xf32, #tpu.memory_space<vmem>>, %arg7: memref<128x128xf32, #tpu.memory_space<vmem>>, %arg8: memref<128x128xf32, #tpu.memory_space<vmem>>, %arg9: memref<128x384xbf16, #tpu.memory_space<vmem>>) attributes {dimension_semantics = [#tpu.dimension_semantics<parallel>], iteration_bounds = array<i64: 1>, scalar_prefetch = 2 : i64, scratch_operands = 1 : i64, tpu.core_type = #tpu.core_type<tc>, window_params = [{pipeline_mode = #tpu.pipeline_mode<synchronous>, transform_indices = @transform_0, window_bounds = array<i64: 128, 128>}, {pipeline_mode = #tpu.pipeline_mode<synchronous>, transform_indices = @transform_1, window_bounds = array<i64: 128, 128>}, {transform_indices = @transform_2, window_bounds = array<i64: 128, 128>}, {transform_indices = @transform_3, window_bounds = array<i64: 128, 128>}, {transform_indices = @transform_4, window_bounds = array<i64: 128, 128>}, {transform_indices = @transform_5, window_bounds = array<i64: 128, 128>}]} {
    %c0 = arith.constant 0 : index
    %0 = memref.load %arg1[%c0] : memref<3xf32, #tpu.memory_space<smem>>
    %c1 = arith.constant 1 : index
    %1 = memref.load %arg1[%c1] : memref<3xf32, #tpu.memory_space<smem>>
    %c2 = arith.constant 2 : index
    %2 = memref.load %arg1[%c2] : memref<3xf32, #tpu.memory_space<smem>>
    %c0_0 = arith.constant 0 : index
    %3 = memref.load %arg2[%c0_0] : memref<3xf32, #tpu.memory_space<smem>>
    %c1_1 = arith.constant 1 : index
    %4 = memref.load %arg2[%c1_1] : memref<3xf32, #tpu.memory_space<smem>>
    %c2_2 = arith.constant 2 : index
    %5 = memref.load %arg2[%c2_2] : memref<3xf32, #tpu.memory_space<smem>>
    %c0_3 = arith.constant 0 : index
    %c0_4 = arith.constant 0 : index
    %6 = vector.load %arg5[%c0_3, %c0_4] : memref<128x128xf32, #tpu.memory_space<vmem>>, vector<128x128xf32>
    %7 = vector.broadcast %0 : f32 to vector<128x128xf32>
    %8 = arith.mulf %7, %6 : vector<128x128xf32>
    %c0_5 = arith.constant 0 : index
    %c0_6 = arith.constant 0 : index
    %9 = vector.load %arg7[%c0_5, %c0_6] : memref<128x128xf32, #tpu.memory_space<vmem>>, vector<128x128xf32>
    tpu.vector_store %arg7[%c0_5, %c0_6], %8 {strides = array<i32>} : memref<128x128xf32, #tpu.memory_space<vmem>>, vector<128x128xf32>,
    %c0_7 = arith.constant 0 : index
    %c0_8 = arith.constant 0 : index
    %10 = vector.load %arg3[%c0_7, %c0_8] : memref<128x128xbf16, #tpu.memory_space<vmem>>, vector<128x128xbf16>
    %c0_9 = arith.constant 0 : index
    %c0_10 = arith.constant 0 : index
    %11 = vector.load %arg4[%c0_9, %c0_10] : memref<128x128xbf16, #tpu.memory_space<vmem>>, vector<128x128xbf16>
    %12 = arith.truncf %6 : vector<128x128xf32> to vector<128x128xbf16>
    %c0_11 = arith.constant 0 : index
    %c0_12 = arith.constant 0 : index
    %13 = vector.load %arg9[%c0_11, %c0_12] : memref<128x384xbf16, #tpu.memory_space<vmem>>, vector<128x128xbf16>
    tpu.vector_store %arg9[%c0_11, %c0_12], %12 {strides = array<i32>} : memref<128x384xbf16, #tpu.memory_space<vmem>>, vector<128x128xbf16>,
    %c0_13 = arith.constant 0 : index
    %c0_14 = arith.constant 0 : index
    %14 = vector.load %arg6[%c0_13, %c0_14] : memref<128x128xf32, #tpu.memory_space<vmem>>, vector<128x128xf32>
    %15 = arith.truncf %14 : vector<128x128xf32> to vector<128x128xbf16>
    %c0_15 = arith.constant 0 : index
    %c128 = arith.constant 128 : index
    %16 = vector.load %arg9[%c0_15, %c128] : memref<128x384xbf16, #tpu.memory_space<vmem>>, vector<128x128xbf16>
    tpu.vector_store %arg9[%c0_15, %c128], %15 {strides = array<i32>} : memref<128x384xbf16, #tpu.memory_space<vmem>>, vector<128x128xbf16>,
    %c0_16 = arith.constant 0 : index
    %c128_17 = arith.constant 128 : index
    %17 = vector.load %arg9[%c0_16, %c128_17] : memref<128x384xbf16, #tpu.memory_space<vmem>>, vector<128x128xbf16>
    %cst = arith.constant dense<0.000000e+00> : vector<128x128xf32>
    %18 = tpu.matmul %11, %17, %cst {dimension_numbers = #tpu.dot_dimension_numbers<[1], [0], [0], [1], [0, 0, 1, 1], [], []>} : vector<128x128xbf16>, vector<128x128xbf16>, vector<128x128xf32> -> vector<128x128xf32>
    %19 = vector.broadcast %3 : f32 to vector<128x128xf32>
    %20 = arith.mulf %19, %18 : vector<128x128xf32>
    %21 = arith.truncf %18 : vector<128x128xf32> to vector<128x128xbf16>
    %c0_18 = arith.constant 0 : index
    %c256 = arith.constant 256 : index
    %22 = vector.load %arg9[%c0_18, %c256] : memref<128x384xbf16, #tpu.memory_space<vmem>>, vector<128x128xbf16>
    tpu.vector_store %arg9[%c0_18, %c256], %21 {strides = array<i32>} : memref<128x384xbf16, #tpu.memory_space<vmem>>, vector<128x128xbf16>,
    %c0_19 = arith.constant 0 : index
    %c0_20 = arith.constant 0 : index
    %23 = vector.load %arg9[%c0_19, %c0_20] : memref<128x384xbf16, #tpu.memory_space<vmem>>, vector<128x384xbf16>
    %cst_21 = arith.constant dense<0.000000e+00> : vector<128x384xf32>
    %24 = tpu.matmul %10, %23, %cst_21 {dimension_numbers = #tpu.dot_dimension_numbers<[1], [0], [0], [1], [0, 0, 1, 1], [], []>} : vector<128x128xbf16>, vector<128x384xbf16>, vector<128x384xf32> -> vector<128x384xf32>
    %25 = arith.truncf %24 : vector<128x384xf32> to vector<128x384xbf16>
    %c0_22 = arith.constant 0 : index
    %c0_23 = arith.constant 0 : index
    %26 = vector.load %arg9[%c0_22, %c0_23] : memref<128x384xbf16, #tpu.memory_space<vmem>>, vector<128x384xbf16>
    tpu.vector_store %arg9[%c0_22, %c0_23], %25 {strides = array<i32>} : memref<128x384xbf16, #tpu.memory_space<vmem>>, vector<128x384xbf16>,
    %c0_24 = arith.constant 0 : index
    %c0_25 = arith.constant 0 : index
    %27 = vector.load %arg7[%c0_24, %c0_25] : memref<128x128xf32, #tpu.memory_space<vmem>>, vector<128x128xf32>
    %28 = vector.extract_strided_slice %24 {offsets = [0, 0], sizes = [128, 128], strides = [1, 1]} : vector<128x384xf32> to vector<128x128xf32>
    %29 = vector.broadcast %1 : f32 to vector<128x128xf32>
    %30 = arith.mulf %29, %28 : vector<128x128xf32>
    %31 = arith.addf %27, %30 : vector<128x128xf32>
    %c0_26 = arith.constant 0 : index
    %c0_27 = arith.constant 0 : index
    %32 = vector.load %arg7[%c0_26, %c0_27] : memref<128x128xf32, #tpu.memory_space<vmem>>, vector<128x128xf32>
    tpu.vector_store %arg7[%c0_26, %c0_27], %31 {strides = array<i32>} : memref<128x128xf32, #tpu.memory_space<vmem>>, vector<128x128xf32>,
    %33 = vector.extract_strided_slice %24 {offsets = [0, 256], sizes = [128, 128], strides = [1, 1]} : vector<128x384xf32> to vector<128x128xf32>
    %34 = vector.broadcast %4 : f32 to vector<128x128xf32>
    %35 = arith.mulf %34, %33 : vector<128x128xf32>
    %36 = arith.addf %20, %35 : vector<128x128xf32>
    %c0_28 = arith.constant 0 : index
    %c0_29 = arith.constant 0 : index
    %37 = vector.load %arg8[%c0_28, %c0_29] : memref<128x128xf32, #tpu.memory_space<vmem>>, vector<128x128xf32>
    tpu.vector_store %arg8[%c0_28, %c0_29], %36 {strides = array<i32>} : memref<128x128xf32, #tpu.memory_space<vmem>>, vector<128x128xf32>,
    %c0_30 = arith.constant 0 : index
    %c128_31 = arith.constant 128 : index
    %38 = vector.load %arg9[%c0_30, %c128_31] : memref<128x384xbf16, #tpu.memory_space<vmem>>, vector<128x128xbf16>
    %cst_32 = arith.constant dense<0.000000e+00> : vector<128x128xf32>
    %39 = tpu.matmul %11, %38, %cst_32 {dimension_numbers = #tpu.dot_dimension_numbers<[1], [0], [0], [1], [0, 0, 1, 1], [], []>} : vector<128x128xbf16>, vector<128x128xbf16>, vector<128x128xf32> -> vector<128x128xf32>
    %40 = vector.broadcast %5 : f32 to vector<128x128xf32>
    %41 = arith.mulf %40, %39 : vector<128x128xf32>
    %c0_33 = arith.constant 0 : index
    %c0_34 = arith.constant 0 : index
    %42 = vector.load %arg9[%c0_33, %c0_34] : memref<128x384xbf16, #tpu.memory_space<vmem>>, vector<128x128xbf16>
    %cst_35 = arith.constant dense<0.000000e+00> : vector<128x128xf32>
    %43 = tpu.matmul %10, %42, %cst_35 {dimension_numbers = #tpu.dot_dimension_numbers<[1], [0], [0], [1], [0, 0, 1, 1], [], []>} : vector<128x128xbf16>, vector<128x128xbf16>, vector<128x128xf32> -> vector<128x128xf32>
    %c0_36 = arith.constant 0 : index
    %c0_37 = arith.constant 0 : index
    %44 = vector.load %arg7[%c0_36, %c0_37] : memref<128x128xf32, #tpu.memory_space<vmem>>, vector<128x128xf32>
    %45 = vector.broadcast %2 : f32 to vector<128x128xf32>
    %46 = arith.mulf %45, %43 : vector<128x128xf32>
    %47 = arith.addf %44, %46 : vector<128x128xf32>
    %c0_38 = arith.constant 0 : index
    %c0_39 = arith.constant 0 : index
    %48 = vector.load %arg7[%c0_38, %c0_39] : memref<128x128xf32, #tpu.memory_space<vmem>>, vector<128x128xf32>
    tpu.vector_store %arg7[%c0_38, %c0_39], %47 {strides = array<i32>} : memref<128x128xf32, #tpu.memory_space<vmem>>, vector<128x128xf32>,
    %c0_40 = arith.constant 0 : index
    %c0_41 = arith.constant 0 : index
    %49 = vector.load %arg8[%c0_40, %c0_41] : memref<128x128xf32, #tpu.memory_space<vmem>>, vector<128x128xf32>
    %50 = arith.addf %49, %41 : vector<128x128xf32>
    %c0_42 = arith.constant 0 : index
    %c0_43 = arith.constant 0 : index
    %51 = vector.load %arg8[%c0_42, %c0_43] : memref<128x128xf32, #tpu.memory_space<vmem>>, vector<128x128xf32>
    tpu.vector_store %arg8[%c0_42, %c0_43], %50 {strides = array<i32>} : memref<128x128xf32, #tpu.memory_space<vmem>>, vector<128x128xf32>,
    return
  }
  func.func @transform_0(%arg0: i32, %arg1: memref<3xf32, #tpu.memory_space<smem>>, %arg2: memref<3xf32, #tpu.memory_space<smem>>) -> (i32, i32) {
    %c0_i32 = arith.constant 0 : i32
    %c0_i32_0 = arith.constant 0 : i32
    %c0_i32_1 = arith.constant 0 : i32
    return %c0_i32, %c0_i32_0 : i32, i32
  }
  func.func @transform_1(%arg0: i32, %arg1: memref<3xf32, #tpu.memory_space<smem>>, %arg2: memref<3xf32, #tpu.memory_space<smem>>) -> (i32, i32) {
    %c0_i32 = arith.constant 0 : i32
    %c0_i32_0 = arith.constant 0 : i32
    %c0_i32_1 = arith.constant 0 : i32
    return %c0_i32, %c0_i32_0 : i32, i32
  }
  func.func @transform_2(%arg0: i32, %arg1: memref<3xf32, #tpu.memory_space<smem>>, %arg2: memref<3xf32, #tpu.memory_space<smem>>) -> (i32, i32) {
    %c0_i32 = arith.constant 0 : i32
    %c0_i32_0 = arith.constant 0 : i32
    return %c0_i32, %arg0 : i32, i32
  }
  func.func @transform_3(%arg0: i32, %arg1: memref<3xf32, #tpu.memory_space<smem>>, %arg2: memref<3xf32, #tpu.memory_space<smem>>) -> (i32, i32) {
    %c0_i32 = arith.constant 0 : i32
    %c0_i32_0 = arith.constant 0 : i32
    return %c0_i32, %arg0 : i32, i32
  }
  func.func @transform_4(%arg0: i32, %arg1: memref<3xf32, #tpu.memory_space<smem>>, %arg2: memref<3xf32, #tpu.memory_space<smem>>) -> (i32, i32) {
    %c0_i32 = arith.constant 0 : i32
    %c0_i32_0 = arith.constant 0 : i32
    return %c0_i32, %arg0 : i32, i32
  }
  func.func @transform_5(%arg0: i32, %arg1: memref<3xf32, #tpu.memory_space<smem>>, %arg2: memref<3xf32, #tpu.memory_space<smem>>) -> (i32, i32) {
    %c0_i32 = arith.constant 0 : i32
    %c0_i32_0 = arith.constant 0 : i32
    return %c0_i32, %arg0 : i32, i32
  }
}

module attributes {stable_mosaic.version = 11 : i64} {
  func.func @_simpa_kernel(%arg0: i32, %arg1: memref<3xf32, #tpu.memory_space<smem>>, %arg2: memref<3xf32, #tpu.memory_space<smem>>, %arg3: memref<128x128xbf16, #tpu.memory_space<vmem>>, %arg4: memref<128x128xbf16, #tpu.memory_space<vmem>>, %arg5: memref<128x128xf32, #tpu.memory_space<vmem>>, %arg6: memref<128x128xf32, #tpu.memory_space<vmem>>, %arg7: memref<128x128xf32, #tpu.memory_space<vmem>>, %arg8: memref<128x128xf32, #tpu.memory_space<vmem>>, %arg9: memref<128x384xbf16, #tpu.memory_space<vmem>>) attributes {dimension_semantics = [#tpu.dimension_semantics<parallel>], iteration_bounds = array<i64: 1>, scalar_prefetch = 2 : i64, scratch_operands = 1 : i64, tpu.core_type = #tpu.core_type<tc>, window_params = [{pipeline_mode = #tpu.pipeline_mode<synchronous>, transform_indices = @transform_0, window_bounds = array<i64: 128, 128>}, {pipeline_mode = #tpu.pipeline_mode<synchronous>, transform_indices = @transform_1, window_bounds = array<i64: 128, 128>}, {transform_indices = @transform_2, window_bounds = array<i64: 128, 128>}, {transform_indices = @transform_3, window_bounds = array<i64: 128, 128>}, {transform_indices = @transform_4, window_bounds = array<i64: 128, 128>}, {transform_indices = @transform_5, window_bounds = array<i64: 128, 128>}]} {
    %c0 = arith.constant 0 : index
    %0 = memref.load %arg1[%c0] : memref<3xf32, #tpu.memory_space<smem>>
    %c1 = arith.constant 1 : index
    %1 = memref.load %arg1[%c1] : memref<3xf32, #tpu.memory_space<smem>>
    %c2 = arith.constant 2 : index
    %2 = memref.load %arg1[%c2] : memref<3xf32, #tpu.memory_space<smem>>
    %c0_0 = arith.constant 0 : index
    %3 = memref.load %arg2[%c0_0] : memref<3xf32, #tpu.memory_space<smem>>
    %c1_1 = arith.constant 1 : index
    %4 = memref.load %arg2[%c1_1] : memref<3xf32, #tpu.memory_space<smem>>
    %c2_2 = arith.constant 2 : index
    %5 = memref.load %arg2[%c2_2] : memref<3xf32, #tpu.memory_space<smem>>
    %c0_3 = arith.constant 0 : index
    %c0_4 = arith.constant 0 : index
    %6 = vector.load %arg5[%c0_3, %c0_4] : memref<128x128xf32, #tpu.memory_space<vmem>>, vector<128x128xf32>
    %7 = vector.broadcast %0 : f32 to vector<128x128xf32>
    %8 = arith.mulf %7, %6 : vector<128x128xf32>
    %c0_5 = arith.constant 0 : index
    %c0_6 = arith.constant 0 : index
    %9 = vector.load %arg7[%c0_5, %c0_6] : memref<128x128xf32, #tpu.memory_space<vmem>>, vector<128x128xf32>
    tpu.vector_store %arg7[%c0_5, %c0_6], %8 {strides = array<i32>} : memref<128x128xf32, #tpu.memory_space<vmem>>, vector<128x128xf32>,
    %c0_7 = arith.constant 0 : index
    %c0_8 = arith.constant 0 : index
    %10 = vector.load %arg3[%c0_7, %c0_8] : memref<128x128xbf16, #tpu.memory_space<vmem>>, vector<128x128xbf16>
    %c0_9 = arith.constant 0 : index
    %c0_10 = arith.constant 0 : index
    %11 = vector.load %arg4[%c0_9, %c0_10] : memref<128x128xbf16, #tpu.memory_space<vmem>>, vector<128x128xbf16>
    %12 = arith.truncf %6 : vector<128x128xf32> to vector<128x128xbf16>
    %c0_11 = arith.constant 0 : index
    %c0_12 = arith.constant 0 : index
    %13 = vector.load %arg9[%c0_11, %c0_12] : memref<128x384xbf16, #tpu.memory_space<vmem>>, vector<128x128xbf16>
    tpu.vector_store %arg9[%c0_11, %c0_12], %12 {strides = array<i32>} : memref<128x384xbf16, #tpu.memory_space<vmem>>, vector<128x128xbf16>,
    %c0_13 = arith.constant 0 : index
    %c0_14 = arith.constant 0 : index
    %14 = vector.load %arg6[%c0_13, %c0_14] : memref<128x128xf32, #tpu.memory_space<vmem>>, vector<128x128xf32>
    %15 = arith.truncf %14 : vector<128x128xf32> to vector<128x128xbf16>
    %c0_15 = arith.constant 0 : index
    %c128 = arith.constant 128 : index
    %16 = vector.load %arg9[%c0_15, %c128] : memref<128x384xbf16, #tpu.memory_space<vmem>>, vector<128x128xbf16>
    tpu.vector_store %arg9[%c0_15, %c128], %15 {strides = array<i32>} : memref<128x384xbf16, #tpu.memory_space<vmem>>, vector<128x128xbf16>,
    %c0_16 = arith.constant 0 : index
    %c128_17 = arith.constant 128 : index
    %17 = vector.load %arg9[%c0_16, %c128_17] : memref<128x384xbf16, #tpu.memory_space<vmem>>, vector<128x128xbf16>
    %cst = arith.constant dense<0.000000e+00> : vector<128x128xf32>
    %18 = tpu.matmul %11, %17, %cst {dimension_numbers = #tpu.dot_dimension_numbers<[1], [0], [0], [1], [0, 0, 1, 1], [], []>} : vector<128x128xbf16>, vector<128x128xbf16>, vector<128x128xf32> -> vector<128x128xf32>
    %19 = vector.broadcast %3 : f32 to vector<128x128xf32>
    %20 = arith.mulf %19, %18 : vector<128x128xf32>
    %21 = arith.truncf %18 : vector<128x128xf32> to vector<128x128xbf16>
    %c0_18 = arith.constant 0 : index
    %c256 = arith.constant 256 : index
    %22 = vector.load %arg9[%c0_18, %c256] : memref<128x384xbf16, #tpu.memory_space<vmem>>, vector<128x128xbf16>
    tpu.vector_store %arg9[%c0_18, %c256], %21 {strides = array<i32>} : memref<128x384xbf16, #tpu.memory_space<vmem>>, vector<128x128xbf16>,
    %c0_19 = arith.constant 0 : index
    %c0_20 = arith.constant 0 : index
    %23 = vector.load %arg9[%c0_19, %c0_20] : memref<128x384xbf16, #tpu.memory_space<vmem>>, vector<128x384xbf16>
    %cst_21 = arith.constant dense<0.000000e+00> : vector<128x384xf32>
    %24 = tpu.matmul %10, %23, %cst_21 {dimension_numbers = #tpu.dot_dimension_numbers<[1], [0], [0], [1], [0, 0, 1, 1], [], []>} : vector<128x128xbf16>, vector<128x384xbf16>, vector<128x384xf32> -> vector<128x384xf32>
    %25 = arith.truncf %24 : vector<128x384xf32> to vector<128x384xbf16>
    %c0_22 = arith.constant 0 : index
    %c0_23 = arith.constant 0 : index
    %26 = vector.load %arg9[%c0_22, %c0_23] : memref<128x384xbf16, #tpu.memory_space<vmem>>, vector<128x384xbf16>
    tpu.vector_store %arg9[%c0_22, %c0_23], %25 {strides = array<i32>} : memref<128x384xbf16, #tpu.memory_space<vmem>>, vector<128x384xbf16>,
    %c0_24 = arith.constant 0 : index
    %c0_25 = arith.constant 0 : index
    %27 = vector.load %arg7[%c0_24, %c0_25] : memref<128x128xf32, #tpu.memory_space<vmem>>, vector<128x128xf32>
    %28 = vector.extract_strided_slice %24 {offsets = [0, 0], sizes = [128, 128], strides = [1, 1]} : vector<128x384xf32> to vector<128x128xf32>
    %29 = vector.broadcast %1 : f32 to vector<128x128xf32>
    %30 = arith.mulf %29, %28 : vector<128x128xf32>
    %31 = arith.addf %27, %30 : vector<128x128xf32>
    %c0_26 = arith.constant 0 : index
    %c0_27 = arith.constant 0 : index
    %32 = vector.load %arg7[%c0_26, %c0_27] : memref<128x128xf32, #tpu.memory_space<vmem>>, vector<128x128xf32>
    tpu.vector_store %arg7[%c0_26, %c0_27], %31 {strides = array<i32>} : memref<128x128xf32, #tpu.memory_space<vmem>>, vector<128x128xf32>,
    %33 = vector.extract_strided_slice %24 {offsets = [0, 256], sizes = [128, 128], strides = [1, 1]} : vector<128x384xf32> to vector<128x128xf32>
    %34 = vector.broadcast %4 : f32 to vector<128x128xf32>
    %35 = arith.mulf %34, %33 : vector<128x128xf32>
    %36 = arith.addf %20, %35 : vector<128x128xf32>
    %c0_28 = arith.constant 0 : index
    %c0_29 = arith.constant 0 : index
    %37 = vector.load %arg8[%c0_28, %c0_29] : memref<128x128xf32, #tpu.memory_space<vmem>>, vector<128x128xf32>
    tpu.vector_store %arg8[%c0_28, %c0_29], %36 {strides = array<i32>} : memref<128x128xf32, #tpu.memory_space<vmem>>, vector<128x128xf32>,
    %c0_30 = arith.constant 0 : index
    %c128_31 = arith.constant 128 : index
    %38 = vector.load %arg9[%c0_30, %c128_31] : memref<128x384xbf16, #tpu.memory_space<vmem>>, vector<128x128xbf16>
    %cst_32 = arith.constant dense<0.000000e+00> : vector<128x128xf32>
    %39 = tpu.matmul %11, %38, %cst_32 {dimension_numbers = #tpu.dot_dimension_numbers<[1], [0], [0], [1], [0, 0, 1, 1], [], []>} : vector<128x128xbf16>, vector<128x128xbf16>, vector<128x128xf32> -> vector<128x128xf32>
    %40 = vector.broadcast %5 : f32 to vector<128x128xf32>
    %41 = arith.mulf %40, %39 : vector<128x128xf32>
    %c0_33 = arith.constant 0 : index
    %c0_34 = arith.constant 0 : index
    %42 = vector.load %arg9[%c0_33, %c0_34] : memref<128x384xbf16, #tpu.memory_space<vmem>>, vector<128x128xbf16>
    %cst_35 = arith.constant dense<0.000000e+00> : vector<128x128xf32>
    %43 = tpu.matmul %10, %42, %cst_35 {dimension_numbers = #tpu.dot_dimension_numbers<[1], [0], [0], [1], [0, 0, 1, 1], [], []>} : vector<128x128xbf16>, vector<128x128xbf16>, vector<128x128xf32> -> vector<128x128xf32>
    %c0_36 = arith.constant 0 : index
    %c0_37 = arith.constant 0 : index
    %44 = vector.load %arg7[%c0_36, %c0_37] : memref<128x128xf32, #tpu.memory_space<vmem>>, vector<128x128xf32>
    %45 = vector.broadcast %2 : f32 to vector<128x128xf32>
    %46 = arith.mulf %45, %43 : vector<128x128xf32>
    %47 = arith.addf %44, %46 : vector<128x128xf32>
    %c0_38 = arith.constant 0 : index
    %c0_39 = arith.constant 0 : index
    %48 = vector.load %arg7[%c0_38, %c0_39] : memref<128x128xf32, #tpu.memory_space<vmem>>, vector<128x128xf32>
    tpu.vector_store %arg7[%c0_38, %c0_39], %47 {strides = array<i32>} : memref<128x128xf32, #tpu.memory_space<vmem>>, vector<128x128xf32>,
    %c0_40 = arith.constant 0 : index
    %c0_41 = arith.constant 0 : index
    %49 = vector.load %arg8[%c0_40, %c0_41] : memref<128x128xf32, #tpu.memory_space<vmem>>, vector<128x128xf32>
    %50 = arith.addf %49, %41 : vector<128x128xf32>
    %c0_42 = arith.constant 0 : index
    %c0_43 = arith.constant 0 : index
    %51 = vector.load %arg8[%c0_42, %c0_43] : memref<128x128xf32, #tpu.memory_space<vmem>>, vector<128x128xf32>
    tpu.vector_store %arg8[%c0_42, %c0_43], %50 {strides = array<i32>} : memref<128x128xf32, #tpu.memory_space<vmem>>, vector<128x128xf32>,
    return
  }
  func.func @transform_0(%arg0: i32, %arg1: memref<3xf32, #tpu.memory_space<smem>>, %arg2: memref<3xf32, #tpu.memory_space<smem>>) -> (i32, i32) {
    %c0_i32 = arith.constant 0 : i32
    %c0_i32_0 = arith.constant 0 : i32
    %c0_i32_1 = arith.constant 0 : i32
    return %c0_i32, %c0_i32_0 : i32, i32
  }
  func.func @transform_1(%arg0: i32, %arg1: memref<3xf32, #tpu.memory_space<smem>>, %arg2: memref<3xf32, #tpu.memory_space<smem>>) -> (i32, i32) {
    %c0_i32 = arith.constant 0 : i32
    %c0_i32_0 = arith.constant 0 : i32
    %c0_i32_1 = arith.constant 0 : i32
    return %c0_i32, %c0_i32_0 : i32, i32
  }
  func.func @transform_2(%arg0: i32, %arg1: memref<3xf32, #tpu.memory_space<smem>>, %arg2: memref<3xf32, #tpu.memory_space<smem>>) -> (i32, i32) {
    %c0_i32 = arith.constant 0 : i32
    %c0_i32_0 = arith.constant 0 : i32
    return %c0_i32, %arg0 : i32, i32
  }
  func.func @transform_3(%arg0: i32, %arg1: memref<3xf32, #tpu.memory_space<smem>>, %arg2: memref<3xf32, #tpu.memory_space<smem>>) -> (i32, i32) {
    %c0_i32 = arith.constant 0 : i32
    %c0_i32_0 = arith.constant 0 : i32
    return %c0_i32, %arg0 : i32, i32
  }
  func.func @transform_4(%arg0: i32, %arg1: memref<3xf32, #tpu.memory_space<smem>>, %arg2: memref<3xf32, #tpu.memory_space<smem>>) -> (i32, i32) {
    %c0_i32 = arith.constant 0 : i32
    %c0_i32_0 = arith.constant 0 : i32
    return %c0_i32, %arg0 : i32, i32
  }
  func.func @transform_5(%arg0: i32, %arg1: memref<3xf32, #tpu.memory_space<smem>>, %arg2: memref<3xf32, #tpu.memory_space<smem>>) -> (i32, i32) {
    %c0_i32 = arith.constant 0 : i32
    %c0_i32_0 = arith.constant 0 : i32
    return %c0_i32, %arg0 : i32, i32
  }
}

</mosaic_0001>

<llo_original>
// kernel: tpu_custom_call.1
$region0: #{tpu_custom_call.1}
  #allocation0 [shape = 'u32[]', space=smem, size = 0x4, offset = 0x4, fixed_abs, tag = 'smem constant byte address 0x4 - core index']
  #allocation1 [shape = 'u32[144,128]{1,0:T(1,128)}', space=vmem, size = 0x12000, scoped, tag = 'internal scratch']
  #allocation2 [shape = 'bf16[128,384]{1,0:T(16,128)(2,1)}', space=vmem, size = 0x18000, scoped, tag = 'scratch operand']
  #allocation3 [shape = 's32[1]{0}', space=sflag, size = 0x4, scoped, tag = 'scoped memory for tpu_custom_call.1']
  #allocation4 [shape = 'u8[512]{0}', space=smem, size = 0x200, scoped, tag = 'prefetched SMEM operand 0']
  #allocation5 [shape = 'u8[512]{0}', space=smem, size = 0x200, scoped, tag = 'prefetched SMEM operand 1']
  %s0 = inlined_call_operand.hbm [shape: f32[3], index: 0, kind: input, shape index: {}]
  %s1 = inlined_call_operand.vmem [shape: f32[3], index: 1, kind: input, shape index: {}]
  %s2 = inlined_call_operand.hbm [shape: bf16[128,128], index: 2, kind: input, shape index: {}]
  %s3 = inlined_call_operand.hbm [shape: bf16[128,128], index: 3, kind: input, shape index: {}]
  %s4 = inlined_call_operand.hbm [shape: f32[128,128], index: 4, kind: input, shape index: {}]
  %s5 = inlined_call_operand.hbm [shape: f32[128,128], index: 5, kind: input, shape index: {}]
  %s6 = inlined_call_operand.hbm [shape: f32[128,128], index: 6, kind: output, shape index: {0}]
  %s7 = inlined_call_operand.hbm [shape: f32[128,128], index: 7, kind: output, shape index: {1}]
  %8 = xla_tuple %s6, %s7
  %s9 = sld [smem:[#allocation0]]
  $region50: #{tpu_custom_call.1} parent=0
    _
  %s11 = ssub.s32 1, %s9
  %s12 = scalar_select 0, %s11, %s9
  %14 = dma.hbm_to_smem %s0, 16, [#allocation4], [#allocation3]
  %s15 = sshll.u32 %s1, 4
  %s16 = int_to_ptr.vmem [resolvable:$true] %s15
  %18 = dma.vmem_to_smem %s16, 16, [#allocation5], [#allocation3]
  %19 = dma.done [#allocation3], 32
  %20 = sfence
  $region1: #{tpu_custom_call.1} parent=0
    #allocation6 [shape = 'u8[32768]{0}', space=vmem, size = 0x8000, scoped, tag = 'input window, operand 2, single buffered']
    #allocation7 [shape = 's32[1]{0}', space=sflag, size = 0x4, scoped, tag = 'scoped memory for tpu_custom_call.1']
    #allocation8 [shape = 's32[1]{0}', space=sflag, size = 0x4, scoped, tag = 'scoped memory for tpu_custom_call.1']
    #allocation9 [shape = 'u8[32768]{0}', space=vmem, size = 0x8000, scoped, tag = 'input window, operand 3, single buffered']
    #allocation10 [shape = 's32[1]{0}', space=sflag, size = 0x4, scoped, tag = 'scoped memory for tpu_custom_call.1']
    #allocation11 [shape = 'u8[65536]{0}', space=vmem, size = 0x10000, scoped, tag = 'input window, operand 4, single buffered']
    #allocation12 [shape = 'u8[65536]{0}', space=vmem, size = 0x10000, scoped, tag = 'input window, operand 5, single buffered']
    #allocation13 [shape = 's32[1]{0}', space=sflag, size = 0x4, scoped, tag = 'scoped memory for tpu_custom_call.1']
    #allocation14 [shape = 'u8[65536]{0}', space=vmem, size = 0x10000, scoped, tag = 'output window, operand 0, single buffered']
    #allocation15 [shape = 'u8[65536]{0}', space=vmem, size = 0x10000, scoped, tag = 'output window, operand 1, single buffered']
    #allocation16 [shape = 's32[1]{0}', space=sflag, size = 0x4, scoped, tag = 'scoped memory for tpu_custom_call.1']
    %21 = vsyncpa [#allocation7], 0
    %22 = vsyncpa [#allocation10], 0
    %23 = vsyncpa [#allocation13], 0
    %24 = vsyncpa [#allocation8], 0
    %25 = vsyncpa [#allocation16], 0
    // Predicated region
    $region2: #{tpu_custom_call.1} parent=1 // pred_check
      _
    $region3: #{tpu_custom_call.1} parent=1 // pred_check_branch
      %27 = sbr.rel (0) target = $region5
    $region4: #{tpu_custom_call.1} parent=1 // pred_region
      %s29 = ssub.s32 1024, 1024
      %30 = vsyncadd [#allocation7], %s29
      %s31 = sshll.u32 [#allocation6], 4
      %s32 = int_to_ptr.vmem [resolvable:$true] %s31
      %37 = dma.hbm_to_vmem [thread:$0]  %s2, 1024, %s32, [#allocation7], 64, 64, 4
    $region5: #{tpu_custom_call.1} parent=1 // pred_fallthru
      _
    // Predicated region
    $region6: #{tpu_custom_call.1} parent=1 // pred_check
      _
    $region7: #{tpu_custom_call.1} parent=1 // pred_check_branch
      %39 = sbr.rel (0) target = $region9
    $region8: #{tpu_custom_call.1} parent=1 // pred_region
      %s41 = ssub.s32 1024, 1024
      %42 = vsyncadd [#allocation10], %s41
      %s43 = sshll.u32 [#allocation9], 4
      %s44 = int_to_ptr.vmem [resolvable:$true] %s43
      %49 = dma.hbm_to_vmem [thread:$0]  %s3, 1024, %s44, [#allocation10], 64, 64, 4
    $region9: #{tpu_custom_call.1} parent=1 // pred_fallthru
      _
    // Predicated region
    $region10: #{tpu_custom_call.1} parent=1 // pred_check
      _
    $region11: #{tpu_custom_call.1} parent=1 // pred_check_branch
      %51 = sbr.rel (0) target = $region13
    $region12: #{tpu_custom_call.1} parent=1 // pred_region
      %s53 = ssub.s32 2048, 2048
      %54 = vsyncadd [#allocation10], %s53
      %s55 = sshll.u32 [#allocation11], 4
      %s56 = int_to_ptr.vmem [resolvable:$true] %s55
      %61 = dma.hbm_to_vmem [thread:$0]  %s4, 2048, %s56, [#allocation10], 128, 128, 8
    $region13: #{tpu_custom_call.1} parent=1 // pred_fallthru
      _
    // Predicated region
    $region14: #{tpu_custom_call.1} parent=1 // pred_check
      _
    $region15: #{tpu_custom_call.1} parent=1 // pred_check_branch
      %63 = sbr.rel (0) target = $region17
    $region16: #{tpu_custom_call.1} parent=1 // pred_region
      %s65 = ssub.s32 2048, 2048
      %66 = vsyncadd [#allocation13], %s65
      %s67 = sshll.u32 [#allocation12], 4
      %s68 = int_to_ptr.vmem [resolvable:$true] %s67
      %73 = dma.hbm_to_vmem [thread:$0]  %s5, 2048, %s68, [#allocation13], 128, 128, 8
    $region17: #{tpu_custom_call.1} parent=1 // pred_fallthru
      _
    // Predicated region
    $region18: #{tpu_custom_call.1} parent=1 // pred_check
      _
    $region19: #{tpu_custom_call.1} parent=1 // pred_check_branch
      %75 = sbr.rel (0) target = $region21
    $region20: #{tpu_custom_call.1} parent=1 // pred_region
      %76 = dma.done [#allocation7], 1024
    $region21: #{tpu_custom_call.1} parent=1 // pred_fallthru
      _
    // Predicated region
    $region22: #{tpu_custom_call.1} parent=1 // pred_check
      _
    $region23: #{tpu_custom_call.1} parent=1 // pred_check_branch
      %78 = sbr.rel (0) target = $region25
    $region24: #{tpu_custom_call.1} parent=1 // pred_region
      %79 = dma.done [#allocation10], 1024
    $region25: #{tpu_custom_call.1} parent=1 // pred_fallthru
      _
    // Predicated region
    $region26: #{tpu_custom_call.1} parent=1 // pred_check
      _
    $region27: #{tpu_custom_call.1} parent=1 // pred_check_branch
      %81 = sbr.rel (0) target = $region29
    $region28: #{tpu_custom_call.1} parent=1 // pred_region
      %82 = dma.done [#allocation10], 2048
    $region29: #{tpu_custom_call.1} parent=1 // pred_fallthru
      _
    // Predicated region
    $region30: #{tpu_custom_call.1} parent=1 // pred_check
      _
    $region31: #{tpu_custom_call.1} parent=1 // pred_check_branch
      %84 = sbr.rel (0) target = $region33
    $region32: #{tpu_custom_call.1} parent=1 // pred_region
      %85 = dma.done [#allocation13], 2048
    $region33: #{tpu_custom_call.1} parent=1 // pred_fallthru
      _
    %s87 = sld [smem:[#allocation4]]
    %s88 = sld [smem:[#allocation4 + $0x1]]
    %s89 = sld [smem:[#allocation4 + $0x2]]
    %s90 = sld [smem:[#allocation5]]
    %s91 = sld [smem:[#allocation5 + $0x1]]
    %s92 = sld [smem:[#allocation5 + $0x2]]
    %v93 = vld [vmem:[#allocation11] sm:$0xff]
    %v94 = vld [vmem:[#allocation11 + $0x8] sm:$0xff]
    %v95 = vld [vmem:[#allocation11 + $0x10] sm:$0xff]
    %v96 = vld [vmem:[#allocation11 + $0x18] sm:$0xff]
    %v97 = vld [vmem:[#allocation11 + $0x20] sm:$0xff]
    %v98 = vld [vmem:[#allocation11 + $0x28] sm:$0xff]
    %v99 = vld [vmem:[#allocation11 + $0x30] sm:$0xff]
    %v100 = vld [vmem:[#allocation11 + $0x38] sm:$0xff]
    %v101 = vld [vmem:[#allocation11 + $0x40] sm:$0xff]
    %v102 = vld [vmem:[#allocation11 + $0x48] sm:$0xff]
    %v103 = vld [vmem:[#allocation11 + $0x50] sm:$0xff]
    %v104 = vld [vmem:[#allocation11 + $0x58] sm:$0xff]
    %v105 = vld [vmem:[#allocation11 + $0x60] sm:$0xff]
    %v106 = vld [vmem:[#allocation11 + $0x68] sm:$0xff]
    %v107 = vld [vmem:[#allocation11 + $0x70] sm:$0xff]
    %v108 = vld [vmem:[#allocation11 + $0x78] sm:$0xff]
    %v109 = vstv %s87
    %v110 = vmul.f32 %v109, %v93
    %v111 = vmul.f32 %v109, %v94
    %v112 = vmul.f32 %v109, %v95
    %v113 = vmul.f32 %v109, %v96
    %v114 = vmul.f32 %v109, %v97
    %v115 = vmul.f32 %v109, %v98
    %v116 = vmul.f32 %v109, %v99
    %v117 = vmul.f32 %v109, %v100
    %v118 = vmul.f32 %v109, %v101
    %v119 = vmul.f32 %v109, %v102
    %v120 = vmul.f32 %v109, %v103
    %v121 = vmul.f32 %v109, %v104
    %v122 = vmul.f32 %v109, %v105
    %v123 = vmul.f32 %v109, %v106
    %v124 = vmul.f32 %v109, %v107
    %v125 = vmul.f32 %v109, %v108
    %126 = vst [vmem:[#allocation14] sm:$0xff] %v110
    %127 = vst [vmem:[#allocation14 + $0x8] sm:$0xff] %v111
    %128 = vst [vmem:[#allocation14 + $0x10] sm:$0xff] %v112
    %129 = vst [vmem:[#allocation14 + $0x18] sm:$0xff] %v113
    %130 = vst [vmem:[#allocation14 + $0x20] sm:$0xff] %v114
    %131 = vst [vmem:[#allocation14 + $0x28] sm:$0xff] %v115
    %132 = vst [vmem:[#allocation14 + $0x30] sm:$0xff] %v116
    %133 = vst [vmem:[#allocation14 + $0x38] sm:$0xff] %v117
    %134 = vst [vmem:[#allocation14 + $0x40] sm:$0xff] %v118
    %135 = vst [vmem:[#allocation14 + $0x48] sm:$0xff] %v119
    %136 = vst [vmem:[#allocation14 + $0x50] sm:$0xff] %v120
    %137 = vst [vmem:[#allocation14 + $0x58] sm:$0xff] %v121
    %138 = vst [vmem:[#allocation14 + $0x60] sm:$0xff] %v122
    %139 = vst [vmem:[#allocation14 + $0x68] sm:$0xff] %v123
    %140 = vst [vmem:[#allocation14 + $0x70] sm:$0xff] %v124
    %141 = vst [vmem:[#allocation14 + $0x78] sm:$0xff] %v125
    %v142 = vld [vmem:[#allocation6] sm:$0xf]
    %v143 = vld [vmem:[#allocation6 + $0x4] sm:$0xf]
    %v144 = vld [vmem:[#allocation6 + $0x8] sm:$0xf]
    %v145 = vld [vmem:[#allocation6 + $0xc] sm:$0xf]
    %v146 = vld [vmem:[#allocation6 + $0x10] sm:$0xf]
    %v147 = vld [vmem:[#allocation6 + $0x14] sm:$0xf]
    %v148 = vld [vmem:[#allocation6 + $0x18] sm:$0xf]
    %v149 = vld [vmem:[#allocation6 + $0x1c] sm:$0xf]
    %v150 = vld [vmem:[#allocation6 + $0x20] sm:$0xf]
    %v151 = vld [vmem:[#allocation6 + $0x24] sm:$0xf]
    %v152 = vld [vmem:[#allocation6 + $0x28] sm:$0xf]
    %v153 = vld [vmem:[#allocation6 + $0x2c] sm:$0xf]
    %v154 = vld [vmem:[#allocation6 + $0x30] sm:$0xf]
    %v155 = vld [vmem:[#allocation6 + $0x34] sm:$0xf]
    %v156 = vld [vmem:[#allocation6 + $0x38] sm:$0xf]
    %v157 = vld [vmem:[#allocation6 + $0x3c] sm:$0xf]
    %v158 = vld [vmem:[#allocation9] sm:$0xf]
    %v159 = vld [vmem:[#allocation9 + $0x4] sm:$0xf]
    %v160 = vld [vmem:[#allocation9 + $0x8] sm:$0xf]
    %v161 = vld [vmem:[#allocation9 + $0xc] sm:$0xf]
    %v162 = vld [vmem:[#allocation9 + $0x10] sm:$0xf]
    %v163 = vld [vmem:[#allocation9 + $0x14] sm:$0xf]
    %v164 = vld [vmem:[#allocation9 + $0x18] sm:$0xf]
    %v165 = vld [vmem:[#allocation9 + $0x1c] sm:$0xf]
    %v166 = vld [vmem:[#allocation9 + $0x20] sm:$0xf]
    %v167 = vld [vmem:[#allocation9 + $0x24] sm:$0xf]
    %v168 = vld [vmem:[#allocation9 + $0x28] sm:$0xf]
    %v169 = vld [vmem:[#allocation9 + $0x2c] sm:$0xf]
    %v170 = vld [vmem:[#allocation9 + $0x30] sm:$0xf]
    %v171 = vld [vmem:[#allocation9 + $0x34] sm:$0xf]
    %v172 = vld [vmem:[#allocation9 + $0x38] sm:$0xf]
    %v173 = vld [vmem:[#allocation9 + $0x3c] sm:$0xf]
    %v174 = vpack.c.bf16 %v94, %v93
    %v175 = vpack.c.bf16 %v96, %v95
    %v176 = vpack.c.bf16 %v98, %v97
    %v177 = vpack.c.bf16 %v100, %v99
    %v178 = vpack.c.bf16 %v102, %v101
    %v179 = vpack.c.bf16 %v104, %v103
    %v180 = vpack.c.bf16 %v106, %v105
    %v181 = vpack.c.bf16 %v108, %v107
    %182 = vst [vmem:[#allocation2] sm:$0xff] %v174
    %183 = vst [vmem:[#allocation2 + $0x18] sm:$0xff] %v175
    %184 = vst [vmem:[#allocation2 + $0x30] sm:$0xff] %v176
    %185 = vst [vmem:[#allocation2 + $0x48] sm:$0xff] %v177
    %186 = vst [vmem:[#allocation2 + $0x60] sm:$0xff] %v178
    %187 = vst [vmem:[#allocation2 + $0x78] sm:$0xff] %v179
    %188 = vst [vmem:[#allocation2 + $0x90] sm:$0xff] %v180
    %189 = vst [vmem:[#allocation2 + $0xa8] sm:$0xff] %v181
    %v190 = vld [vmem:[#allocation12] sm:$0xff]
    %v191 = vld [vmem:[#allocation12 + $0x8] sm:$0xff]
    %v192 = vld [vmem:[#allocation12 + $0x10] sm:$0xff]
    %v193 = vld [vmem:[#allocation12 + $0x18] sm:$0xff]
    %v194 = vld [vmem:[#allocation12 + $0x20] sm:$0xff]
    %v195 = vld [vmem:[#allocation12 + $0x28] sm:$0xff]
    %v196 = vld [vmem:[#allocation12 + $0x30] sm:$0xff]
    %v197 = vld [vmem:[#allocation12 + $0x38] sm:$0xff]
    %v198 = vld [vmem:[#allocation12 + $0x40] sm:$0xff]
    %v199 = vld [vmem:[#allocation12 + $0x48] sm:$0xff]
    %v200 = vld [vmem:[#allocation12 + $0x50] sm:$0xff]
    %v201 = vld [vmem:[#allocation12 + $0x58] sm:$0xff]
    %v202 = vld [vmem:[#allocation12 + $0x60] sm:$0xff]
    %v203 = vld [vmem:[#allocation12 + $0x68] sm:$0xff]
    %v204 = vld [vmem:[#allocation12 + $0x70] sm:$0xff]
    %v205 = vld [vmem:[#allocation12 + $0x78] sm:$0xff]
    %v206 = vpack.c.bf16 %v191, %v190
    %v207 = vpack.c.bf16 %v193, %v192
    %v208 = vpack.c.bf16 %v195, %v194
    %v209 = vpack.c.bf16 %v197, %v196
    %v210 = vpack.c.bf16 %v199, %v198
    %v211 = vpack.c.bf16 %v201, %v200
    %v212 = vpack.c.bf16 %v203, %v202
    %v213 = vpack.c.bf16 %v205, %v204
    %214 = vst [vmem:[#allocation2 + $0x8] sm:$0xff] %v206
    %215 = vst [vmem:[#allocation2 + $0x20] sm:$0xff] %v207
    %216 = vst [vmem:[#allocation2 + $0x38] sm:$0xff] %v208
    %217 = vst [vmem:[#allocation2 + $0x50] sm:$0xff] %v209
    %218 = vst [vmem:[#allocation2 + $0x68] sm:$0xff] %v210
    %219 = vst [vmem:[#allocation2 + $0x80] sm:$0xff] %v211
    %220 = vst [vmem:[#allocation2 + $0x98] sm:$0xff] %v212
    %221 = vst [vmem:[#allocation2 + $0xb0] sm:$0xff] %v213
    %v222 = vld [vmem:[#allocation2 + $0x8] sm:$0xff]
    %v223 = vld [vmem:[#allocation2 + $0x20] sm:$0xff]
    %v224 = vld [vmem:[#allocation2 + $0x38] sm:$0xff]
    %v225 = vld [vmem:[#allocation2 + $0x50] sm:$0xff]
    %v226 = vld [vmem:[#allocation2 + $0x68] sm:$0xff]
    %v227 = vld [vmem:[#allocation2 + $0x80] sm:$0xff]
    %v228 = vld [vmem:[#allocation2 + $0x98] sm:$0xff]
    %v229 = vld [vmem:[#allocation2 + $0xb0] sm:$0xff]
    %v246 = vunpack.c.l.b16 %v158
    %v247 = vunpack.c.l.b16 %v159
    %v248 = vunpack.c.l.b16 %v160
    %v249 = vunpack.c.l.b16 %v161
    %v250 = vunpack.c.l.b16 %v162
    %v251 = vunpack.c.l.b16 %v163
    %v252 = vunpack.c.l.b16 %v164
    %v253 = vunpack.c.l.b16 %v165
    %v254 = vunpack.c.l.b16 %v166
    %v255 = vunpack.c.l.b16 %v167
    %v256 = vunpack.c.l.b16 %v168
    %v257 = vunpack.c.l.b16 %v169
    %v258 = vunpack.c.l.b16 %v170
    %v259 = vunpack.c.l.b16 %v171
    %v260 = vunpack.c.l.b16 %v172
    %v261 = vunpack.c.l.b16 %v173
    %v262 = vpack.c.b16 %v247, %v246
    %v263 = vpack.c.b16 %v249, %v248
    %v264 = vpack.c.b16 %v251, %v250
    %v265 = vpack.c.b16 %v253, %v252
    %v266 = vpack.c.b16 %v255, %v254
    %v267 = vpack.c.b16 %v257, %v256
    %v268 = vpack.c.b16 %v259, %v258
    %v269 = vpack.c.b16 %v261, %v260
    %278 = vmatprep.subr.bf16.mxu0 0
    %279 = vmatpush1.bf16.msra.mxu0 %v222
    %280 = vmatprep.subr.bf16.mxu0 0
    %281 = vmatpush1.bf16.msra.mxu0 %v223
    %282 = vmatprep.subr.bf16.mxu0 0
    %283 = vmatpush1.bf16.msra.mxu0 %v224
    %284 = vmatprep.subr.bf16.mxu0 0
    %285 = vmatpush1.bf16.msra.mxu0 %v225
    %286 = vmatprep.subr.bf16.mxu0 0
    %287 = vmatpush1.bf16.msra.mxu0 %v226
    %288 = vmatprep.subr.bf16.mxu0 0
    %289 = vmatpush1.bf16.msra.mxu0 %v227
    %290 = vmatprep.subr.bf16.mxu0 0
    %291 = vmatpush1.bf16.msra.mxu0 %v228
    %292 = vmatprep.subr.bf16.mxu0 0
    %293 = vmatpush1.bf16.msra.mxu0 %v229
    %294 = vmatprep.subr.bf16.mxu0 0
    %295 = vmatpush1.bf16.msra.mxu0 0
    %296 = vmatprep.subr.bf16.mxu0 0
    %297 = vmatpush1.bf16.msra.mxu0 0
    %298 = vmatprep.subr.bf16.mxu0 0
    %299 = vmatpush1.bf16.msra.mxu0 0
    %300 = vmatprep.subr.bf16.mxu0 0
    %301 = vmatpush1.bf16.msra.mxu0 0
    %302 = vmatprep.subr.bf16.mxu0 0
    %303 = vmatpush1.bf16.msra.mxu0 0
    %304 = vmatprep.subr.bf16.mxu0 0
    %305 = vmatpush1.bf16.msra.mxu0 0
    %306 = vmatprep.subr.bf16.mxu0 0
    %307 = vmatpush1.bf16.msra.mxu0 0
    %308 = vmatprep.subr.bf16.mxu0 0
    %309 = vmatpush1.bf16.msra.mxu0 0
    %310 = vmatprep.mubr.bf16.mxu0 0
    %311 = vmatmul.mubr.bf16.gmra.mrb[0].mxu0 %v262
    %v312 = vpop.f32.mrb[0].mxu0
    %v313 = vadd.f32 0.0, %v312
    %v314 = vpop.f32.mrb[0].mxu0
    %v315 = vpop.f32.mrb[0].mxu0
    %v316 = vadd.f32 0.0, %v315
    %v317 = vpop.f32.mrb[0].mxu0
    %318 = vmatprep.mubr.bf16.mxu0 0
    %319 = vmatmul.mubr.bf16.gmra.mrb[0].mxu0 %v263
    %v320 = vpop.f32.mrb[0].mxu0
    %v321 = vadd.f32 0.0, %v320
    %v322 = vpop.f32.mrb[0].mxu0
    %v323 = vpop.f32.mrb[0].mxu0
    %v324 = vadd.f32 0.0, %v323
    %v325 = vpop.f32.mrb[0].mxu0
    %326 = vmatprep.mubr.bf16.mxu0 0
    %327 = vmatmul.mubr.bf16.gmra.mrb[0].mxu0 %v264
    %v328 = vpop.f32.mrb[0].mxu0
    %v329 = vadd.f32 0.0, %v328
    %v330 = vpop.f32.mrb[0].mxu0
    %v331 = vpop.f32.mrb[0].mxu0
    %v332 = vadd.f32 0.0, %v331
    %v333 = vpop.f32.mrb[0].mxu0
    %334 = vmatprep.mubr.bf16.mxu0 0
    %335 = vmatmul.mubr.bf16.gmra.mrb[0].mxu0 %v265
    %v336 = vpop.f32.mrb[0].mxu0
    %v337 = vadd.f32 0.0, %v336
    %v338 = vpop.f32.mrb[0].mxu0
    %v339 = vpop.f32.mrb[0].mxu0
    %v340 = vadd.f32 0.0, %v339
    %v341 = vpop.f32.mrb[0].mxu0
    %342 = vmatprep.mubr.bf16.mxu0 0
    %343 = vmatmul.mubr.bf16.gmra.mrb[0].mxu0 %v266
    %v344 = vpop.f32.mrb[0].mxu0
    %v345 = vadd.f32 0.0, %v344
    %v346 = vpop.f32.mrb[0].mxu0
    %v347 = vpop.f32.mrb[0].mxu0
    %v348 = vadd.f32 0.0, %v347
    %v349 = vpop.f32.mrb[0].mxu0
    %350 = vmatprep.mubr.bf16.mxu0 0
    %351 = vmatmul.mubr.bf16.gmra.mrb[0].mxu0 %v267
    %v352 = vpop.f32.mrb[0].mxu0
    %v353 = vadd.f32 0.0, %v352
    %v354 = vpop.f32.mrb[0].mxu0
    %v355 = vpop.f32.mrb[0].mxu0
    %v356 = vadd.f32 0.0, %v355
    %v357 = vpop.f32.mrb[0].mxu0
    %358 = vmatprep.mubr.bf16.mxu0 0
    %359 = vmatmul.mubr.bf16.gmra.mrb[0].mxu0 %v268
    %v360 = vpop.f32.mrb[0].mxu0
    %v361 = vadd.f32 0.0, %v360
    %v362 = vpop.f32.mrb[0].mxu0
    %v363 = vpop.f32.mrb[0].mxu0
    %v364 = vadd.f32 0.0, %v363
    %v365 = vpop.f32.mrb[0].mxu0
    %366 = vmatprep.mubr.bf16.mxu0 0
    %367 = vmatmul.mubr.bf16.gmra.mrb[0].mxu0 %v269
    %v368 = vpop.f32.mrb[0].mxu0
    %v369 = vadd.f32 0.0, %v368
    %v370 = vpop.f32.mrb[0].mxu0
    %v371 = vpop.f32.mrb[0].mxu0
    %v372 = vadd.f32 0.0, %v371
    %v373 = vpop.f32.mrb[0].mxu0
    %374 = vdwg.mxu0
    %v375 = vstv %s90
    %v376 = vmul.f32 %v375, %v313
    %v377 = vmul.f32 %v375, %v316
    %v378 = vmul.f32 %v375, %v321
    %v379 = vmul.f32 %v375, %v324
    %v380 = vmul.f32 %v375, %v329
    %v381 = vmul.f32 %v375, %v332
    %v382 = vmul.f32 %v375, %v337
    %v383 = vmul.f32 %v375, %v340
    %v384 = vmul.f32 %v375, %v345
    %v385 = vmul.f32 %v375, %v348
    %v386 = vmul.f32 %v375, %v353
    %v387 = vmul.f32 %v375, %v356
    %v388 = vmul.f32 %v375, %v361
    %v389 = vmul.f32 %v375, %v364
    %v390 = vmul.f32 %v375, %v369
    %v391 = vmul.f32 %v375, %v372
    %v392 = vpack.c.bf16 %v316, %v313
    %v393 = vpack.c.bf16 %v324, %v321
    %v394 = vpack.c.bf16 %v332, %v329
    %v395 = vpack.c.bf16 %v340, %v337
    %v396 = vpack.c.bf16 %v348, %v345
    %v397 = vpack.c.bf16 %v356, %v353
    %v398 = vpack.c.bf16 %v364, %v361
    %v399 = vpack.c.bf16 %v372, %v369
    %400 = vst [vmem:[#allocation2 + $0x10] sm:$0xff] %v392
    %401 = vst [vmem:[#allocation2 + $0x28] sm:$0xff] %v393
    %402 = vst [vmem:[#allocation2 + $0x40] sm:$0xff] %v394
    %403 = vst [vmem:[#allocation2 + $0x58] sm:$0xff] %v395
    %404 = vst [vmem:[#allocation2 + $0x70] sm:$0xff] %v396
    %405 = vst [vmem:[#allocation2 + $0x88] sm:$0xff] %v397
    %406 = vst [vmem:[#allocation2 + $0xa0] sm:$0xff] %v398
    %407 = vst [vmem:[#allocation2 + $0xb8] sm:$0xff] %v399
    %v408 = vld [vmem:[#allocation2] sm:$0xff]
    %v409 = vld [vmem:[#allocation2 + $0x8] sm:$0xff]
    %v410 = vld [vmem:[#allocation2 + $0x10] sm:$0xff]
    %v411 = vld [vmem:[#allocation2 + $0x18] sm:$0xff]
    %v412 = vld [vmem:[#allocation2 + $0x20] sm:$0xff]
    %v413 = vld [vmem:[#allocation2 + $0x28] sm:$0xff]
    %v414 = vld [vmem:[#allocation2 + $0x30] sm:$0xff]
    %v415 = vld [vmem:[#allocation2 + $0x38] sm:$0xff]
    %v416 = vld [vmem:[#allocation2 + $0x40] sm:$0xff]
    %v417 = vld [vmem:[#allocation2 + $0x48] sm:$0xff]
    %v418 = vld [vmem:[#allocation2 + $0x50] sm:$0xff]
    %v419 = vld [vmem:[#allocation2 + $0x58] sm:$0xff]
    %v420 = vld [vmem:[#allocation2 + $0x60] sm:$0xff]
    %v421 = vld [vmem:[#allocation2 + $0x68] sm:$0xff]
    %v422 = vld [vmem:[#allocation2 + $0x70] sm:$0xff]
    %v423 = vld [vmem:[#allocation2 + $0x78] sm:$0xff]
    %v424 = vld [vmem:[#allocation2 + $0x80] sm:$0xff]
    %v425 = vld [vmem:[#allocation2 + $0x88] sm:$0xff]
    %v426 = vld [vmem:[#allocation2 + $0x90] sm:$0xff]
    %v427 = vld [vmem:[#allocation2 + $0x98] sm:$0xff]
    %v428 = vld [vmem:[#allocation2 + $0xa0] sm:$0xff]
    %v429 = vld [vmem:[#allocation2 + $0xa8] sm:$0xff]
    %v430 = vld [vmem:[#allocation2 + $0xb0] sm:$0xff]
    %v431 = vld [vmem:[#allocation2 + $0xb8] sm:$0xff]
    %v448 = vunpack.c.l.b16 %v142
    %v449 = vunpack.c.l.b16 %v143
    %v450 = vunpack.c.l.b16 %v144
    %v451 = vunpack.c.l.b16 %v145
    %v452 = vunpack.c.l.b16 %v146
    %v453 = vunpack.c.l.b16 %v147
    %v454 = vunpack.c.l.b16 %v148
    %v455 = vunpack.c.l.b16 %v149
    %v456 = vunpack.c.l.b16 %v150
    %v457 = vunpack.c.l.b16 %v151
    %v458 = vunpack.c.l.b16 %v152
    %v459 = vunpack.c.l.b16 %v153
    %v460 = vunpack.c.l.b16 %v154
    %v461 = vunpack.c.l.b16 %v155
    %v462 = vunpack.c.l.b16 %v156
    %v463 = vunpack.c.l.b16 %v157
    %v464 = vpack.c.b16 %v449, %v448
    %v465 = vpack.c.b16 %v451, %v450
    %v466 = vpack.c.b16 %v453, %v452
    %v467 = vpack.c.b16 %v455, %v454
    %v468 = vpack.c.b16 %v457, %v456
    %v469 = vpack.c.b16 %v459, %v458
    %v470 = vpack.c.b16 %v461, %v460
    %v471 = vpack.c.b16 %v463, %v462
    %480 = vmatprep.subr.bf16.mxu0 %v409
    %481 = vmatpush1.bf16.msra.mxu0 %v408
    %482 = vmatprep.subr.bf16.mxu0 %v412
    %483 = vmatpush1.bf16.msra.mxu0 %v411
    %484 = vmatprep.subr.bf16.mxu0 %v415
    %485 = vmatpush1.bf16.msra.mxu0 %v414
    %486 = vmatprep.subr.bf16.mxu0 %v418
    %487 = vmatpush1.bf16.msra.mxu0 %v417
    %488 = vmatprep.subr.bf16.mxu0 %v421
    %489 = vmatpush1.bf16.msra.mxu0 %v420
    %490 = vmatprep.subr.bf16.mxu0 %v424
    %491 = vmatpush1.bf16.msra.mxu0 %v423
    %492 = vmatprep.subr.bf16.mxu0 %v427
    %493 = vmatpush1.bf16.msra.mxu0 %v426
    %494 = vmatprep.subr.bf16.mxu0 %v430
    %495 = vmatpush1.bf16.msra.mxu0 %v429
    %496 = vmatprep.subr.bf16.mxu0 0
    %497 = vmatpush1.bf16.msra.mxu0 0
    %498 = vmatprep.subr.bf16.mxu0 0
    %499 = vmatpush1.bf16.msra.mxu0 0
    %500 = vmatprep.subr.bf16.mxu0 0
    %501 = vmatpush1.bf16.msra.mxu0 0
    %502 = vmatprep.subr.bf16.mxu0 0
    %503 = vmatpush1.bf16.msra.mxu0 0
    %504 = vmatprep.subr.bf16.mxu0 0
    %505 = vmatpush1.bf16.msra.mxu0 0
    %506 = vmatprep.subr.bf16.mxu0 0
    %507 = vmatpush1.bf16.msra.mxu0 0
    %508 = vmatprep.subr.bf16.mxu0 0
    %509 = vmatpush1.bf16.msra.mxu0 0
    %510 = vmatprep.subr.bf16.mxu0 0
    %511 = vmatpush1.bf16.msra.mxu0 0
    %512 = vmatprep.mubr.bf16.mxu0 0
    %513 = vmatmul.mubr.bf16.gmra.mrb[0].mxu0 %v464
    %v514 = vpop.f32.mrb[0].mxu0
    %v515 = vadd.f32 0.0, %v514
    %v516 = vpop.f32.mrb[0].mxu0
    %v517 = vadd.f32 0.0, %v516
    %v518 = vpop.f32.mrb[0].mxu0
    %v519 = vadd.f32 0.0, %v518
    %v520 = vpop.f32.mrb[0].mxu0
    %v521 = vadd.f32 0.0, %v520
    %522 = vmatprep.mubr.bf16.mxu0 0
    %523 = vmatmul.mubr.bf16.gmra.mrb[0].mxu0 %v465
    %v524 = vpop.f32.mrb[0].mxu0
    %v525 = vadd.f32 0.0, %v524
    %v526 = vpop.f32.mrb[0].mxu0
    %v527 = vadd.f32 0.0, %v526
    %v528 = vpop.f32.mrb[0].mxu0
    %v529 = vadd.f32 0.0, %v528
    %v530 = vpop.f32.mrb[0].mxu0
    %v531 = vadd.f32 0.0, %v530
    %532 = vmatprep.mubr.bf16.mxu0 0
    %533 = vmatmul.mubr.bf16.gmra.mrb[0].mxu0 %v466
    %v534 = vpop.f32.mrb[0].mxu0
    %v535 = vadd.f32 0.0, %v534
    %v536 = vpop.f32.mrb[0].mxu0
    %v537 = vadd.f32 0.0, %v536
    %v538 = vpop.f32.mrb[0].mxu0
    %v539 = vadd.f32 0.0, %v538
    %v540 = vpop.f32.mrb[0].mxu0
    %v541 = vadd.f32 0.0, %v540
    %542 = vmatprep.mubr.bf16.mxu0 0
    %543 = vmatmul.mubr.bf16.gmra.mrb[0].mxu0 %v467
    %v544 = vpop.f32.mrb[0].mxu0
    %v545 = vadd.f32 0.0, %v544
    %v546 = vpop.f32.mrb[0].mxu0
    %v547 = vadd.f32 0.0, %v546
    %v548 = vpop.f32.mrb[0].mxu0
    %v549 = vadd.f32 0.0, %v548
    %v550 = vpop.f32.mrb[0].mxu0
    %v551 = vadd.f32 0.0, %v550
    %552 = vmatprep.mubr.bf16.mxu0 0
    %553 = vmatmul.mubr.bf16.gmra.mrb[0].mxu0 %v468
    %v554 = vpop.f32.mrb[0].mxu0
    %v555 = vadd.f32 0.0, %v554
    %v556 = vpop.f32.mrb[0].mxu0
    %v557 = vadd.f32 0.0, %v556
    %v558 = vpop.f32.mrb[0].mxu0
    %v559 = vadd.f32 0.0, %v558
    %v560 = vpop.f32.mrb[0].mxu0
    %v561 = vadd.f32 0.0, %v560
    %562 = vmatprep.mubr.bf16.mxu0 0
    %563 = vmatmul.mubr.bf16.gmra.mrb[0].mxu0 %v469
    %v564 = vpop.f32.mrb[0].mxu0
    %v565 = vadd.f32 0.0, %v564
    %v566 = vpop.f32.mrb[0].mxu0
    %v567 = vadd.f32 0.0, %v566
    %v568 = vpop.f32.mrb[0].mxu0
    %v569 = vadd.f32 0.0, %v568
    %v570 = vpop.f32.mrb[0].mxu0
    %v571 = vadd.f32 0.0, %v570
    %572 = vmatprep.mubr.bf16.mxu0 0
    %573 = vmatmul.mubr.bf16.gmra.mrb[0].mxu0 %v470
    %v574 = vpop.f32.mrb[0].mxu0
    %v575 = vadd.f32 0.0, %v574
    %v576 = vpop.f32.mrb[0].mxu0
    %v577 = vadd.f32 0.0, %v576
    %v578 = vpop.f32.mrb[0].mxu0
    %v579 = vadd.f32 0.0, %v578
    %v580 = vpop.f32.mrb[0].mxu0
    %v581 = vadd.f32 0.0, %v580
    %582 = vmatprep.mubr.bf16.mxu0 0
    %583 = vmatmul.mubr.bf16.gmra.mrb[0].mxu0 %v471
    %v584 = vpop.f32.mrb[0].mxu0
    %v585 = vadd.f32 0.0, %v584
    %v586 = vpop.f32.mrb[0].mxu0
    %v587 = vadd.f32 0.0, %v586
    %v588 = vpop.f32.mrb[0].mxu0
    %v589 = vadd.f32 0.0, %v588
    %v590 = vpop.f32.mrb[0].mxu0
    %v591 = vadd.f32 0.0, %v590
    %592 = vdwg.mxu0
    %593 = vmatprep.subr.bf16.mxu0 0
    %594 = vmatpush1.bf16.msra.mxu0 %v410
    %595 = vmatprep.subr.bf16.mxu0 0
    %596 = vmatpush1.bf16.msra.mxu0 %v413
    %597 = vmatprep.subr.bf16.mxu0 0
    %598 = vmatpush1.bf16.msra.mxu0 %v416
    %599 = vmatprep.subr.bf16.mxu0 0
    %600 = vmatpush1.bf16.msra.mxu0 %v419
    %601 = vmatprep.subr.bf16.mxu0 0
    %602 = vmatpush1.bf16.msra.mxu0 %v422
    %603 = vmatprep.subr.bf16.mxu0 0
    %604 = vmatpush1.bf16.msra.mxu0 %v425
    %605 = vmatprep.subr.bf16.mxu0 0
    %606 = vmatpush1.bf16.msra.mxu0 %v428
    %607 = vmatprep.subr.bf16.mxu0 0
    %608 = vmatpush1.bf16.msra.mxu0 %v431
    %609 = vmatprep.subr.bf16.mxu0 0
    %610 = vmatpush1.bf16.msra.mxu0 0
    %611 = vmatprep.subr.bf16.mxu0 0
    %612 = vmatpush1.bf16.msra.mxu0 0
    %613 = vmatprep.subr.bf16.mxu0 0
    %614 = vmatpush1.bf16.msra.mxu0 0
    %615 = vmatprep.subr.bf16.mxu0 0
    %616 = vmatpush1.bf16.msra.mxu0 0
    %617 = vmatprep.subr.bf16.mxu0 0
    %618 = vmatpush1.bf16.msra.mxu0 0
    %619 = vmatprep.subr.bf16.mxu0 0
    %620 = vmatpush1.bf16.msra.mxu0 0
    %621 = vmatprep.subr.bf16.mxu0 0
    %622 = vmatpush1.bf16.msra.mxu0 0
    %623 = vmatprep.subr.bf16.mxu0 0
    %624 = vmatpush1.bf16.msra.mxu0 0
    %625 = vmatprep.mubr.bf16.mxu0 0
    %626 = vmatmul.mubr.bf16.gmra.mrb[0].mxu0 %v464
    %v627 = vpop.f32.mrb[0].mxu0
    %v628 = vadd.f32 0.0, %v627
    %v629 = vpop.f32.mrb[0].mxu0
    %v630 = vpop.f32.mrb[0].mxu0
    %v631 = vadd.f32 0.0, %v630
    %v632 = vpop.f32.mrb[0].mxu0
    %633 = vmatprep.mubr.bf16.mxu0 0
    %634 = vmatmul.mubr.bf16.gmra.mrb[0].mxu0 %v465
    %v635 = vpop.f32.mrb[0].mxu0
    %v636 = vadd.f32 0.0, %v635
    %v637 = vpop.f32.mrb[0].mxu0
    %v638 = vpop.f32.mrb[0].mxu0
    %v639 = vadd.f32 0.0, %v638
    %v640 = vpop.f32.mrb[0].mxu0
    %641 = vmatprep.mubr.bf16.mxu0 0
    %642 = vmatmul.mubr.bf16.gmra.mrb[0].mxu0 %v466
    %v643 = vpop.f32.mrb[0].mxu0
    %v644 = vadd.f32 0.0, %v643
    %v645 = vpop.f32.mrb[0].mxu0
    %v646 = vpop.f32.mrb[0].mxu0
    %v647 = vadd.f32 0.0, %v646
    %v648 = vpop.f32.mrb[0].mxu0
    %649 = vmatprep.mubr.bf16.mxu0 0
    %650 = vmatmul.mubr.bf16.gmra.mrb[0].mxu0 %v467
    %v651 = vpop.f32.mrb[0].mxu0
    %v652 = vadd.f32 0.0, %v651
    %v653 = vpop.f32.mrb[0].mxu0
    %v654 = vpop.f32.mrb[0].mxu0
    %v655 = vadd.f32 0.0, %v654
    %v656 = vpop.f32.mrb[0].mxu0
    %657 = vmatprep.mubr.bf16.mxu0 0
    %658 = vmatmul.mubr.bf16.gmra.mrb[0].mxu0 %v468
    %v659 = vpop.f32.mrb[0].mxu0
    %v660 = vadd.f32 0.0, %v659
    %v661 = vpop.f32.mrb[0].mxu0
    %v662 = vpop.f32.mrb[0].mxu0
    %v663 = vadd.f32 0.0, %v662
    %v664 = vpop.f32.mrb[0].mxu0
    %665 = vmatprep.mubr.bf16.mxu0 0
    %666 = vmatmul.mubr.bf16.gmra.mrb[0].mxu0 %v469
    %v667 = vpop.f32.mrb[0].mxu0
    %v668 = vadd.f32 0.0, %v667
    %v669 = vpop.f32.mrb[0].mxu0
    %v670 = vpop.f32.mrb[0].mxu0
    %v671 = vadd.f32 0.0, %v670
    %v672 = vpop.f32.mrb[0].mxu0
    %673 = vmatprep.mubr.bf16.mxu0 0
    %674 = vmatmul.mubr.bf16.gmra.mrb[0].mxu0 %v470
    %v675 = vpop.f32.mrb[0].mxu0
    %v676 = vadd.f32 0.0, %v675
    %v677 = vpop.f32.mrb[0].mxu0
    %v678 = vpop.f32.mrb[0].mxu0
    %v679 = vadd.f32 0.0, %v678
    %v680 = vpop.f32.mrb[0].mxu0
    %681 = vmatprep.mubr.bf16.mxu0 0
    %682 = vmatmul.mubr.bf16.gmra.mrb[0].mxu0 %v471
    %v683 = vpop.f32.mrb[0].mxu0
    %v684 = vadd.f32 0.0, %v683
    %v685 = vpop.f32.mrb[0].mxu0
    %v686 = vpop.f32.mrb[0].mxu0
    %v687 = vadd.f32 0.0, %v686
    %v688 = vpop.f32.mrb[0].mxu0
    %689 = vdwg.mxu0
    %v690 = vpack.c.bf16 %v519, %v515
    %v691 = vpack.c.bf16 %v521, %v517
    %v692 = vpack.c.bf16 %v631, %v628
    %v693 = vpack.c.bf16 %v529, %v525
    %v694 = vpack.c.bf16 %v531, %v527
    %v695 = vpack.c.bf16 %v639, %v636
    %v696 = vpack.c.bf16 %v539, %v535
    %v697 = vpack.c.bf16 %v541, %v537
    %v698 = vpack.c.bf16 %v647, %v644
    %v699 = vpack.c.bf16 %v549, %v545
    %v700 = vpack.c.bf16 %v551, %v547
    %v701 = vpack.c.bf16 %v655, %v652
    %v702 = vpack.c.bf16 %v559, %v555
    %v703 = vpack.c.bf16 %v561, %v557
    %v704 = vpack.c.bf16 %v663, %v660
    %v705 = vpack.c.bf16 %v569, %v565
    %v706 = vpack.c.bf16 %v571, %v567
    %v707 = vpack.c.bf16 %v671, %v668
    %v708 = vpack.c.bf16 %v579, %v575
    %v709 = vpack.c.bf16 %v581, %v577
    %v710 = vpack.c.bf16 %v679, %v676
    %v711 = vpack.c.bf16 %v589, %v585
    %v712 = vpack.c.bf16 %v591, %v587
    %v713 = vpack.c.bf16 %v687, %v684
    %714 = vst [vmem:[#allocation2] sm:$0xff] %v690
    %715 = vst [vmem:[#allocation2 + $0x8] sm:$0xff] %v691
    %716 = vst [vmem:[#allocation2 + $0x10] sm:$0xff] %v692
    %717 = vst [vmem:[#allocation2 + $0x18] sm:$0xff] %v693
    %718 = vst [vmem:[#allocation2 + $0x20] sm:$0xff] %v694
    %719 = vst [vmem:[#allocation2 + $0x28] sm:$0xff] %v695
    %720 = vst [vmem:[#allocation2 + $0x30] sm:$0xff] %v696
    %721 = vst [vmem:[#allocation2 + $0x38] sm:$0xff] %v697
    %722 = vst [vmem:[#allocation2 + $0x40] sm:$0xff] %v698
    %723 = vst [vmem:[#allocation2 + $0x48] sm:$0xff] %v699
    %724 = vst [vmem:[#allocation2 + $0x50] sm:$0xff] %v700
    %725 = vst [vmem:[#allocation2 + $0x58] sm:$0xff] %v701
    %726 = vst [vmem:[#allocation2 + $0x60] sm:$0xff] %v702
    %727 = vst [vmem:[#allocation2 + $0x68] sm:$0xff] %v703
    %728 = vst [vmem:[#allocation2 + $0x70] sm:$0xff] %v704
    %729 = vst [vmem:[#allocation2 + $0x78] sm:$0xff] %v705
    %730 = vst [vmem:[#allocation2 + $0x80] sm:$0xff] %v706
    %731 = vst [vmem:[#allocation2 + $0x88] sm:$0xff] %v707
    %732 = vst [vmem:[#allocation2 + $0x90] sm:$0xff] %v708
    %733 = vst [vmem:[#allocation2 + $0x98] sm:$0xff] %v709
    %734 = vst [vmem:[#allocation2 + $0xa0] sm:$0xff] %v710
    %735 = vst [vmem:[#allocation2 + $0xa8] sm:$0xff] %v711
    %736 = vst [vmem:[#allocation2 + $0xb0] sm:$0xff] %v712
    %737 = vst [vmem:[#allocation2 + $0xb8] sm:$0xff] %v713
    %v738 = vld [vmem:[#allocation14] sm:$0xff]
    %v739 = vld [vmem:[#allocation14 + $0x8] sm:$0xff]
    %v740 = vld [vmem:[#allocation14 + $0x10] sm:$0xff]
    %v741 = vld [vmem:[#allocation14 + $0x18] sm:$0xff]
    %v742 = vld [vmem:[#allocation14 + $0x20] sm:$0xff]
    %v743 = vld [vmem:[#allocation14 + $0x28] sm:$0xff]
    %v744 = vld [vmem:[#allocation14 + $0x30] sm:$0xff]
    %v745 = vld [vmem:[#allocation14 + $0x38] sm:$0xff]
    %v746 = vld [vmem:[#allocation14 + $0x40] sm:$0xff]
    %v747 = vld [vmem:[#allocation14 + $0x48] sm:$0xff]
    %v748 = vld [vmem:[#allocation14 + $0x50] sm:$0xff]
    %v749 = vld [vmem:[#allocation14 + $0x58] sm:$0xff]
    %v750 = vld [vmem:[#allocation14 + $0x60] sm:$0xff]
    %v751 = vld [vmem:[#allocation14 + $0x68] sm:$0xff]
    %v752 = vld [vmem:[#allocation14 + $0x70] sm:$0xff]
    %v753 = vld [vmem:[#allocation14 + $0x78] sm:$0xff]
    %v754 = vstv %s88
    %v755 = vmul.f32 %v754, %v515
    %v756 = vmul.f32 %v754, %v519
    %v757 = vmul.f32 %v754, %v525
    %v758 = vmul.f32 %v754, %v529
    %v759 = vmul.f32 %v754, %v535
    %v760 = vmul.f32 %v754, %v539
    %v761 = vmul.f32 %v754, %v545
    %v762 = vmul.f32 %v754, %v549
    %v763 = vmul.f32 %v754, %v555
    %v764 = vmul.f32 %v754, %v559
    %v765 = vmul.f32 %v754, %v565
    %v766 = vmul.f32 %v754, %v569
    %v767 = vmul.f32 %v754, %v575
    %v768 = vmul.f32 %v754, %v579
    %v769 = vmul.f32 %v754, %v585
    %v770 = vmul.f32 %v754, %v589
    %v771 = vadd.f32 %v738, %v755
    %v772 = vadd.f32 %v739, %v756
    %v773 = vadd.f32 %v740, %v757
    %v774 = vadd.f32 %v741, %v758
    %v775 = vadd.f32 %v742, %v759
    %v776 = vadd.f32 %v743, %v760
    %v777 = vadd.f32 %v744, %v761
    %v778 = vadd.f32 %v745, %v762
    %v779 = vadd.f32 %v746, %v763
    %v780 = vadd.f32 %v747, %v764
    %v781 = vadd.f32 %v748, %v765
    %v782 = vadd.f32 %v749, %v766
    %v783 = vadd.f32 %v750, %v767
    %v784 = vadd.f32 %v751, %v768
    %v785 = vadd.f32 %v752, %v769
    %v786 = vadd.f32 %v753, %v770
    %787 = vst [vmem:[#allocation14] sm:$0xff] %v771
    %788 = vst [vmem:[#allocation14 + $0x8] sm:$0xff] %v772
    %789 = vst [vmem:[#allocation14 + $0x10] sm:$0xff] %v773
    %790 = vst [vmem:[#allocation14 + $0x18] sm:$0xff] %v774
    %791 = vst [vmem:[#allocation14 + $0x20] sm:$0xff] %v775
    %792 = vst [vmem:[#allocation14 + $0x28] sm:$0xff] %v776
    %793 = vst [vmem:[#allocation14 + $0x30] sm:$0xff] %v777
    %794 = vst [vmem:[#allocation14 + $0x38] sm:$0xff] %v778
    %795 = vst [vmem:[#allocation14 + $0x40] sm:$0xff] %v779
    %796 = vst [vmem:[#allocation14 + $0x48] sm:$0xff] %v780
    %797 = vst [vmem:[#allocation14 + $0x50] sm:$0xff] %v781
    %798 = vst [vmem:[#allocation14 + $0x58] sm:$0xff] %v782
    %799 = vst [vmem:[#allocation14 + $0x60] sm:$0xff] %v783
    %800 = vst [vmem:[#allocation14 + $0x68] sm:$0xff] %v784
    %801 = vst [vmem:[#allocation14 + $0x70] sm:$0xff] %v785
    %802 = vst [vmem:[#allocation14 + $0x78] sm:$0xff] %v786
    %v803 = vstv %s91
    %v804 = vmul.f32 %v803, %v628
    %v805 = vmul.f32 %v803, %v631
    %v806 = vmul.f32 %v803, %v636
    %v807 = vmul.f32 %v803, %v639
    %v808 = vmul.f32 %v803, %v644
    %v809 = vmul.f32 %v803, %v647
    %v810 = vmul.f32 %v803, %v652
    %v811 = vmul.f32 %v803, %v655
    %v812 = vmul.f32 %v803, %v660
    %v813 = vmul.f32 %v803, %v663
    %v814 = vmul.f32 %v803, %v668
    %v815 = vmul.f32 %v803, %v671
    %v816 = vmul.f32 %v803, %v676
    %v817 = vmul.f32 %v803, %v679
    %v818 = vmul.f32 %v803, %v684
    %v819 = vmul.f32 %v803, %v687
    %v820 = vadd.f32 %v376, %v804
    %v821 = vadd.f32 %v377, %v805
    %v822 = vadd.f32 %v378, %v806
    %v823 = vadd.f32 %v379, %v807
    %v824 = vadd.f32 %v380, %v808
    %v825 = vadd.f32 %v381, %v809
    %v826 = vadd.f32 %v382, %v810
    %v827 = vadd.f32 %v383, %v811
    %v828 = vadd.f32 %v384, %v812
    %v829 = vadd.f32 %v385, %v813
    %v830 = vadd.f32 %v386, %v814
    %v831 = vadd.f32 %v387, %v815
    %v832 = vadd.f32 %v388, %v816
    %v833 = vadd.f32 %v389, %v817
    %v834 = vadd.f32 %v390, %v818
    %v835 = vadd.f32 %v391, %v819
    %836 = vst [vmem:[#allocation15] sm:$0xff] %v820
    %837 = vst [vmem:[#allocation15 + $0x8] sm:$0xff] %v821
    %838 = vst [vmem:[#allocation15 + $0x10] sm:$0xff] %v822
    %839 = vst [vmem:[#allocation15 + $0x18] sm:$0xff] %v823
    %840 = vst [vmem:[#allocation15 + $0x20] sm:$0xff] %v824
    %841 = vst [vmem:[#allocation15 + $0x28] sm:$0xff] %v825
    %842 = vst [vmem:[#allocation15 + $0x30] sm:$0xff] %v826
    %843 = vst [vmem:[#allocation15 + $0x38] sm:$0xff] %v827
    %844 = vst [vmem:[#allocation15 + $0x40] sm:$0xff] %v828
    %845 = vst [vmem:[#allocation15 + $0x48] sm:$0xff] %v829
    %846 = vst [vmem:[#allocation15 + $0x50] sm:$0xff] %v830
    %847 = vst [vmem:[#allocation15 + $0x58] sm:$0xff] %v831
    %848 = vst [vmem:[#allocation15 + $0x60] sm:$0xff] %v832
    %849 = vst [vmem:[#allocation15 + $0x68] sm:$0xff] %v833
    %850 = vst [vmem:[#allocation15 + $0x70] sm:$0xff] %v834
    %851 = vst [vmem:[#allocation15 + $0x78] sm:$0xff] %v835
    %v852 = vld [vmem:[#allocation2 + $0x8] sm:$0xff]
    %v853 = vld [vmem:[#allocation2 + $0x20] sm:$0xff]
    %v854 = vld [vmem:[#allocation2 + $0x38] sm:$0xff]
    %v855 = vld [vmem:[#allocation2 + $0x50] sm:$0xff]
    %v856 = vld [vmem:[#allocation2 + $0x68] sm:$0xff]
    %v857 = vld [vmem:[#allocation2 + $0x80] sm:$0xff]
    %v858 = vld [vmem:[#allocation2 + $0x98] sm:$0xff]
    %v859 = vld [vmem:[#allocation2 + $0xb0] sm:$0xff]
    %860 = vmatprep.subr.bf16.mxu0 0
    %861 = vmatpush1.bf16.msra.mxu0 %v852
    %862 = vmatprep.subr.bf16.mxu0 0
    %863 = vmatpush1.bf16.msra.mxu0 %v853
    %864 = vmatprep.subr.bf16.mxu0 0
    %865 = vmatpush1.bf16.msra.mxu0 %v854
    %866 = vmatprep.subr.bf16.mxu0 0
    %867 = vmatpush1.bf16.msra.mxu0 %v855
    %868 = vmatprep.subr.bf16.mxu0 0
    %869 = vmatpush1.bf16.msra.mxu0 %v856
    %870 = vmatprep.subr.bf16.mxu0 0
    %871 = vmatpush1.bf16.msra.mxu0 %v857
    %872 = vmatprep.subr.bf16.mxu0 0
    %873 = vmatpush1.bf16.msra.mxu0 %v858
    %874 = vmatprep.subr.bf16.mxu0 0
    %875 = vmatpush1.bf16.msra.mxu0 %v859
    %876 = vmatprep.subr.bf16.mxu0 0
    %877 = vmatpush1.bf16.msra.mxu0 0
    %878 = vmatprep.subr.bf16.mxu0 0
    %879 = vmatpush1.bf16.msra.mxu0 0
    %880 = vmatprep.subr.bf16.mxu0 0
    %881 = vmatpush1.bf16.msra.mxu0 0
    %882 = vmatprep.subr.bf16.mxu0 0
    %883 = vmatpush1.bf16.msra.mxu0 0
    %884 = vmatprep.subr.bf16.mxu0 0
    %885 = vmatpush1.bf16.msra.mxu0 0
    %886 = vmatprep.subr.bf16.mxu0 0
    %887 = vmatpush1.bf16.msra.mxu0 0
    %888 = vmatprep.subr.bf16.mxu0 0
    %889 = vmatpush1.bf16.msra.mxu0 0
    %890 = vmatprep.subr.bf16.mxu0 0
    %891 = vmatpush1.bf16.msra.mxu0 0
    %892 = vmatprep.mubr.bf16.mxu0 0
    %893 = vmatmul.mubr.bf16.gmra.mrb[0].mxu0 %v262
    %v894 = vpop.f32.mrb[0].mxu0
    %v895 = vadd.f32 0.0, %v894
    %v896 = vpop.f32.mrb[0].mxu0
    %v897 = vpop.f32.mrb[0].mxu0
    %v898 = vadd.f32 0.0, %v897
    %v899 = vpop.f32.mrb[0].mxu0
    %900 = vmatprep.mubr.bf16.mxu0 0
    %901 = vmatmul.mubr.bf16.gmra.mrb[0].mxu0 %v263
    %v902 = vpop.f32.mrb[0].mxu0
    %v903 = vadd.f32 0.0, %v902
    %v904 = vpop.f32.mrb[0].mxu0
    %v905 = vpop.f32.mrb[0].mxu0
    %v906 = vadd.f32 0.0, %v905
    %v907 = vpop.f32.mrb[0].mxu0
    %908 = vmatprep.mubr.bf16.mxu0 0
    %909 = vmatmul.mubr.bf16.gmra.mrb[0].mxu0 %v264
    %v910 = vpop.f32.mrb[0].mxu0
    %v911 = vadd.f32 0.0, %v910
    %v912 = vpop.f32.mrb[0].mxu0
    %v913 = vpop.f32.mrb[0].mxu0
    %v914 = vadd.f32 0.0, %v913
    %v915 = vpop.f32.mrb[0].mxu0
    %916 = vmatprep.mubr.bf16.mxu0 0
    %917 = vmatmul.mubr.bf16.gmra.mrb[0].mxu0 %v265
    %v918 = vpop.f32.mrb[0].mxu0
    %v919 = vadd.f32 0.0, %v918
    %v920 = vpop.f32.mrb[0].mxu0
    %v921 = vpop.f32.mrb[0].mxu0
    %v922 = vadd.f32 0.0, %v921
    %v923 = vpop.f32.mrb[0].mxu0
    %924 = vmatprep.mubr.bf16.mxu0 0
    %925 = vmatmul.mubr.bf16.gmra.mrb[0].mxu0 %v266
    %v926 = vpop.f32.mrb[0].mxu0
    %v927 = vadd.f32 0.0, %v926
    %v928 = vpop.f32.mrb[0].mxu0
    %v929 = vpop.f32.mrb[0].mxu0
    %v930 = vadd.f32 0.0, %v929
    %v931 = vpop.f32.mrb[0].mxu0
    %932 = vmatprep.mubr.bf16.mxu0 0
    %933 = vmatmul.mubr.bf16.gmra.mrb[0].mxu0 %v267
    %v934 = vpop.f32.mrb[0].mxu0
    %v935 = vadd.f32 0.0, %v934
    %v936 = vpop.f32.mrb[0].mxu0
    %v937 = vpop.f32.mrb[0].mxu0
    %v938 = vadd.f32 0.0, %v937
    %v939 = vpop.f32.mrb[0].mxu0
    %940 = vmatprep.mubr.bf16.mxu0 0
    %941 = vmatmul.mubr.bf16.gmra.mrb[0].mxu0 %v268
    %v942 = vpop.f32.mrb[0].mxu0
    %v943 = vadd.f32 0.0, %v942
    %v944 = vpop.f32.mrb[0].mxu0
    %v945 = vpop.f32.mrb[0].mxu0
    %v946 = vadd.f32 0.0, %v945
    %v947 = vpop.f32.mrb[0].mxu0
    %948 = vmatprep.mubr.bf16.mxu0 0
    %949 = vmatmul.mubr.bf16.gmra.mrb[0].mxu0 %v269
    %v950 = vpop.f32.mrb[0].mxu0
    %v951 = vadd.f32 0.0, %v950
    %v952 = vpop.f32.mrb[0].mxu0
    %v953 = vpop.f32.mrb[0].mxu0
    %v954 = vadd.f32 0.0, %v953
    %v955 = vpop.f32.mrb[0].mxu0
    %956 = vdwg.mxu0
    %v957 = vstv %s92
    %v958 = vmul.f32 %v957, %v895
    %v959 = vmul.f32 %v957, %v898
    %v960 = vmul.f32 %v957, %v903
    %v961 = vmul.f32 %v957, %v906
    %v962 = vmul.f32 %v957, %v911
    %v963 = vmul.f32 %v957, %v914
    %v964 = vmul.f32 %v957, %v919
    %v965 = vmul.f32 %v957, %v922
    %v966 = vmul.f32 %v957, %v927
    %v967 = vmul.f32 %v957, %v930
    %v968 = vmul.f32 %v957, %v935
    %v969 = vmul.f32 %v957, %v938
    %v970 = vmul.f32 %v957, %v943
    %v971 = vmul.f32 %v957, %v946
    %v972 = vmul.f32 %v957, %v951
    %v973 = vmul.f32 %v957, %v954
    %v974 = vld [vmem:[#allocation2] sm:$0xff]
    %v975 = vld [vmem:[#allocation2 + $0x18] sm:$0xff]
    %v976 = vld [vmem:[#allocation2 + $0x30] sm:$0xff]
    %v977 = vld [vmem:[#allocation2 + $0x48] sm:$0xff]
    %v978 = vld [vmem:[#allocation2 + $0x60] sm:$0xff]
    %v979 = vld [vmem:[#allocation2 + $0x78] sm:$0xff]
    %v980 = vld [vmem:[#allocation2 + $0x90] sm:$0xff]
    %v981 = vld [vmem:[#allocation2 + $0xa8] sm:$0xff]
    %982 = vmatprep.subr.bf16.mxu0 0
    %983 = vmatpush1.bf16.msra.mxu0 %v974
    %984 = vmatprep.subr.bf16.mxu0 0
    %985 = vmatpush1.bf16.msra.mxu0 %v975
    %986 = vmatprep.subr.bf16.mxu0 0
    %987 = vmatpush1.bf16.msra.mxu0 %v976
    %988 = vmatprep.subr.bf16.mxu0 0
    %989 = vmatpush1.bf16.msra.mxu0 %v977
    %990 = vmatprep.subr.bf16.mxu0 0
    %991 = vmatpush1.bf16.msra.mxu0 %v978
    %992 = vmatprep.subr.bf16.mxu0 0
    %993 = vmatpush1.bf16.msra.mxu0 %v979
    %994 = vmatprep.subr.bf16.mxu0 0
    %995 = vmatpush1.bf16.msra.mxu0 %v980
    %996 = vmatprep.subr.bf16.mxu0 0
    %997 = vmatpush1.bf16.msra.mxu0 %v981
    %998 = vmatprep.subr.bf16.mxu0 0
    %999 = vmatpush1.bf16.msra.mxu0 0
    %1000 = vmatprep.subr.bf16.mxu0 0
    %1001 = vmatpush1.bf16.msra.mxu0 0
    %1002 = vmatprep.subr.bf16.mxu0 0
    %1003 = vmatpush1.bf16.msra.mxu0 0
    %1004 = vmatprep.subr.bf16.mxu0 0
    %1005 = vmatpush1.bf16.msra.mxu0 0
    %1006 = vmatprep.subr.bf16.mxu0 0
    %1007 = vmatpush1.bf16.msra.mxu0 0
    %1008 = vmatprep.subr.bf16.mxu0 0
    %1009 = vmatpush1.bf16.msra.mxu0 0
    %1010 = vmatprep.subr.bf16.mxu0 0
    %1011 = vmatpush1.bf16.msra.mxu0 0
    %1012 = vmatprep.subr.bf16.mxu0 0
    %1013 = vmatpush1.bf16.msra.mxu0 0
    %1014 = vmatprep.mubr.bf16.mxu0 0
    %1015 = vmatmul.mubr.bf16.gmra.mrb[0].mxu0 %v464
    %v1016 = vpop.f32.mrb[0].mxu0
    %v1017 = vadd.f32 0.0, %v1016
    %v1018 = vpop.f32.mrb[0].mxu0
    %v1019 = vpop.f32.mrb[0].mxu0
    %v1020 = vadd.f32 0.0, %v1019
    %v1021 = vpop.f32.mrb[0].mxu0
    %1022 = vmatprep.mubr.bf16.mxu0 0
    %1023 = vmatmul.mubr.bf16.gmra.mrb[0].mxu0 %v465
    %v1024 = vpop.f32.mrb[0].mxu0
    %v1025 = vadd.f32 0.0, %v1024
    %v1026 = vpop.f32.mrb[0].mxu0
    %v1027 = vpop.f32.mrb[0].mxu0
    %v1028 = vadd.f32 0.0, %v1027
    %v1029 = vpop.f32.mrb[0].mxu0
    %1030 = vmatprep.mubr.bf16.mxu0 0
    %1031 = vmatmul.mubr.bf16.gmra.mrb[0].mxu0 %v466
    %v1032 = vpop.f32.mrb[0].mxu0
    %v1033 = vadd.f32 0.0, %v1032
    %v1034 = vpop.f32.mrb[0].mxu0
    %v1035 = vpop.f32.mrb[0].mxu0
    %v1036 = vadd.f32 0.0, %v1035
    %v1037 = vpop.f32.mrb[0].mxu0
    %1038 = vmatprep.mubr.bf16.mxu0 0
    %1039 = vmatmul.mubr.bf16.gmra.mrb[0].mxu0 %v467
    %v1040 = vpop.f32.mrb[0].mxu0
    %v1041 = vadd.f32 0.0, %v1040
    %v1042 = vpop.f32.mrb[0].mxu0
    %v1043 = vpop.f32.mrb[0].mxu0
    %v1044 = vadd.f32 0.0, %v1043
    %v1045 = vpop.f32.mrb[0].mxu0
    %1046 = vmatprep.mubr.bf16.mxu0 0
    %1047 = vmatmul.mubr.bf16.gmra.mrb[0].mxu0 %v468
    %v1048 = vpop.f32.mrb[0].mxu0
    %v1049 = vadd.f32 0.0, %v1048
    %v1050 = vpop.f32.mrb[0].mxu0
    %v1051 = vpop.f32.mrb[0].mxu0
    %v1052 = vadd.f32 0.0, %v1051
    %v1053 = vpop.f32.mrb[0].mxu0
    %1054 = vmatprep.mubr.bf16.mxu0 0
    %1055 = vmatmul.mubr.bf16.gmra.mrb[0].mxu0 %v469
    %v1056 = vpop.f32.mrb[0].mxu0
    %v1057 = vadd.f32 0.0, %v1056
    %v1058 = vpop.f32.mrb[0].mxu0
    %v1059 = vpop.f32.mrb[0].mxu0
    %v1060 = vadd.f32 0.0, %v1059
    %v1061 = vpop.f32.mrb[0].mxu0
    %1062 = vmatprep.mubr.bf16.mxu0 0
    %1063 = vmatmul.mubr.bf16.gmra.mrb[0].mxu0 %v470
    %v1064 = vpop.f32.mrb[0].mxu0
    %v1065 = vadd.f32 0.0, %v1064
    %v1066 = vpop.f32.mrb[0].mxu0
    %v1067 = vpop.f32.mrb[0].mxu0
    %v1068 = vadd.f32 0.0, %v1067
    %v1069 = vpop.f32.mrb[0].mxu0
    %1070 = vmatprep.mubr.bf16.mxu0 0
    %1071 = vmatmul.mubr.bf16.gmra.mrb[0].mxu0 %v471
    %v1072 = vpop.f32.mrb[0].mxu0
    %v1073 = vadd.f32 0.0, %v1072
    %v1074 = vpop.f32.mrb[0].mxu0
    %v1075 = vpop.f32.mrb[0].mxu0
    %v1076 = vadd.f32 0.0, %v1075
    %v1077 = vpop.f32.mrb[0].mxu0
    %1078 = vdwg.mxu0
    %v1079 = vld [vmem:[#allocation14] sm:$0xff]
    %v1080 = vld [vmem:[#allocation14 + $0x8] sm:$0xff]
    %v1081 = vld [vmem:[#allocation14 + $0x10] sm:$0xff]
    %v1082 = vld [vmem:[#allocation14 + $0x18] sm:$0xff]
    %v1083 = vld [vmem:[#allocation14 + $0x20] sm:$0xff]
    %v1084 = vld [vmem:[#allocation14 + $0x28] sm:$0xff]
    %v1085 = vld [vmem:[#allocation14 + $0x30] sm:$0xff]
    %v1086 = vld [vmem:[#allocation14 + $0x38] sm:$0xff]
    %v1087 = vld [vmem:[#allocation14 + $0x40] sm:$0xff]
    %v1088 = vld [vmem:[#allocation14 + $0x48] sm:$0xff]
    %v1089 = vld [vmem:[#allocation14 + $0x50] sm:$0xff]
    %v1090 = vld [vmem:[#allocation14 + $0x58] sm:$0xff]
    %v1091 = vld [vmem:[#allocation14 + $0x60] sm:$0xff]
    %v1092 = vld [vmem:[#allocation14 + $0x68] sm:$0xff]
    %v1093 = vld [vmem:[#allocation14 + $0x70] sm:$0xff]
    %v1094 = vld [vmem:[#allocation14 + $0x78] sm:$0xff]
    %v1095 = vstv %s89
    %v1096 = vmul.f32 %v1095, %v1017
    %v1097 = vmul.f32 %v1095, %v1020
    %v1098 = vmul.f32 %v1095, %v1025
    %v1099 = vmul.f32 %v1095, %v1028
    %v1100 = vmul.f32 %v1095, %v1033
    %v1101 = vmul.f32 %v1095, %v1036
    %v1102 = vmul.f32 %v1095, %v1041
    %v1103 = vmul.f32 %v1095, %v1044
    %v1104 = vmul.f32 %v1095, %v1049
    %v1105 = vmul.f32 %v1095, %v1052
    %v1106 = vmul.f32 %v1095, %v1057
    %v1107 = vmul.f32 %v1095, %v1060
    %v1108 = vmul.f32 %v1095, %v1065
    %v1109 = vmul.f32 %v1095, %v1068
    %v1110 = vmul.f32 %v1095, %v1073
    %v1111 = vmul.f32 %v1095, %v1076
    %v1112 = vadd.f32 %v1079, %v1096
    %v1113 = vadd.f32 %v1080, %v1097
    %v1114 = vadd.f32 %v1081, %v1098
    %v1115 = vadd.f32 %v1082, %v1099
    %v1116 = vadd.f32 %v1083, %v1100
    %v1117 = vadd.f32 %v1084, %v1101
    %v1118 = vadd.f32 %v1085, %v1102
    %v1119 = vadd.f32 %v1086, %v1103
    %v1120 = vadd.f32 %v1087, %v1104
    %v1121 = vadd.f32 %v1088, %v1105
    %v1122 = vadd.f32 %v1089, %v1106
    %v1123 = vadd.f32 %v1090, %v1107
    %v1124 = vadd.f32 %v1091, %v1108
    %v1125 = vadd.f32 %v1092, %v1109
    %v1126 = vadd.f32 %v1093, %v1110
    %v1127 = vadd.f32 %v1094, %v1111
    %1128 = vst [vmem:[#allocation14] sm:$0xff] %v1112
    %1129 = vst [vmem:[#allocation14 + $0x8] sm:$0xff] %v1113
    %1130 = vst [vmem:[#allocation14 + $0x10] sm:$0xff] %v1114
    %1131 = vst [vmem:[#allocation14 + $0x18] sm:$0xff] %v1115
    %1132 = vst [vmem:[#allocation14 + $0x20] sm:$0xff] %v1116
    %1133 = vst [vmem:[#allocation14 + $0x28] sm:$0xff] %v1117
    %1134 = vst [vmem:[#allocation14 + $0x30] sm:$0xff] %v1118
    %1135 = vst [vmem:[#allocation14 + $0x38] sm:$0xff] %v1119
    %1136 = vst [vmem:[#allocation14 + $0x40] sm:$0xff] %v1120
    %1137 = vst [vmem:[#allocation14 + $0x48] sm:$0xff] %v1121
    %1138 = vst [vmem:[#allocation14 + $0x50] sm:$0xff] %v1122
    %1139 = vst [vmem:[#allocation14 + $0x58] sm:$0xff] %v1123
    %1140 = vst [vmem:[#allocation14 + $0x60] sm:$0xff] %v1124
    %1141 = vst [vmem:[#allocation14 + $0x68] sm:$0xff] %v1125
    %1142 = vst [vmem:[#allocation14 + $0x70] sm:$0xff] %v1126
    %1143 = vst [vmem:[#allocation14 + $0x78] sm:$0xff] %v1127
    %v1144 = vld [vmem:[#allocation15] sm:$0xff]
    %v1145 = vld [vmem:[#allocation15 + $0x8] sm:$0xff]
    %v1146 = vld [vmem:[#allocation15 + $0x10] sm:$0xff]
    %v1147 = vld [vmem:[#allocation15 + $0x18] sm:$0xff]
    %v1148 = vld [vmem:[#allocation15 + $0x20] sm:$0xff]
    %v1149 = vld [vmem:[#allocation15 + $0x28] sm:$0xff]
    %v1150 = vld [vmem:[#allocation15 + $0x30] sm:$0xff]
    %v1151 = vld [vmem:[#allocation15 + $0x38] sm:$0xff]
    %v1152 = vld [vmem:[#allocation15 + $0x40] sm:$0xff]
    %v1153 = vld [vmem:[#allocation15 + $0x48] sm:$0xff]
    %v1154 = vld [vmem:[#allocation15 + $0x50] sm:$0xff]
    %v1155 = vld [vmem:[#allocation15 + $0x58] sm:$0xff]
    %v1156 = vld [vmem:[#allocation15 + $0x60] sm:$0xff]
    %v1157 = vld [vmem:[#allocation15 + $0x68] sm:$0xff]
    %v1158 = vld [vmem:[#allocation15 + $0x70] sm:$0xff]
    %v1159 = vld [vmem:[#allocation15 + $0x78] sm:$0xff]
    %v1160 = vadd.f32 %v1144, %v958
    %v1161 = vadd.f32 %v1145, %v959
    %v1162 = vadd.f32 %v1146, %v960
    %v1163 = vadd.f32 %v1147, %v961
    %v1164 = vadd.f32 %v1148, %v962
    %v1165 = vadd.f32 %v1149, %v963
    %v1166 = vadd.f32 %v1150, %v964
    %v1167 = vadd.f32 %v1151, %v965
    %v1168 = vadd.f32 %v1152, %v966
    %v1169 = vadd.f32 %v1153, %v967
    %v1170 = vadd.f32 %v1154, %v968
    %v1171 = vadd.f32 %v1155, %v969
    %v1172 = vadd.f32 %v1156, %v970
    %v1173 = vadd.f32 %v1157, %v971
    %v1174 = vadd.f32 %v1158, %v972
    %v1175 = vadd.f32 %v1159, %v973
    %1176 = vst [vmem:[#allocation15] sm:$0xff] %v1160
    %1177 = vst [vmem:[#allocation15 + $0x8] sm:$0xff] %v1161
    %1178 = vst [vmem:[#allocation15 + $0x10] sm:$0xff] %v1162
    %1179 = vst [vmem:[#allocation15 + $0x18] sm:$0xff] %v1163
    %1180 = vst [vmem:[#allocation15 + $0x20] sm:$0xff] %v1164
    %1181 = vst [vmem:[#allocation15 + $0x28] sm:$0xff] %v1165
    %1182 = vst [vmem:[#allocation15 + $0x30] sm:$0xff] %v1166
    %1183 = vst [vmem:[#allocation15 + $0x38] sm:$0xff] %v1167
    %1184 = vst [vmem:[#allocation15 + $0x40] sm:$0xff] %v1168
    %1185 = vst [vmem:[#allocation15 + $0x48] sm:$0xff] %v1169
    %1186 = vst [vmem:[#allocation15 + $0x50] sm:$0xff] %v1170
    %1187 = vst [vmem:[#allocation15 + $0x58] sm:$0xff] %v1171
    %1188 = vst [vmem:[#allocation15 + $0x60] sm:$0xff] %v1172
    %1189 = vst [vmem:[#allocation15 + $0x68] sm:$0xff] %v1173
    %1190 = vst [vmem:[#allocation15 + $0x70] sm:$0xff] %v1174
    %1191 = vst [vmem:[#allocation15 + $0x78] sm:$0xff] %v1175
    // Predicated region
    $region34: #{tpu_custom_call.1} parent=1 // pred_check
      _
    $region35: #{tpu_custom_call.1} parent=1 // pred_check_branch
      %1193 = sbr.rel (0) target = $region37
    $region36: #{tpu_custom_call.1} parent=1 // pred_region
      %s1195 = ssub.s32 2048, 2048
      %1196 = vsyncadd [#allocation8], %s1195
      %s1197 = sshll.u32 [#allocation14], 4
      %s1198 = int_to_ptr.vmem [resolvable:$true] %s1197
      %1203 = dma.vmem_to_hbm [thread:$0]  %s1198, 2048, %s6, [#allocation8], 128, 128, 8
    $region37: #{tpu_custom_call.1} parent=1 // pred_fallthru
      _
    // Predicated region
    $region38: #{tpu_custom_call.1} parent=1 // pred_check
      _
    $region39: #{tpu_custom_call.1} parent=1 // pred_check_branch
      %1205 = sbr.rel (0) target = $region41
    $region40: #{tpu_custom_call.1} parent=1 // pred_region
      %s1207 = ssub.s32 2048, 2048
      %1208 = vsyncadd [#allocation16], %s1207
      %s1209 = sshll.u32 [#allocation15], 4
      %s1210 = int_to_ptr.vmem [resolvable:$true] %s1209
      %1215 = dma.vmem_to_hbm [thread:$0]  %s1210, 2048, %s7, [#allocation16], 128, 128, 8
    $region41: #{tpu_custom_call.1} parent=1 // pred_fallthru
      _
    // Predicated region
    $region42: #{tpu_custom_call.1} parent=1 // pred_check
      _
    $region43: #{tpu_custom_call.1} parent=1 // pred_check_branch
      %1217 = sbr.rel (0) target = $region45
    $region44: #{tpu_custom_call.1} parent=1 // pred_region
      %1218 = dma.done [#allocation8], 2048
    $region45: #{tpu_custom_call.1} parent=1 // pred_fallthru
      _
    // Predicated region
    $region46: #{tpu_custom_call.1} parent=1 // pred_check
      _
    $region47: #{tpu_custom_call.1} parent=1 // pred_check_branch
      %1220 = sbr.rel (0) target = $region49
    $region48: #{tpu_custom_call.1} parent=1 // pred_region
      %1221 = dma.done [#allocation16], 2048
    $region49: #{tpu_custom_call.1} parent=1 // pred_fallthru
      _
    %1222 = vsyncpa [#allocation7], 1
    %1223 = vsyncpa [#allocation10], 1
    %1224 = vsyncpa [#allocation13], 1
    %1225 = vsyncpa [#allocation8], 1
    %1226 = vsyncpa [#allocation16], 1

// kernel: tpu_custom_call.1
$region0: #{tpu_custom_call.1}
  #allocation0 [shape = 'u32[]', space=smem, size = 0x4, offset = 0x4, fixed_abs, tag = 'smem constant byte address 0x4 - core index']
  #allocation1 [shape = 'u32[144,128]{1,0:T(1,128)}', space=vmem, size = 0x12000, scoped, tag = 'internal scratch']
  #allocation2 [shape = 'bf16[128,384]{1,0:T(16,128)(2,1)}', space=vmem, size = 0x18000, scoped, tag = 'scratch operand']
  #allocation3 [shape = 's32[1]{0}', space=sflag, size = 0x4, scoped, tag = 'scoped memory for tpu_custom_call.1']
  #allocation4 [shape = 'u8[512]{0}', space=smem, size = 0x200, scoped, tag = 'prefetched SMEM operand 0']
  #allocation5 [shape = 'u8[512]{0}', space=smem, size = 0x200, scoped, tag = 'prefetched SMEM operand 1']
  %s0 = inlined_call_operand.hbm [shape: f32[3], index: 0, kind: input, shape index: {}]
  %s1 = inlined_call_operand.vmem [shape: f32[3], index: 1, kind: input, shape index: {}]
  %s2 = inlined_call_operand.hbm [shape: bf16[128,128], index: 2, kind: input, shape index: {}]
  %s3 = inlined_call_operand.hbm [shape: bf16[128,128], index: 3, kind: input, shape index: {}]
  %s4 = inlined_call_operand.hbm [shape: f32[128,128], index: 4, kind: input, shape index: {}]
  %s5 = inlined_call_operand.hbm [shape: f32[128,128], index: 5, kind: input, shape index: {}]
  %s6 = inlined_call_operand.hbm [shape: f32[128,128], index: 6, kind: output, shape index: {0}]
  %s7 = inlined_call_operand.hbm [shape: f32[128,128], index: 7, kind: output, shape index: {1}]
  %8 = xla_tuple %s6, %s7
  %s9 = sld [smem:[#allocation0]]
  $region50: #{tpu_custom_call.1} parent=0
    _
  %s11 = ssub.s32 1, %s9
  %s12 = scalar_select 0, %s11, %s9
  %14 = dma.hbm_to_smem %s0, 16, [#allocation4], [#allocation3]
  %s15 = sshll.u32 %s1, 4
  %s16 = int_to_ptr.vmem [resolvable:$true] %s15
  %18 = dma.vmem_to_smem %s16, 16, [#allocation5], [#allocation3]
  %19 = dma.done [#allocation3], 32
  %20 = sfence
  $region1: #{tpu_custom_call.1} parent=0
    #allocation6 [shape = 'u8[32768]{0}', space=vmem, size = 0x8000, scoped, tag = 'input window, operand 2, single buffered']
    #allocation7 [shape = 's32[1]{0}', space=sflag, size = 0x4, scoped, tag = 'scoped memory for tpu_custom_call.1']
    #allocation8 [shape = 's32[1]{0}', space=sflag, size = 0x4, scoped, tag = 'scoped memory for tpu_custom_call.1']
    #allocation9 [shape = 'u8[32768]{0}', space=vmem, size = 0x8000, scoped, tag = 'input window, operand 3, single buffered']
    #allocation10 [shape = 's32[1]{0}', space=sflag, size = 0x4, scoped, tag = 'scoped memory for tpu_custom_call.1']
    #allocation11 [shape = 'u8[65536]{0}', space=vmem, size = 0x10000, scoped, tag = 'input window, operand 4, single buffered']
    #allocation12 [shape = 'u8[65536]{0}', space=vmem, size = 0x10000, scoped, tag = 'input window, operand 5, single buffered']
    #allocation13 [shape = 's32[1]{0}', space=sflag, size = 0x4, scoped, tag = 'scoped memory for tpu_custom_call.1']
    #allocation14 [shape = 'u8[65536]{0}', space=vmem, size = 0x10000, scoped, tag = 'output window, operand 0, single buffered']
    #allocation15 [shape = 'u8[65536]{0}', space=vmem, size = 0x10000, scoped, tag = 'output window, operand 1, single buffered']
    #allocation16 [shape = 's32[1]{0}', space=sflag, size = 0x4, scoped, tag = 'scoped memory for tpu_custom_call.1']
    %21 = vsyncpa [#allocation7], 0
    %22 = vsyncpa [#allocation10], 0
    %23 = vsyncpa [#allocation13], 0
    %24 = vsyncpa [#allocation8], 0
    %25 = vsyncpa [#allocation16], 0
    // Predicated region
    $region2: #{tpu_custom_call.1} parent=1 // pred_check
      _
    $region3: #{tpu_custom_call.1} parent=1 // pred_check_branch
      %27 = sbr.rel (0) target = $region5
    $region4: #{tpu_custom_call.1} parent=1 // pred_region
      %s29 = ssub.s32 1024, 1024
      %30 = vsyncadd [#allocation7], %s29
      %s31 = sshll.u32 [#allocation6], 4
      %s32 = int_to_ptr.vmem [resolvable:$true] %s31
      %37 = dma.hbm_to_vmem [thread:$0]  %s2, 1024, %s32, [#allocation7], 64, 64, 4
    $region5: #{tpu_custom_call.1} parent=1 // pred_fallthru
      _
    // Predicated region
    $region6: #{tpu_custom_call.1} parent=1 // pred_check
      _
    $region7: #{tpu_custom_call.1} parent=1 // pred_check_branch
      %39 = sbr.rel (0) target = $region9
    $region8: #{tpu_custom_call.1} parent=1 // pred_region
      %s41 = ssub.s32 1024, 1024
      %42 = vsyncadd [#allocation10], %s41
      %s43 = sshll.u32 [#allocation9], 4
      %s44 = int_to_ptr.vmem [resolvable:$true] %s43
      %49 = dma.hbm_to_vmem [thread:$0]  %s3, 1024, %s44, [#allocation10], 64, 64, 4
    $region9: #{tpu_custom_call.1} parent=1 // pred_fallthru
      _
    // Predicated region
    $region10: #{tpu_custom_call.1} parent=1 // pred_check
      _
    $region11: #{tpu_custom_call.1} parent=1 // pred_check_branch
      %51 = sbr.rel (0) target = $region13
    $region12: #{tpu_custom_call.1} parent=1 // pred_region
      %s53 = ssub.s32 2048, 2048
      %54 = vsyncadd [#allocation10], %s53
      %s55 = sshll.u32 [#allocation11], 4
      %s56 = int_to_ptr.vmem [resolvable:$true] %s55
      %61 = dma.hbm_to_vmem [thread:$0]  %s4, 2048, %s56, [#allocation10], 128, 128, 8
    $region13: #{tpu_custom_call.1} parent=1 // pred_fallthru
      _
    // Predicated region
    $region14: #{tpu_custom_call.1} parent=1 // pred_check
      _
    $region15: #{tpu_custom_call.1} parent=1 // pred_check_branch
      %63 = sbr.rel (0) target = $region17
    $region16: #{tpu_custom_call.1} parent=1 // pred_region
      %s65 = ssub.s32 2048, 2048
      %66 = vsyncadd [#allocation13], %s65
      %s67 = sshll.u32 [#allocation12], 4
      %s68 = int_to_ptr.vmem [resolvable:$true] %s67
      %73 = dma.hbm_to_vmem [thread:$0]  %s5, 2048, %s68, [#allocation13], 128, 128, 8
    $region17: #{tpu_custom_call.1} parent=1 // pred_fallthru
      _
    // Predicated region
    $region18: #{tpu_custom_call.1} parent=1 // pred_check
      _
    $region19: #{tpu_custom_call.1} parent=1 // pred_check_branch
      %75 = sbr.rel (0) target = $region21
    $region20: #{tpu_custom_call.1} parent=1 // pred_region
      %76 = dma.done [#allocation7], 1024
    $region21: #{tpu_custom_call.1} parent=1 // pred_fallthru
      _
    // Predicated region
    $region22: #{tpu_custom_call.1} parent=1 // pred_check
      _
    $region23: #{tpu_custom_call.1} parent=1 // pred_check_branch
      %78 = sbr.rel (0) target = $region25
    $region24: #{tpu_custom_call.1} parent=1 // pred_region
      %79 = dma.done [#allocation10], 1024
    $region25: #{tpu_custom_call.1} parent=1 // pred_fallthru
      _
    // Predicated region
    $region26: #{tpu_custom_call.1} parent=1 // pred_check
      _
    $region27: #{tpu_custom_call.1} parent=1 // pred_check_branch
      %81 = sbr.rel (0) target = $region29
    $region28: #{tpu_custom_call.1} parent=1 // pred_region
      %82 = dma.done [#allocation10], 2048
    $region29: #{tpu_custom_call.1} parent=1 // pred_fallthru
      _
    // Predicated region
    $region30: #{tpu_custom_call.1} parent=1 // pred_check
      _
    $region31: #{tpu_custom_call.1} parent=1 // pred_check_branch
      %84 = sbr.rel (0) target = $region33
    $region32: #{tpu_custom_call.1} parent=1 // pred_region
      %85 = dma.done [#allocation13], 2048
    $region33: #{tpu_custom_call.1} parent=1 // pred_fallthru
      _
    %s87 = sld [smem:[#allocation4]]
    %s88 = sld [smem:[#allocation4 + $0x1]]
    %s89 = sld [smem:[#allocation4 + $0x2]]
    %s90 = sld [smem:[#allocation5]]
    %s91 = sld [smem:[#allocation5 + $0x1]]
    %s92 = sld [smem:[#allocation5 + $0x2]]
    %v93 = vld [vmem:[#allocation11] sm:$0xff]
    %v94 = vld [vmem:[#allocation11 + $0x8] sm:$0xff]
    %v95 = vld [vmem:[#allocation11 + $0x10] sm:$0xff]
    %v96 = vld [vmem:[#allocation11 + $0x18] sm:$0xff]
    %v97 = vld [vmem:[#allocation11 + $0x20] sm:$0xff]
    %v98 = vld [vmem:[#allocation11 + $0x28] sm:$0xff]
    %v99 = vld [vmem:[#allocation11 + $0x30] sm:$0xff]
    %v100 = vld [vmem:[#allocation11 + $0x38] sm:$0xff]
    %v101 = vld [vmem:[#allocation11 + $0x40] sm:$0xff]
    %v102 = vld [vmem:[#allocation11 + $0x48] sm:$0xff]
    %v103 = vld [vmem:[#allocation11 + $0x50] sm:$0xff]
    %v104 = vld [vmem:[#allocation11 + $0x58] sm:$0xff]
    %v105 = vld [vmem:[#allocation11 + $0x60] sm:$0xff]
    %v106 = vld [vmem:[#allocation11 + $0x68] sm:$0xff]
    %v107 = vld [vmem:[#allocation11 + $0x70] sm:$0xff]
    %v108 = vld [vmem:[#allocation11 + $0x78] sm:$0xff]
    %v109 = vstv %s87
    %v110 = vmul.f32 %v109, %v93
    %v111 = vmul.f32 %v109, %v94
    %v112 = vmul.f32 %v109, %v95
    %v113 = vmul.f32 %v109, %v96
    %v114 = vmul.f32 %v109, %v97
    %v115 = vmul.f32 %v109, %v98
    %v116 = vmul.f32 %v109, %v99
    %v117 = vmul.f32 %v109, %v100
    %v118 = vmul.f32 %v109, %v101
    %v119 = vmul.f32 %v109, %v102
    %v120 = vmul.f32 %v109, %v103
    %v121 = vmul.f32 %v109, %v104
    %v122 = vmul.f32 %v109, %v105
    %v123 = vmul.f32 %v109, %v106
    %v124 = vmul.f32 %v109, %v107
    %v125 = vmul.f32 %v109, %v108
    %126 = vst [vmem:[#allocation14] sm:$0xff] %v110
    %127 = vst [vmem:[#allocation14 + $0x8] sm:$0xff] %v111
    %128 = vst [vmem:[#allocation14 + $0x10] sm:$0xff] %v112
    %129 = vst [vmem:[#allocation14 + $0x18] sm:$0xff] %v113
    %130 = vst [vmem:[#allocation14 + $0x20] sm:$0xff] %v114
    %131 = vst [vmem:[#allocation14 + $0x28] sm:$0xff] %v115
    %132 = vst [vmem:[#allocation14 + $0x30] sm:$0xff] %v116
    %133 = vst [vmem:[#allocation14 + $0x38] sm:$0xff] %v117
    %134 = vst [vmem:[#allocation14 + $0x40] sm:$0xff] %v118
    %135 = vst [vmem:[#allocation14 + $0x48] sm:$0xff] %v119
    %136 = vst [vmem:[#allocation14 + $0x50] sm:$0xff] %v120
    %137 = vst [vmem:[#allocation14 + $0x58] sm:$0xff] %v121
    %138 = vst [vmem:[#allocation14 + $0x60] sm:$0xff] %v122
    %139 = vst [vmem:[#allocation14 + $0x68] sm:$0xff] %v123
    %140 = vst [vmem:[#allocation14 + $0x70] sm:$0xff] %v124
    %141 = vst [vmem:[#allocation14 + $0x78] sm:$0xff] %v125
    %v142 = vld [vmem:[#allocation6] sm:$0xf]
    %v143 = vld [vmem:[#allocation6 + $0x4] sm:$0xf]
    %v144 = vld [vmem:[#allocation6 + $0x8] sm:$0xf]
    %v145 = vld [vmem:[#allocation6 + $0xc] sm:$0xf]
    %v146 = vld [vmem:[#allocation6 + $0x10] sm:$0xf]
    %v147 = vld [vmem:[#allocation6 + $0x14] sm:$0xf]
    %v148 = vld [vmem:[#allocation6 + $0x18] sm:$0xf]
    %v149 = vld [vmem:[#allocation6 + $0x1c] sm:$0xf]
    %v150 = vld [vmem:[#allocation6 + $0x20] sm:$0xf]
    %v151 = vld [vmem:[#allocation6 + $0x24] sm:$0xf]
    %v152 = vld [vmem:[#allocation6 + $0x28] sm:$0xf]
    %v153 = vld [vmem:[#allocation6 + $0x2c] sm:$0xf]
    %v154 = vld [vmem:[#allocation6 + $0x30] sm:$0xf]
    %v155 = vld [vmem:[#allocation6 + $0x34] sm:$0xf]
    %v156 = vld [vmem:[#allocation6 + $0x38] sm:$0xf]
    %v157 = vld [vmem:[#allocation6 + $0x3c] sm:$0xf]
    %v158 = vld [vmem:[#allocation9] sm:$0xf]
    %v159 = vld [vmem:[#allocation9 + $0x4] sm:$0xf]
    %v160 = vld [vmem:[#allocation9 + $0x8] sm:$0xf]
    %v161 = vld [vmem:[#allocation9 + $0xc] sm:$0xf]
    %v162 = vld [vmem:[#allocation9 + $0x10] sm:$0xf]
    %v163 = vld [vmem:[#allocation9 + $0x14] sm:$0xf]
    %v164 = vld [vmem:[#allocation9 + $0x18] sm:$0xf]
    %v165 = vld [vmem:[#allocation9 + $0x1c] sm:$0xf]
    %v166 = vld [vmem:[#allocation9 + $0x20] sm:$0xf]
    %v167 = vld [vmem:[#allocation9 + $0x24] sm:$0xf]
    %v168 = vld [vmem:[#allocation9 + $0x28] sm:$0xf]
    %v169 = vld [vmem:[#allocation9 + $0x2c] sm:$0xf]
    %v170 = vld [vmem:[#allocation9 + $0x30] sm:$0xf]
    %v171 = vld [vmem:[#allocation9 + $0x34] sm:$0xf]
    %v172 = vld [vmem:[#allocation9 + $0x38] sm:$0xf]
    %v173 = vld [vmem:[#allocation9 + $0x3c] sm:$0xf]
    %v174 = vpack.c.bf16 %v94, %v93
    %v175 = vpack.c.bf16 %v96, %v95
    %v176 = vpack.c.bf16 %v98, %v97
    %v177 = vpack.c.bf16 %v100, %v99
    %v178 = vpack.c.bf16 %v102, %v101
    %v179 = vpack.c.bf16 %v104, %v103
    %v180 = vpack.c.bf16 %v106, %v105
    %v181 = vpack.c.bf16 %v108, %v107
    %182 = vst [vmem:[#allocation2] sm:$0xff] %v174
    %183 = vst [vmem:[#allocation2 + $0x18] sm:$0xff] %v175
    %184 = vst [vmem:[#allocation2 + $0x30] sm:$0xff] %v176
    %185 = vst [vmem:[#allocation2 + $0x48] sm:$0xff] %v177
    %186 = vst [vmem:[#allocation2 + $0x60] sm:$0xff] %v178
    %187 = vst [vmem:[#allocation2 + $0x78] sm:$0xff] %v179
    %188 = vst [vmem:[#allocation2 + $0x90] sm:$0xff] %v180
    %189 = vst [vmem:[#allocation2 + $0xa8] sm:$0xff] %v181
    %v190 = vld [vmem:[#allocation12] sm:$0xff]
    %v191 = vld [vmem:[#allocation12 + $0x8] sm:$0xff]
    %v192 = vld [vmem:[#allocation12 + $0x10] sm:$0xff]
    %v193 = vld [vmem:[#allocation12 + $0x18] sm:$0xff]
    %v194 = vld [vmem:[#allocation12 + $0x20] sm:$0xff]
    %v195 = vld [vmem:[#allocation12 + $0x28] sm:$0xff]
    %v196 = vld [vmem:[#allocation12 + $0x30] sm:$0xff]
    %v197 = vld [vmem:[#allocation12 + $0x38] sm:$0xff]
    %v198 = vld [vmem:[#allocation12 + $0x40] sm:$0xff]
    %v199 = vld [vmem:[#allocation12 + $0x48] sm:$0xff]
    %v200 = vld [vmem:[#allocation12 + $0x50] sm:$0xff]
    %v201 = vld [vmem:[#allocation12 + $0x58] sm:$0xff]
    %v202 = vld [vmem:[#allocation12 + $0x60] sm:$0xff]
    %v203 = vld [vmem:[#allocation12 + $0x68] sm:$0xff]
    %v204 = vld [vmem:[#allocation12 + $0x70] sm:$0xff]
    %v205 = vld [vmem:[#allocation12 + $0x78] sm:$0xff]
    %v206 = vpack.c.bf16 %v191, %v190
    %v207 = vpack.c.bf16 %v193, %v192
    %v208 = vpack.c.bf16 %v195, %v194
    %v209 = vpack.c.bf16 %v197, %v196
    %v210 = vpack.c.bf16 %v199, %v198
    %v211 = vpack.c.bf16 %v201, %v200
    %v212 = vpack.c.bf16 %v203, %v202
    %v213 = vpack.c.bf16 %v205, %v204
    %214 = vst [vmem:[#allocation2 + $0x8] sm:$0xff] %v206
    %215 = vst [vmem:[#allocation2 + $0x20] sm:$0xff] %v207
    %216 = vst [vmem:[#allocation2 + $0x38] sm:$0xff] %v208
    %217 = vst [vmem:[#allocation2 + $0x50] sm:$0xff] %v209
    %218 = vst [vmem:[#allocation2 + $0x68] sm:$0xff] %v210
    %219 = vst [vmem:[#allocation2 + $0x80] sm:$0xff] %v211
    %220 = vst [vmem:[#allocation2 + $0x98] sm:$0xff] %v212
    %221 = vst [vmem:[#allocation2 + $0xb0] sm:$0xff] %v213
    %v222 = vld [vmem:[#allocation2 + $0x8] sm:$0xff]
    %v223 = vld [vmem:[#allocation2 + $0x20] sm:$0xff]
    %v224 = vld [vmem:[#allocation2 + $0x38] sm:$0xff]
    %v225 = vld [vmem:[#allocation2 + $0x50] sm:$0xff]
    %v226 = vld [vmem:[#allocation2 + $0x68] sm:$0xff]
    %v227 = vld [vmem:[#allocation2 + $0x80] sm:$0xff]
    %v228 = vld [vmem:[#allocation2 + $0x98] sm:$0xff]
    %v229 = vld [vmem:[#allocation2 + $0xb0] sm:$0xff]
    %v246 = vunpack.c.l.b16 %v158
    %v247 = vunpack.c.l.b16 %v159
    %v248 = vunpack.c.l.b16 %v160
    %v249 = vunpack.c.l.b16 %v161
    %v250 = vunpack.c.l.b16 %v162
    %v251 = vunpack.c.l.b16 %v163
    %v252 = vunpack.c.l.b16 %v164
    %v253 = vunpack.c.l.b16 %v165
    %v254 = vunpack.c.l.b16 %v166
    %v255 = vunpack.c.l.b16 %v167
    %v256 = vunpack.c.l.b16 %v168
    %v257 = vunpack.c.l.b16 %v169
    %v258 = vunpack.c.l.b16 %v170
    %v259 = vunpack.c.l.b16 %v171
    %v260 = vunpack.c.l.b16 %v172
    %v261 = vunpack.c.l.b16 %v173
    %v262 = vpack.c.b16 %v247, %v246
    %v263 = vpack.c.b16 %v249, %v248
    %v264 = vpack.c.b16 %v251, %v250
    %v265 = vpack.c.b16 %v253, %v252
    %v266 = vpack.c.b16 %v255, %v254
    %v267 = vpack.c.b16 %v257, %v256
    %v268 = vpack.c.b16 %v259, %v258
    %v269 = vpack.c.b16 %v261, %v260
    %278 = vmatprep.subr.bf16.mxu0 0
    %279 = vmatpush1.bf16.msra.mxu0 %v222
    %280 = vmatprep.subr.bf16.mxu0 0
    %281 = vmatpush1.bf16.msra.mxu0 %v223
    %282 = vmatprep.subr.bf16.mxu0 0
    %283 = vmatpush1.bf16.msra.mxu0 %v224
    %284 = vmatprep.subr.bf16.mxu0 0
    %285 = vmatpush1.bf16.msra.mxu0 %v225
    %286 = vmatprep.subr.bf16.mxu0 0
    %287 = vmatpush1.bf16.msra.mxu0 %v226
    %288 = vmatprep.subr.bf16.mxu0 0
    %289 = vmatpush1.bf16.msra.mxu0 %v227
    %290 = vmatprep.subr.bf16.mxu0 0
    %291 = vmatpush1.bf16.msra.mxu0 %v228
    %292 = vmatprep.subr.bf16.mxu0 0
    %293 = vmatpush1.bf16.msra.mxu0 %v229
    %294 = vmatprep.subr.bf16.mxu0 0
    %295 = vmatpush1.bf16.msra.mxu0 0
    %296 = vmatprep.subr.bf16.mxu0 0
    %297 = vmatpush1.bf16.msra.mxu0 0
    %298 = vmatprep.subr.bf16.mxu0 0
    %299 = vmatpush1.bf16.msra.mxu0 0
    %300 = vmatprep.subr.bf16.mxu0 0
    %301 = vmatpush1.bf16.msra.mxu0 0
    %302 = vmatprep.subr.bf16.mxu0 0
    %303 = vmatpush1.bf16.msra.mxu0 0
    %304 = vmatprep.subr.bf16.mxu0 0
    %305 = vmatpush1.bf16.msra.mxu0 0
    %306 = vmatprep.subr.bf16.mxu0 0
    %307 = vmatpush1.bf16.msra.mxu0 0
    %308 = vmatprep.subr.bf16.mxu0 0
    %309 = vmatpush1.bf16.msra.mxu0 0
    %310 = vmatprep.mubr.bf16.mxu0 0
    %311 = vmatmul.mubr.bf16.gmra.mrb[0].mxu0 %v262
    %v312 = vpop.f32.mrb[0].mxu0
    %v313 = vadd.f32 0.0, %v312
    %v314 = vpop.f32.mrb[0].mxu0
    %v315 = vpop.f32.mrb[0].mxu0
    %v316 = vadd.f32 0.0, %v315
    %v317 = vpop.f32.mrb[0].mxu0
    %318 = vmatprep.mubr.bf16.mxu0 0
    %319 = vmatmul.mubr.bf16.gmra.mrb[0].mxu0 %v263
    %v320 = vpop.f32.mrb[0].mxu0
    %v321 = vadd.f32 0.0, %v320
    %v322 = vpop.f32.mrb[0].mxu0
    %v323 = vpop.f32.mrb[0].mxu0
    %v324 = vadd.f32 0.0, %v323
    %v325 = vpop.f32.mrb[0].mxu0
    %326 = vmatprep.mubr.bf16.mxu0 0
    %327 = vmatmul.mubr.bf16.gmra.mrb[0].mxu0 %v264
    %v328 = vpop.f32.mrb[0].mxu0
    %v329 = vadd.f32 0.0, %v328
    %v330 = vpop.f32.mrb[0].mxu0
    %v331 = vpop.f32.mrb[0].mxu0
    %v332 = vadd.f32 0.0, %v331
    %v333 = vpop.f32.mrb[0].mxu0
    %334 = vmatprep.mubr.bf16.mxu0 0
    %335 = vmatmul.mubr.bf16.gmra.mrb[0].mxu0 %v265
    %v336 = vpop.f32.mrb[0].mxu0
    %v337 = vadd.f32 0.0, %v336
    %v338 = vpop.f32.mrb[0].mxu0
    %v339 = vpop.f32.mrb[0].mxu0
    %v340 = vadd.f32 0.0, %v339
    %v341 = vpop.f32.mrb[0].mxu0
    %342 = vmatprep.mubr.bf16.mxu0 0
    %343 = vmatmul.mubr.bf16.gmra.mrb[0].mxu0 %v266
    %v344 = vpop.f32.mrb[0].mxu0
    %v345 = vadd.f32 0.0, %v344
    %v346 = vpop.f32.mrb[0].mxu0
    %v347 = vpop.f32.mrb[0].mxu0
    %v348 = vadd.f32 0.0, %v347
    %v349 = vpop.f32.mrb[0].mxu0
    %350 = vmatprep.mubr.bf16.mxu0 0
    %351 = vmatmul.mubr.bf16.gmra.mrb[0].mxu0 %v267
    %v352 = vpop.f32.mrb[0].mxu0
    %v353 = vadd.f32 0.0, %v352
    %v354 = vpop.f32.mrb[0].mxu0
    %v355 = vpop.f32.mrb[0].mxu0
    %v356 = vadd.f32 0.0, %v355
    %v357 = vpop.f32.mrb[0].mxu0
    %358 = vmatprep.mubr.bf16.mxu0 0
    %359 = vmatmul.mubr.bf16.gmra.mrb[0].mxu0 %v268
    %v360 = vpop.f32.mrb[0].mxu0
    %v361 = vadd.f32 0.0, %v360
    %v362 = vpop.f32.mrb[0].mxu0
    %v363 = vpop.f32.mrb[0].mxu0
    %v364 = vadd.f32 0.0, %v363
    %v365 = vpop.f32.mrb[0].mxu0
    %366 = vmatprep.mubr.bf16.mxu0 0
    %367 = vmatmul.mubr.bf16.gmra.mrb[0].mxu0 %v269
    %v368 = vpop.f32.mrb[0].mxu0
    %v369 = vadd.f32 0.0, %v368
    %v370 = vpop.f32.mrb[0].mxu0
    %v371 = vpop.f32.mrb[0].mxu0
    %v372 = vadd.f32 0.0, %v371
    %v373 = vpop.f32.mrb[0].mxu0
    %374 = vdwg.mxu0
    %v375 = vstv %s90
    %v376 = vmul.f32 %v375, %v313
    %v377 = vmul.f32 %v375, %v316
    %v378 = vmul.f32 %v375, %v321
    %v379 = vmul.f32 %v375, %v324
    %v380 = vmul.f32 %v375, %v329
    %v381 = vmul.f32 %v375, %v332
    %v382 = vmul.f32 %v375, %v337
    %v383 = vmul.f32 %v375, %v340
    %v384 = vmul.f32 %v375, %v345
    %v385 = vmul.f32 %v375, %v348
    %v386 = vmul.f32 %v375, %v353
    %v387 = vmul.f32 %v375, %v356
    %v388 = vmul.f32 %v375, %v361
    %v389 = vmul.f32 %v375, %v364
    %v390 = vmul.f32 %v375, %v369
    %v391 = vmul.f32 %v375, %v372
    %v392 = vpack.c.bf16 %v316, %v313
    %v393 = vpack.c.bf16 %v324, %v321
    %v394 = vpack.c.bf16 %v332, %v329
    %v395 = vpack.c.bf16 %v340, %v337
    %v396 = vpack.c.bf16 %v348, %v345
    %v397 = vpack.c.bf16 %v356, %v353
    %v398 = vpack.c.bf16 %v364, %v361
    %v399 = vpack.c.bf16 %v372, %v369
    %400 = vst [vmem:[#allocation2 + $0x10] sm:$0xff] %v392
    %401 = vst [vmem:[#allocation2 + $0x28] sm:$0xff] %v393
    %402 = vst [vmem:[#allocation2 + $0x40] sm:$0xff] %v394
    %403 = vst [vmem:[#allocation2 + $0x58] sm:$0xff] %v395
    %404 = vst [vmem:[#allocation2 + $0x70] sm:$0xff] %v396
    %405 = vst [vmem:[#allocation2 + $0x88] sm:$0xff] %v397
    %406 = vst [vmem:[#allocation2 + $0xa0] sm:$0xff] %v398
    %407 = vst [vmem:[#allocation2 + $0xb8] sm:$0xff] %v399
    %v408 = vld [vmem:[#allocation2] sm:$0xff]
    %v409 = vld [vmem:[#allocation2 + $0x8] sm:$0xff]
    %v410 = vld [vmem:[#allocation2 + $0x10] sm:$0xff]
    %v411 = vld [vmem:[#allocation2 + $0x18] sm:$0xff]
    %v412 = vld [vmem:[#allocation2 + $0x20] sm:$0xff]
    %v413 = vld [vmem:[#allocation2 + $0x28] sm:$0xff]
    %v414 = vld [vmem:[#allocation2 + $0x30] sm:$0xff]
    %v415 = vld [vmem:[#allocation2 + $0x38] sm:$0xff]
    %v416 = vld [vmem:[#allocation2 + $0x40] sm:$0xff]
    %v417 = vld [vmem:[#allocation2 + $0x48] sm:$0xff]
    %v418 = vld [vmem:[#allocation2 + $0x50] sm:$0xff]
    %v419 = vld [vmem:[#allocation2 + $0x58] sm:$0xff]
    %v420 = vld [vmem:[#allocation2 + $0x60] sm:$0xff]
    %v421 = vld [vmem:[#allocation2 + $0x68] sm:$0xff]
    %v422 = vld [vmem:[#allocation2 + $0x70] sm:$0xff]
    %v423 = vld [vmem:[#allocation2 + $0x78] sm:$0xff]
    %v424 = vld [vmem:[#allocation2 + $0x80] sm:$0xff]
    %v425 = vld [vmem:[#allocation2 + $0x88] sm:$0xff]
    %v426 = vld [vmem:[#allocation2 + $0x90] sm:$0xff]
    %v427 = vld [vmem:[#allocation2 + $0x98] sm:$0xff]
    %v428 = vld [vmem:[#allocation2 + $0xa0] sm:$0xff]
    %v429 = vld [vmem:[#allocation2 + $0xa8] sm:$0xff]
    %v430 = vld [vmem:[#allocation2 + $0xb0] sm:$0xff]
    %v431 = vld [vmem:[#allocation2 + $0xb8] sm:$0xff]
    %v448 = vunpack.c.l.b16 %v142
    %v449 = vunpack.c.l.b16 %v143
    %v450 = vunpack.c.l.b16 %v144
    %v451 = vunpack.c.l.b16 %v145
    %v452 = vunpack.c.l.b16 %v146
    %v453 = vunpack.c.l.b16 %v147
    %v454 = vunpack.c.l.b16 %v148
    %v455 = vunpack.c.l.b16 %v149
    %v456 = vunpack.c.l.b16 %v150
    %v457 = vunpack.c.l.b16 %v151
    %v458 = vunpack.c.l.b16 %v152
    %v459 = vunpack.c.l.b16 %v153
    %v460 = vunpack.c.l.b16 %v154
    %v461 = vunpack.c.l.b16 %v155
    %v462 = vunpack.c.l.b16 %v156
    %v463 = vunpack.c.l.b16 %v157
    %v464 = vpack.c.b16 %v449, %v448
    %v465 = vpack.c.b16 %v451, %v450
    %v466 = vpack.c.b16 %v453, %v452
    %v467 = vpack.c.b16 %v455, %v454
    %v468 = vpack.c.b16 %v457, %v456
    %v469 = vpack.c.b16 %v459, %v458
    %v470 = vpack.c.b16 %v461, %v460
    %v471 = vpack.c.b16 %v463, %v462
    %480 = vmatprep.subr.bf16.mxu0 %v409
    %481 = vmatpush1.bf16.msra.mxu0 %v408
    %482 = vmatprep.subr.bf16.mxu0 %v412
    %483 = vmatpush1.bf16.msra.mxu0 %v411
    %484 = vmatprep.subr.bf16.mxu0 %v415
    %485 = vmatpush1.bf16.msra.mxu0 %v414
    %486 = vmatprep.subr.bf16.mxu0 %v418
    %487 = vmatpush1.bf16.msra.mxu0 %v417
    %488 = vmatprep.subr.bf16.mxu0 %v421
    %489 = vmatpush1.bf16.msra.mxu0 %v420
    %490 = vmatprep.subr.bf16.mxu0 %v424
    %491 = vmatpush1.bf16.msra.mxu0 %v423
    %492 = vmatprep.subr.bf16.mxu0 %v427
    %493 = vmatpush1.bf16.msra.mxu0 %v426
    %494 = vmatprep.subr.bf16.mxu0 %v430
    %495 = vmatpush1.bf16.msra.mxu0 %v429
    %496 = vmatprep.subr.bf16.mxu0 0
    %497 = vmatpush1.bf16.msra.mxu0 0
    %498 = vmatprep.subr.bf16.mxu0 0
    %499 = vmatpush1.bf16.msra.mxu0 0
    %500 = vmatprep.subr.bf16.mxu0 0
    %501 = vmatpush1.bf16.msra.mxu0 0
    %502 = vmatprep.subr.bf16.mxu0 0
    %503 = vmatpush1.bf16.msra.mxu0 0
    %504 = vmatprep.subr.bf16.mxu0 0
    %505 = vmatpush1.bf16.msra.mxu0 0
    %506 = vmatprep.subr.bf16.mxu0 0
    %507 = vmatpush1.bf16.msra.mxu0 0
    %508 = vmatprep.subr.bf16.mxu0 0
    %509 = vmatpush1.bf16.msra.mxu0 0
    %510 = vmatprep.subr.bf16.mxu0 0
    %511 = vmatpush1.bf16.msra.mxu0 0
    %512 = vmatprep.mubr.bf16.mxu0 0
    %513 = vmatmul.mubr.bf16.gmra.mrb[0].mxu0 %v464
    %v514 = vpop.f32.mrb[0].mxu0
    %v515 = vadd.f32 0.0, %v514
    %v516 = vpop.f32.mrb[0].mxu0
    %v517 = vadd.f32 0.0, %v516
    %v518 = vpop.f32.mrb[0].mxu0
    %v519 = vadd.f32 0.0, %v518
    %v520 = vpop.f32.mrb[0].mxu0
    %v521 = vadd.f32 0.0, %v520
    %522 = vmatprep.mubr.bf16.mxu0 0
    %523 = vmatmul.mubr.bf16.gmra.mrb[0].mxu0 %v465
    %v524 = vpop.f32.mrb[0].mxu0
    %v525 = vadd.f32 0.0, %v524
    %v526 = vpop.f32.mrb[0].mxu0
    %v527 = vadd.f32 0.0, %v526
    %v528 = vpop.f32.mrb[0].mxu0
    %v529 = vadd.f32 0.0, %v528
    %v530 = vpop.f32.mrb[0].mxu0
    %v531 = vadd.f32 0.0, %v530
    %532 = vmatprep.mubr.bf16.mxu0 0
    %533 = vmatmul.mubr.bf16.gmra.mrb[0].mxu0 %v466
    %v534 = vpop.f32.mrb[0].mxu0
    %v535 = vadd.f32 0.0, %v534
    %v536 = vpop.f32.mrb[0].mxu0
    %v537 = vadd.f32 0.0, %v536
    %v538 = vpop.f32.mrb[0].mxu0
    %v539 = vadd.f32 0.0, %v538
    %v540 = vpop.f32.mrb[0].mxu0
    %v541 = vadd.f32 0.0, %v540
    %542 = vmatprep.mubr.bf16.mxu0 0
    %543 = vmatmul.mubr.bf16.gmra.mrb[0].mxu0 %v467
    %v544 = vpop.f32.mrb[0].mxu0
    %v545 = vadd.f32 0.0, %v544
    %v546 = vpop.f32.mrb[0].mxu0
    %v547 = vadd.f32 0.0, %v546
    %v548 = vpop.f32.mrb[0].mxu0
    %v549 = vadd.f32 0.0, %v548
    %v550 = vpop.f32.mrb[0].mxu0
    %v551 = vadd.f32 0.0, %v550
    %552 = vmatprep.mubr.bf16.mxu0 0
    %553 = vmatmul.mubr.bf16.gmra.mrb[0].mxu0 %v468
    %v554 = vpop.f32.mrb[0].mxu0
    %v555 = vadd.f32 0.0, %v554
    %v556 = vpop.f32.mrb[0].mxu0
    %v557 = vadd.f32 0.0, %v556
    %v558 = vpop.f32.mrb[0].mxu0
    %v559 = vadd.f32 0.0, %v558
    %v560 = vpop.f32.mrb[0].mxu0
    %v561 = vadd.f32 0.0, %v560
    %562 = vmatprep.mubr.bf16.mxu0 0
    %563 = vmatmul.mubr.bf16.gmra.mrb[0].mxu0 %v469
    %v564 = vpop.f32.mrb[0].mxu0
    %v565 = vadd.f32 0.0, %v564
    %v566 = vpop.f32.mrb[0].mxu0
    %v567 = vadd.f32 0.0, %v566
    %v568 = vpop.f32.mrb[0].mxu0
    %v569 = vadd.f32 0.0, %v568
    %v570 = vpop.f32.mrb[0].mxu0
    %v571 = vadd.f32 0.0, %v570
    %572 = vmatprep.mubr.bf16.mxu0 0
    %573 = vmatmul.mubr.bf16.gmra.mrb[0].mxu0 %v470
    %v574 = vpop.f32.mrb[0].mxu0
    %v575 = vadd.f32 0.0, %v574
    %v576 = vpop.f32.mrb[0].mxu0
    %v577 = vadd.f32 0.0, %v576
    %v578 = vpop.f32.mrb[0].mxu0
    %v579 = vadd.f32 0.0, %v578
    %v580 = vpop.f32.mrb[0].mxu0
    %v581 = vadd.f32 0.0, %v580
    %582 = vmatprep.mubr.bf16.mxu0 0
    %583 = vmatmul.mubr.bf16.gmra.mrb[0].mxu0 %v471
    %v584 = vpop.f32.mrb[0].mxu0
    %v585 = vadd.f32 0.0, %v584
    %v586 = vpop.f32.mrb[0].mxu0
    %v587 = vadd.f32 0.0, %v586
    %v588 = vpop.f32.mrb[0].mxu0
    %v589 = vadd.f32 0.0, %v588
    %v590 = vpop.f32.mrb[0].mxu0
    %v591 = vadd.f32 0.0, %v590
    %592 = vdwg.mxu0
    %593 = vmatprep.subr.bf16.mxu0 0
    %594 = vmatpush1.bf16.msra.mxu0 %v410
    %595 = vmatprep.subr.bf16.mxu0 0
    %596 = vmatpush1.bf16.msra.mxu0 %v413
    %597 = vmatprep.subr.bf16.mxu0 0
    %598 = vmatpush1.bf16.msra.mxu0 %v416
    %599 = vmatprep.subr.bf16.mxu0 0
    %600 = vmatpush1.bf16.msra.mxu0 %v419
    %601 = vmatprep.subr.bf16.mxu0 0
    %602 = vmatpush1.bf16.msra.mxu0 %v422
    %603 = vmatprep.subr.bf16.mxu0 0
    %604 = vmatpush1.bf16.msra.mxu0 %v425
    %605 = vmatprep.subr.bf16.mxu0 0
    %606 = vmatpush1.bf16.msra.mxu0 %v428
    %607 = vmatprep.subr.bf16.mxu0 0
    %608 = vmatpush1.bf16.msra.mxu0 %v431
    %609 = vmatprep.subr.bf16.mxu0 0
    %610 = vmatpush1.bf16.msra.mxu0 0
    %611 = vmatprep.subr.bf16.mxu0 0
    %612 = vmatpush1.bf16.msra.mxu0 0
    %613 = vmatprep.subr.bf16.mxu0 0
    %614 = vmatpush1.bf16.msra.mxu0 0
    %615 = vmatprep.subr.bf16.mxu0 0
    %616 = vmatpush1.bf16.msra.mxu0 0
    %617 = vmatprep.subr.bf16.mxu0 0
    %618 = vmatpush1.bf16.msra.mxu0 0
    %619 = vmatprep.subr.bf16.mxu0 0
    %620 = vmatpush1.bf16.msra.mxu0 0
    %621 = vmatprep.subr.bf16.mxu0 0
    %622 = vmatpush1.bf16.msra.mxu0 0
    %623 = vmatprep.subr.bf16.mxu0 0
    %624 = vmatpush1.bf16.msra.mxu0 0
    %625 = vmatprep.mubr.bf16.mxu0 0
    %626 = vmatmul.mubr.bf16.gmra.mrb[0].mxu0 %v464
    %v627 = vpop.f32.mrb[0].mxu0
    %v628 = vadd.f32 0.0, %v627
    %v629 = vpop.f32.mrb[0].mxu0
    %v630 = vpop.f32.mrb[0].mxu0
    %v631 = vadd.f32 0.0, %v630
    %v632 = vpop.f32.mrb[0].mxu0
    %633 = vmatprep.mubr.bf16.mxu0 0
    %634 = vmatmul.mubr.bf16.gmra.mrb[0].mxu0 %v465
    %v635 = vpop.f32.mrb[0].mxu0
    %v636 = vadd.f32 0.0, %v635
    %v637 = vpop.f32.mrb[0].mxu0
    %v638 = vpop.f32.mrb[0].mxu0
    %v639 = vadd.f32 0.0, %v638
    %v640 = vpop.f32.mrb[0].mxu0
    %641 = vmatprep.mubr.bf16.mxu0 0
    %642 = vmatmul.mubr.bf16.gmra.mrb[0].mxu0 %v466
    %v643 = vpop.f32.mrb[0].mxu0
    %v644 = vadd.f32 0.0, %v643
    %v645 = vpop.f32.mrb[0].mxu0
    %v646 = vpop.f32.mrb[0].mxu0
    %v647 = vadd.f32 0.0, %v646
    %v648 = vpop.f32.mrb[0].mxu0
    %649 = vmatprep.mubr.bf16.mxu0 0
    %650 = vmatmul.mubr.bf16.gmra.mrb[0].mxu0 %v467
    %v651 = vpop.f32.mrb[0].mxu0
    %v652 = vadd.f32 0.0, %v651
    %v653 = vpop.f32.mrb[0].mxu0
    %v654 = vpop.f32.mrb[0].mxu0
    %v655 = vadd.f32 0.0, %v654
    %v656 = vpop.f32.mrb[0].mxu0
    %657 = vmatprep.mubr.bf16.mxu0 0
    %658 = vmatmul.mubr.bf16.gmra.mrb[0].mxu0 %v468
    %v659 = vpop.f32.mrb[0].mxu0
    %v660 = vadd.f32 0.0, %v659
    %v661 = vpop.f32.mrb[0].mxu0
    %v662 = vpop.f32.mrb[0].mxu0
    %v663 = vadd.f32 0.0, %v662
    %v664 = vpop.f32.mrb[0].mxu0
    %665 = vmatprep.mubr.bf16.mxu0 0
    %666 = vmatmul.mubr.bf16.gmra.mrb[0].mxu0 %v469
    %v667 = vpop.f32.mrb[0].mxu0
    %v668 = vadd.f32 0.0, %v667
    %v669 = vpop.f32.mrb[0].mxu0
    %v670 = vpop.f32.mrb[0].mxu0
    %v671 = vadd.f32 0.0, %v670
    %v672 = vpop.f32.mrb[0].mxu0
    %673 = vmatprep.mubr.bf16.mxu0 0
    %674 = vmatmul.mubr.bf16.gmra.mrb[0].mxu0 %v470
    %v675 = vpop.f32.mrb[0].mxu0
    %v676 = vadd.f32 0.0, %v675
    %v677 = vpop.f32.mrb[0].mxu0
    %v678 = vpop.f32.mrb[0].mxu0
    %v679 = vadd.f32 0.0, %v678
    %v680 = vpop.f32.mrb[0].mxu0
    %681 = vmatprep.mubr.bf16.mxu0 0
    %682 = vmatmul.mubr.bf16.gmra.mrb[0].mxu0 %v471
    %v683 = vpop.f32.mrb[0].mxu0
    %v684 = vadd.f32 0.0, %v683
    %v685 = vpop.f32.mrb[0].mxu0
    %v686 = vpop.f32.mrb[0].mxu0
    %v687 = vadd.f32 0.0, %v686
    %v688 = vpop.f32.mrb[0].mxu0
    %689 = vdwg.mxu0
    %v690 = vpack.c.bf16 %v519, %v515
    %v691 = vpack.c.bf16 %v521, %v517
    %v692 = vpack.c.bf16 %v631, %v628
    %v693 = vpack.c.bf16 %v529, %v525
    %v694 = vpack.c.bf16 %v531, %v527
    %v695 = vpack.c.bf16 %v639, %v636
    %v696 = vpack.c.bf16 %v539, %v535
    %v697 = vpack.c.bf16 %v541, %v537
    %v698 = vpack.c.bf16 %v647, %v644
    %v699 = vpack.c.bf16 %v549, %v545
    %v700 = vpack.c.bf16 %v551, %v547
    %v701 = vpack.c.bf16 %v655, %v652
    %v702 = vpack.c.bf16 %v559, %v555
    %v703 = vpack.c.bf16 %v561, %v557
    %v704 = vpack.c.bf16 %v663, %v660
    %v705 = vpack.c.bf16 %v569, %v565
    %v706 = vpack.c.bf16 %v571, %v567
    %v707 = vpack.c.bf16 %v671, %v668
    %v708 = vpack.c.bf16 %v579, %v575
    %v709 = vpack.c.bf16 %v581, %v577
    %v710 = vpack.c.bf16 %v679, %v676
    %v711 = vpack.c.bf16 %v589, %v585
    %v712 = vpack.c.bf16 %v591, %v587
    %v713 = vpack.c.bf16 %v687, %v684
    %714 = vst [vmem:[#allocation2] sm:$0xff] %v690
    %715 = vst [vmem:[#allocation2 + $0x8] sm:$0xff] %v691
    %716 = vst [vmem:[#allocation2 + $0x10] sm:$0xff] %v692
    %717 = vst [vmem:[#allocation2 + $0x18] sm:$0xff] %v693
    %718 = vst [vmem:[#allocation2 + $0x20] sm:$0xff] %v694
    %719 = vst [vmem:[#allocation2 + $0x28] sm:$0xff] %v695
    %720 = vst [vmem:[#allocation2 + $0x30] sm:$0xff] %v696
    %721 = vst [vmem:[#allocation2 + $0x38] sm:$0xff] %v697
    %722 = vst [vmem:[#allocation2 + $0x40] sm:$0xff] %v698
    %723 = vst [vmem:[#allocation2 + $0x48] sm:$0xff] %v699
    %724 = vst [vmem:[#allocation2 + $0x50] sm:$0xff] %v700
    %725 = vst [vmem:[#allocation2 + $0x58] sm:$0xff] %v701
    %726 = vst [vmem:[#allocation2 + $0x60] sm:$0xff] %v702
    %727 = vst [vmem:[#allocation2 + $0x68] sm:$0xff] %v703
    %728 = vst [vmem:[#allocation2 + $0x70] sm:$0xff] %v704
    %729 = vst [vmem:[#allocation2 + $0x78] sm:$0xff] %v705
    %730 = vst [vmem:[#allocation2 + $0x80] sm:$0xff] %v706
    %731 = vst [vmem:[#allocation2 + $0x88] sm:$0xff] %v707
    %732 = vst [vmem:[#allocation2 + $0x90] sm:$0xff] %v708
    %733 = vst [vmem:[#allocation2 + $0x98] sm:$0xff] %v709
    %734 = vst [vmem:[#allocation2 + $0xa0] sm:$0xff] %v710
    %735 = vst [vmem:[#allocation2 + $0xa8] sm:$0xff] %v711
    %736 = vst [vmem:[#allocation2 + $0xb0] sm:$0xff] %v712
    %737 = vst [vmem:[#allocation2 + $0xb8] sm:$0xff] %v713
    %v738 = vld [vmem:[#allocation14] sm:$0xff]
    %v739 = vld [vmem:[#allocation14 + $0x8] sm:$0xff]
    %v740 = vld [vmem:[#allocation14 + $0x10] sm:$0xff]
    %v741 = vld [vmem:[#allocation14 + $0x18] sm:$0xff]
    %v742 = vld [vmem:[#allocation14 + $0x20] sm:$0xff]
    %v743 = vld [vmem:[#allocation14 + $0x28] sm:$0xff]
    %v744 = vld [vmem:[#allocation14 + $0x30] sm:$0xff]
    %v745 = vld [vmem:[#allocation14 + $0x38] sm:$0xff]
    %v746 = vld [vmem:[#allocation14 + $0x40] sm:$0xff]
    %v747 = vld [vmem:[#allocation14 + $0x48] sm:$0xff]
    %v748 = vld [vmem:[#allocation14 + $0x50] sm:$0xff]
    %v749 = vld [vmem:[#allocation14 + $0x58] sm:$0xff]
    %v750 = vld [vmem:[#allocation14 + $0x60] sm:$0xff]
    %v751 = vld [vmem:[#allocation14 + $0x68] sm:$0xff]
    %v752 = vld [vmem:[#allocation14 + $0x70] sm:$0xff]
    %v753 = vld [vmem:[#allocation14 + $0x78] sm:$0xff]
    %v754 = vstv %s88
    %v755 = vmul.f32 %v754, %v515
    %v756 = vmul.f32 %v754, %v519
    %v757 = vmul.f32 %v754, %v525
    %v758 = vmul.f32 %v754, %v529
    %v759 = vmul.f32 %v754, %v535
    %v760 = vmul.f32 %v754, %v539
    %v761 = vmul.f32 %v754, %v545
    %v762 = vmul.f32 %v754, %v549
    %v763 = vmul.f32 %v754, %v555
    %v764 = vmul.f32 %v754, %v559
    %v765 = vmul.f32 %v754, %v565
    %v766 = vmul.f32 %v754, %v569
    %v767 = vmul.f32 %v754, %v575
    %v768 = vmul.f32 %v754, %v579
    %v769 = vmul.f32 %v754, %v585
    %v770 = vmul.f32 %v754, %v589
    %v771 = vadd.f32 %v738, %v755
    %v772 = vadd.f32 %v739, %v756
    %v773 = vadd.f32 %v740, %v757
    %v774 = vadd.f32 %v741, %v758
    %v775 = vadd.f32 %v742, %v759
    %v776 = vadd.f32 %v743, %v760
    %v777 = vadd.f32 %v744, %v761
    %v778 = vadd.f32 %v745, %v762
    %v779 = vadd.f32 %v746, %v763
    %v780 = vadd.f32 %v747, %v764
    %v781 = vadd.f32 %v748, %v765
    %v782 = vadd.f32 %v749, %v766
    %v783 = vadd.f32 %v750, %v767
    %v784 = vadd.f32 %v751, %v768
    %v785 = vadd.f32 %v752, %v769
    %v786 = vadd.f32 %v753, %v770
    %787 = vst [vmem:[#allocation14] sm:$0xff] %v771
    %788 = vst [vmem:[#allocation14 + $0x8] sm:$0xff] %v772
    %789 = vst [vmem:[#allocation14 + $0x10] sm:$0xff] %v773
    %790 = vst [vmem:[#allocation14 + $0x18] sm:$0xff] %v774
    %791 = vst [vmem:[#allocation14 + $0x20] sm:$0xff] %v775
    %792 = vst [vmem:[#allocation14 + $0x28] sm:$0xff] %v776
    %793 = vst [vmem:[#allocation14 + $0x30] sm:$0xff] %v777
    %794 = vst [vmem:[#allocation14 + $0x38] sm:$0xff] %v778
    %795 = vst [vmem:[#allocation14 + $0x40] sm:$0xff] %v779
    %796 = vst [vmem:[#allocation14 + $0x48] sm:$0xff] %v780
    %797 = vst [vmem:[#allocation14 + $0x50] sm:$0xff] %v781
    %798 = vst [vmem:[#allocation14 + $0x58] sm:$0xff] %v782
    %799 = vst [vmem:[#allocation14 + $0x60] sm:$0xff] %v783
    %800 = vst [vmem:[#allocation14 + $0x68] sm:$0xff] %v784
    %801 = vst [vmem:[#allocation14 + $0x70] sm:$0xff] %v785
    %802 = vst [vmem:[#allocation14 + $0x78] sm:$0xff] %v786
    %v803 = vstv %s91
    %v804 = vmul.f32 %v803, %v628
    %v805 = vmul.f32 %v803, %v631
    %v806 = vmul.f32 %v803, %v636
    %v807 = vmul.f32 %v803, %v639
    %v808 = vmul.f32 %v803, %v644
    %v809 = vmul.f32 %v803, %v647
    %v810 = vmul.f32 %v803, %v652
    %v811 = vmul.f32 %v803, %v655
    %v812 = vmul.f32 %v803, %v660
    %v813 = vmul.f32 %v803, %v663
    %v814 = vmul.f32 %v803, %v668
    %v815 = vmul.f32 %v803, %v671
    %v816 = vmul.f32 %v803, %v676
    %v817 = vmul.f32 %v803, %v679
    %v818 = vmul.f32 %v803, %v684
    %v819 = vmul.f32 %v803, %v687
    %v820 = vadd.f32 %v376, %v804
    %v821 = vadd.f32 %v377, %v805
    %v822 = vadd.f32 %v378, %v806
    %v823 = vadd.f32 %v379, %v807
    %v824 = vadd.f32 %v380, %v808
    %v825 = vadd.f32 %v381, %v809
    %v826 = vadd.f32 %v382, %v810
    %v827 = vadd.f32 %v383, %v811
    %v828 = vadd.f32 %v384, %v812
    %v829 = vadd.f32 %v385, %v813
    %v830 = vadd.f32 %v386, %v814
    %v831 = vadd.f32 %v387, %v815
    %v832 = vadd.f32 %v388, %v816
    %v833 = vadd.f32 %v389, %v817
    %v834 = vadd.f32 %v390, %v818
    %v835 = vadd.f32 %v391, %v819
    %836 = vst [vmem:[#allocation15] sm:$0xff] %v820
    %837 = vst [vmem:[#allocation15 + $0x8] sm:$0xff] %v821
    %838 = vst [vmem:[#allocation15 + $0x10] sm:$0xff] %v822
    %839 = vst [vmem:[#allocation15 + $0x18] sm:$0xff] %v823
    %840 = vst [vmem:[#allocation15 + $0x20] sm:$0xff] %v824
    %841 = vst [vmem:[#allocation15 + $0x28] sm:$0xff] %v825
    %842 = vst [vmem:[#allocation15 + $0x30] sm:$0xff] %v826
    %843 = vst [vmem:[#allocation15 + $0x38] sm:$0xff] %v827
    %844 = vst [vmem:[#allocation15 + $0x40] sm:$0xff] %v828
    %845 = vst [vmem:[#allocation15 + $0x48] sm:$0xff] %v829
    %846 = vst [vmem:[#allocation15 + $0x50] sm:$0xff] %v830
    %847 = vst [vmem:[#allocation15 + $0x58] sm:$0xff] %v831
    %848 = vst [vmem:[#allocation15 + $0x60] sm:$0xff] %v832
    %849 = vst [vmem:[#allocation15 + $0x68] sm:$0xff] %v833
    %850 = vst [vmem:[#allocation15 + $0x70] sm:$0xff] %v834
    %851 = vst [vmem:[#allocation15 + $0x78] sm:$0xff] %v835
    %v852 = vld [vmem:[#allocation2 + $0x8] sm:$0xff]
    %v853 = vld [vmem:[#allocation2 + $0x20] sm:$0xff]
    %v854 = vld [vmem:[#allocation2 + $0x38] sm:$0xff]
    %v855 = vld [vmem:[#allocation2 + $0x50] sm:$0xff]
    %v856 = vld [vmem:[#allocation2 + $0x68] sm:$0xff]
    %v857 = vld [vmem:[#allocation2 + $0x80] sm:$0xff]
    %v858 = vld [vmem:[#allocation2 + $0x98] sm:$0xff]
    %v859 = vld [vmem:[#allocation2 + $0xb0] sm:$0xff]
    %860 = vmatprep.subr.bf16.mxu0 0
    %861 = vmatpush1.bf16.msra.mxu0 %v852
    %862 = vmatprep.subr.bf16.mxu0 0
    %863 = vmatpush1.bf16.msra.mxu0 %v853
    %864 = vmatprep.subr.bf16.mxu0 0
    %865 = vmatpush1.bf16.msra.mxu0 %v854
    %866 = vmatprep.subr.bf16.mxu0 0
    %867 = vmatpush1.bf16.msra.mxu0 %v855
    %868 = vmatprep.subr.bf16.mxu0 0
    %869 = vmatpush1.bf16.msra.mxu0 %v856
    %870 = vmatprep.subr.bf16.mxu0 0
    %871 = vmatpush1.bf16.msra.mxu0 %v857
    %872 = vmatprep.subr.bf16.mxu0 0
    %873 = vmatpush1.bf16.msra.mxu0 %v858
    %874 = vmatprep.subr.bf16.mxu0 0
    %875 = vmatpush1.bf16.msra.mxu0 %v859
    %876 = vmatprep.subr.bf16.mxu0 0
    %877 = vmatpush1.bf16.msra.mxu0 0
    %878 = vmatprep.subr.bf16.mxu0 0
    %879 = vmatpush1.bf16.msra.mxu0 0
    %880 = vmatprep.subr.bf16.mxu0 0
    %881 = vmatpush1.bf16.msra.mxu0 0
    %882 = vmatprep.subr.bf16.mxu0 0
    %883 = vmatpush1.bf16.msra.mxu0 0
    %884 = vmatprep.subr.bf16.mxu0 0
    %885 = vmatpush1.bf16.msra.mxu0 0
    %886 = vmatprep.subr.bf16.mxu0 0
    %887 = vmatpush1.bf16.msra.mxu0 0
    %888 = vmatprep.subr.bf16.mxu0 0
    %889 = vmatpush1.bf16.msra.mxu0 0
    %890 = vmatprep.subr.bf16.mxu0 0
    %891 = vmatpush1.bf16.msra.mxu0 0
    %892 = vmatprep.mubr.bf16.mxu0 0
    %893 = vmatmul.mubr.bf16.gmra.mrb[0].mxu0 %v262
    %v894 = vpop.f32.mrb[0].mxu0
    %v895 = vadd.f32 0.0, %v894
    %v896 = vpop.f32.mrb[0].mxu0
    %v897 = vpop.f32.mrb[0].mxu0
    %v898 = vadd.f32 0.0, %v897
    %v899 = vpop.f32.mrb[0].mxu0
    %900 = vmatprep.mubr.bf16.mxu0 0
    %901 = vmatmul.mubr.bf16.gmra.mrb[0].mxu0 %v263
    %v902 = vpop.f32.mrb[0].mxu0
    %v903 = vadd.f32 0.0, %v902
    %v904 = vpop.f32.mrb[0].mxu0
    %v905 = vpop.f32.mrb[0].mxu0
    %v906 = vadd.f32 0.0, %v905
    %v907 = vpop.f32.mrb[0].mxu0
    %908 = vmatprep.mubr.bf16.mxu0 0
    %909 = vmatmul.mubr.bf16.gmra.mrb[0].mxu0 %v264
    %v910 = vpop.f32.mrb[0].mxu0
    %v911 = vadd.f32 0.0, %v910
    %v912 = vpop.f32.mrb[0].mxu0
    %v913 = vpop.f32.mrb[0].mxu0
    %v914 = vadd.f32 0.0, %v913
    %v915 = vpop.f32.mrb[0].mxu0
    %916 = vmatprep.mubr.bf16.mxu0 0
    %917 = vmatmul.mubr.bf16.gmra.mrb[0].mxu0 %v265
    %v918 = vpop.f32.mrb[0].mxu0
    %v919 = vadd.f32 0.0, %v918
    %v920 = vpop.f32.mrb[0].mxu0
    %v921 = vpop.f32.mrb[0].mxu0
    %v922 = vadd.f32 0.0, %v921
    %v923 = vpop.f32.mrb[0].mxu0
    %924 = vmatprep.mubr.bf16.mxu0 0
    %925 = vmatmul.mubr.bf16.gmra.mrb[0].mxu0 %v266
    %v926 = vpop.f32.mrb[0].mxu0
    %v927 = vadd.f32 0.0, %v926
    %v928 = vpop.f32.mrb[0].mxu0
    %v929 = vpop.f32.mrb[0].mxu0
    %v930 = vadd.f32 0.0, %v929
    %v931 = vpop.f32.mrb[0].mxu0
    %932 = vmatprep.mubr.bf16.mxu0 0
    %933 = vmatmul.mubr.bf16.gmra.mrb[0].mxu0 %v267
    %v934 = vpop.f32.mrb[0].mxu0
    %v935 = vadd.f32 0.0, %v934
    %v936 = vpop.f32.mrb[0].mxu0
    %v937 = vpop.f32.mrb[0].mxu0
    %v938 = vadd.f32 0.0, %v937
    %v939 = vpop.f32.mrb[0].mxu0
    %940 = vmatprep.mubr.bf16.mxu0 0
    %941 = vmatmul.mubr.bf16.gmra.mrb[0].mxu0 %v268
    %v942 = vpop.f32.mrb[0].mxu0
    %v943 = vadd.f32 0.0, %v942
    %v944 = vpop.f32.mrb[0].mxu0
    %v945 = vpop.f32.mrb[0].mxu0
    %v946 = vadd.f32 0.0, %v945
    %v947 = vpop.f32.mrb[0].mxu0
    %948 = vmatprep.mubr.bf16.mxu0 0
    %949 = vmatmul.mubr.bf16.gmra.mrb[0].mxu0 %v269
    %v950 = vpop.f32.mrb[0].mxu0
    %v951 = vadd.f32 0.0, %v950
    %v952 = vpop.f32.mrb[0].mxu0
    %v953 = vpop.f32.mrb[0].mxu0
    %v954 = vadd.f32 0.0, %v953
    %v955 = vpop.f32.mrb[0].mxu0
    %956 = vdwg.mxu0
    %v957 = vstv %s92
    %v958 = vmul.f32 %v957, %v895
    %v959 = vmul.f32 %v957, %v898
    %v960 = vmul.f32 %v957, %v903
    %v961 = vmul.f32 %v957, %v906
    %v962 = vmul.f32 %v957, %v911
    %v963 = vmul.f32 %v957, %v914
    %v964 = vmul.f32 %v957, %v919
    %v965 = vmul.f32 %v957, %v922
    %v966 = vmul.f32 %v957, %v927
    %v967 = vmul.f32 %v957, %v930
    %v968 = vmul.f32 %v957, %v935
    %v969 = vmul.f32 %v957, %v938
    %v970 = vmul.f32 %v957, %v943
    %v971 = vmul.f32 %v957, %v946
    %v972 = vmul.f32 %v957, %v951
    %v973 = vmul.f32 %v957, %v954
    %v974 = vld [vmem:[#allocation2] sm:$0xff]
    %v975 = vld [vmem:[#allocation2 + $0x18] sm:$0xff]
    %v976 = vld [vmem:[#allocation2 + $0x30] sm:$0xff]
    %v977 = vld [vmem:[#allocation2 + $0x48] sm:$0xff]
    %v978 = vld [vmem:[#allocation2 + $0x60] sm:$0xff]
    %v979 = vld [vmem:[#allocation2 + $0x78] sm:$0xff]
    %v980 = vld [vmem:[#allocation2 + $0x90] sm:$0xff]
    %v981 = vld [vmem:[#allocation2 + $0xa8] sm:$0xff]
    %982 = vmatprep.subr.bf16.mxu0 0
    %983 = vmatpush1.bf16.msra.mxu0 %v974
    %984 = vmatprep.subr.bf16.mxu0 0
    %985 = vmatpush1.bf16.msra.mxu0 %v975
    %986 = vmatprep.subr.bf16.mxu0 0
    %987 = vmatpush1.bf16.msra.mxu0 %v976
    %988 = vmatprep.subr.bf16.mxu0 0
    %989 = vmatpush1.bf16.msra.mxu0 %v977
    %990 = vmatprep.subr.bf16.mxu0 0
    %991 = vmatpush1.bf16.msra.mxu0 %v978
    %992 = vmatprep.subr.bf16.mxu0 0
    %993 = vmatpush1.bf16.msra.mxu0 %v979
    %994 = vmatprep.subr.bf16.mxu0 0
    %995 = vmatpush1.bf16.msra.mxu0 %v980
    %996 = vmatprep.subr.bf16.mxu0 0
    %997 = vmatpush1.bf16.msra.mxu0 %v981
    %998 = vmatprep.subr.bf16.mxu0 0
    %999 = vmatpush1.bf16.msra.mxu0 0
    %1000 = vmatprep.subr.bf16.mxu0 0
    %1001 = vmatpush1.bf16.msra.mxu0 0
    %1002 = vmatprep.subr.bf16.mxu0 0
    %1003 = vmatpush1.bf16.msra.mxu0 0
    %1004 = vmatprep.subr.bf16.mxu0 0
    %1005 = vmatpush1.bf16.msra.mxu0 0
    %1006 = vmatprep.subr.bf16.mxu0 0
    %1007 = vmatpush1.bf16.msra.mxu0 0
    %1008 = vmatprep.subr.bf16.mxu0 0
    %1009 = vmatpush1.bf16.msra.mxu0 0
    %1010 = vmatprep.subr.bf16.mxu0 0
    %1011 = vmatpush1.bf16.msra.mxu0 0
    %1012 = vmatprep.subr.bf16.mxu0 0
    %1013 = vmatpush1.bf16.msra.mxu0 0
    %1014 = vmatprep.mubr.bf16.mxu0 0
    %1015 = vmatmul.mubr.bf16.gmra.mrb[0].mxu0 %v464
    %v1016 = vpop.f32.mrb[0].mxu0
    %v1017 = vadd.f32 0.0, %v1016
    %v1018 = vpop.f32.mrb[0].mxu0
    %v1019 = vpop.f32.mrb[0].mxu0
    %v1020 = vadd.f32 0.0, %v1019
    %v1021 = vpop.f32.mrb[0].mxu0
    %1022 = vmatprep.mubr.bf16.mxu0 0
    %1023 = vmatmul.mubr.bf16.gmra.mrb[0].mxu0 %v465
    %v1024 = vpop.f32.mrb[0].mxu0
    %v1025 = vadd.f32 0.0, %v1024
    %v1026 = vpop.f32.mrb[0].mxu0
    %v1027 = vpop.f32.mrb[0].mxu0
    %v1028 = vadd.f32 0.0, %v1027
    %v1029 = vpop.f32.mrb[0].mxu0
    %1030 = vmatprep.mubr.bf16.mxu0 0
    %1031 = vmatmul.mubr.bf16.gmra.mrb[0].mxu0 %v466
    %v1032 = vpop.f32.mrb[0].mxu0
    %v1033 = vadd.f32 0.0, %v1032
    %v1034 = vpop.f32.mrb[0].mxu0
    %v1035 = vpop.f32.mrb[0].mxu0
    %v1036 = vadd.f32 0.0, %v1035
    %v1037 = vpop.f32.mrb[0].mxu0
    %1038 = vmatprep.mubr.bf16.mxu0 0
    %1039 = vmatmul.mubr.bf16.gmra.mrb[0].mxu0 %v467
    %v1040 = vpop.f32.mrb[0].mxu0
    %v1041 = vadd.f32 0.0, %v1040
    %v1042 = vpop.f32.mrb[0].mxu0
    %v1043 = vpop.f32.mrb[0].mxu0
    %v1044 = vadd.f32 0.0, %v1043
    %v1045 = vpop.f32.mrb[0].mxu0
    %1046 = vmatprep.mubr.bf16.mxu0 0
    %1047 = vmatmul.mubr.bf16.gmra.mrb[0].mxu0 %v468
    %v1048 = vpop.f32.mrb[0].mxu0
    %v1049 = vadd.f32 0.0, %v1048
    %v1050 = vpop.f32.mrb[0].mxu0
    %v1051 = vpop.f32.mrb[0].mxu0
    %v1052 = vadd.f32 0.0, %v1051
    %v1053 = vpop.f32.mrb[0].mxu0
    %1054 = vmatprep.mubr.bf16.mxu0 0
    %1055 = vmatmul.mubr.bf16.gmra.mrb[0].mxu0 %v469
    %v1056 = vpop.f32.mrb[0].mxu0
    %v1057 = vadd.f32 0.0, %v1056
    %v1058 = vpop.f32.mrb[0].mxu0
    %v1059 = vpop.f32.mrb[0].mxu0
    %v1060 = vadd.f32 0.0, %v1059
    %v1061 = vpop.f32.mrb[0].mxu0
    %1062 = vmatprep.mubr.bf16.mxu0 0
    %1063 = vmatmul.mubr.bf16.gmra.mrb[0].mxu0 %v470
    %v1064 = vpop.f32.mrb[0].mxu0
    %v1065 = vadd.f32 0.0, %v1064
    %v1066 = vpop.f32.mrb[0].mxu0
    %v1067 = vpop.f32.mrb[0].mxu0
    %v1068 = vadd.f32 0.0, %v1067
    %v1069 = vpop.f32.mrb[0].mxu0
    %1070 = vmatprep.mubr.bf16.mxu0 0
    %1071 = vmatmul.mubr.bf16.gmra.mrb[0].mxu0 %v471
    %v1072 = vpop.f32.mrb[0].mxu0
    %v1073 = vadd.f32 0.0, %v1072
    %v1074 = vpop.f32.mrb[0].mxu0
    %v1075 = vpop.f32.mrb[0].mxu0
    %v1076 = vadd.f32 0.0, %v1075
    %v1077 = vpop.f32.mrb[0].mxu0
    %1078 = vdwg.mxu0
    %v1079 = vld [vmem:[#allocation14] sm:$0xff]
    %v1080 = vld [vmem:[#allocation14 + $0x8] sm:$0xff]
    %v1081 = vld [vmem:[#allocation14 + $0x10] sm:$0xff]
    %v1082 = vld [vmem:[#allocation14 + $0x18] sm:$0xff]
    %v1083 = vld [vmem:[#allocation14 + $0x20] sm:$0xff]
    %v1084 = vld [vmem:[#allocation14 + $0x28] sm:$0xff]
    %v1085 = vld [vmem:[#allocation14 + $0x30] sm:$0xff]
    %v1086 = vld [vmem:[#allocation14 + $0x38] sm:$0xff]
    %v1087 = vld [vmem:[#allocation14 + $0x40] sm:$0xff]
    %v1088 = vld [vmem:[#allocation14 + $0x48] sm:$0xff]
    %v1089 = vld [vmem:[#allocation14 + $0x50] sm:$0xff]
    %v1090 = vld [vmem:[#allocation14 + $0x58] sm:$0xff]
    %v1091 = vld [vmem:[#allocation14 + $0x60] sm:$0xff]
    %v1092 = vld [vmem:[#allocation14 + $0x68] sm:$0xff]
    %v1093 = vld [vmem:[#allocation14 + $0x70] sm:$0xff]
    %v1094 = vld [vmem:[#allocation14 + $0x78] sm:$0xff]
    %v1095 = vstv %s89
    %v1096 = vmul.f32 %v1095, %v1017
    %v1097 = vmul.f32 %v1095, %v1020
    %v1098 = vmul.f32 %v1095, %v1025
    %v1099 = vmul.f32 %v1095, %v1028
    %v1100 = vmul.f32 %v1095, %v1033
    %v1101 = vmul.f32 %v1095, %v1036
    %v1102 = vmul.f32 %v1095, %v1041
    %v1103 = vmul.f32 %v1095, %v1044
    %v1104 = vmul.f32 %v1095, %v1049
    %v1105 = vmul.f32 %v1095, %v1052
    %v1106 = vmul.f32 %v1095, %v1057
    %v1107 = vmul.f32 %v1095, %v1060
    %v1108 = vmul.f32 %v1095, %v1065
    %v1109 = vmul.f32 %v1095, %v1068
    %v1110 = vmul.f32 %v1095, %v1073
    %v1111 = vmul.f32 %v1095, %v1076
    %v1112 = vadd.f32 %v1079, %v1096
    %v1113 = vadd.f32 %v1080, %v1097
    %v1114 = vadd.f32 %v1081, %v1098
    %v1115 = vadd.f32 %v1082, %v1099
    %v1116 = vadd.f32 %v1083, %v1100
    %v1117 = vadd.f32 %v1084, %v1101
    %v1118 = vadd.f32 %v1085, %v1102
    %v1119 = vadd.f32 %v1086, %v1103
    %v1120 = vadd.f32 %v1087, %v1104
    %v1121 = vadd.f32 %v1088, %v1105
    %v1122 = vadd.f32 %v1089, %v1106
    %v1123 = vadd.f32 %v1090, %v1107
    %v1124 = vadd.f32 %v1091, %v1108
    %v1125 = vadd.f32 %v1092, %v1109
    %v1126 = vadd.f32 %v1093, %v1110
    %v1127 = vadd.f32 %v1094, %v1111
    %1128 = vst [vmem:[#allocation14] sm:$0xff] %v1112
    %1129 = vst [vmem:[#allocation14 + $0x8] sm:$0xff] %v1113
    %1130 = vst [vmem:[#allocation14 + $0x10] sm:$0xff] %v1114
    %1131 = vst [vmem:[#allocation14 + $0x18] sm:$0xff] %v1115
    %1132 = vst [vmem:[#allocation14 + $0x20] sm:$0xff] %v1116
    %1133 = vst [vmem:[#allocation14 + $0x28] sm:$0xff] %v1117
    %1134 = vst [vmem:[#allocation14 + $0x30] sm:$0xff] %v1118
    %1135 = vst [vmem:[#allocation14 + $0x38] sm:$0xff] %v1119
    %1136 = vst [vmem:[#allocation14 + $0x40] sm:$0xff] %v1120
    %1137 = vst [vmem:[#allocation14 + $0x48] sm:$0xff] %v1121
    %1138 = vst [vmem:[#allocation14 + $0x50] sm:$0xff] %v1122
    %1139 = vst [vmem:[#allocation14 + $0x58] sm:$0xff] %v1123
    %1140 = vst [vmem:[#allocation14 + $0x60] sm:$0xff] %v1124
    %1141 = vst [vmem:[#allocation14 + $0x68] sm:$0xff] %v1125
    %1142 = vst [vmem:[#allocation14 + $0x70] sm:$0xff] %v1126
    %1143 = vst [vmem:[#allocation14 + $0x78] sm:$0xff] %v1127
    %v1144 = vld [vmem:[#allocation15] sm:$0xff]
    %v1145 = vld [vmem:[#allocation15 + $0x8] sm:$0xff]
    %v1146 = vld [vmem:[#allocation15 + $0x10] sm:$0xff]
    %v1147 = vld [vmem:[#allocation15 + $0x18] sm:$0xff]
    %v1148 = vld [vmem:[#allocation15 + $0x20] sm:$0xff]
    %v1149 = vld [vmem:[#allocation15 + $0x28] sm:$0xff]
    %v1150 = vld [vmem:[#allocation15 + $0x30] sm:$0xff]
    %v1151 = vld [vmem:[#allocation15 + $0x38] sm:$0xff]
    %v1152 = vld [vmem:[#allocation15 + $0x40] sm:$0xff]
    %v1153 = vld [vmem:[#allocation15 + $0x48] sm:$0xff]
    %v1154 = vld [vmem:[#allocation15 + $0x50] sm:$0xff]
    %v1155 = vld [vmem:[#allocation15 + $0x58] sm:$0xff]
    %v1156 = vld [vmem:[#allocation15 + $0x60] sm:$0xff]
    %v1157 = vld [vmem:[#allocation15 + $0x68] sm:$0xff]
    %v1158 = vld [vmem:[#allocation15 + $0x70] sm:$0xff]
    %v1159 = vld [vmem:[#allocation15 + $0x78] sm:$0xff]
    %v1160 = vadd.f32 %v1144, %v958
    %v1161 = vadd.f32 %v1145, %v959
    %v1162 = vadd.f32 %v1146, %v960
    %v1163 = vadd.f32 %v1147, %v961
    %v1164 = vadd.f32 %v1148, %v962
    %v1165 = vadd.f32 %v1149, %v963
    %v1166 = vadd.f32 %v1150, %v964
    %v1167 = vadd.f32 %v1151, %v965
    %v1168 = vadd.f32 %v1152, %v966
    %v1169 = vadd.f32 %v1153, %v967
    %v1170 = vadd.f32 %v1154, %v968
    %v1171 = vadd.f32 %v1155, %v969
    %v1172 = vadd.f32 %v1156, %v970
    %v1173 = vadd.f32 %v1157, %v971
    %v1174 = vadd.f32 %v1158, %v972
    %v1175 = vadd.f32 %v1159, %v973
    %1176 = vst [vmem:[#allocation15] sm:$0xff] %v1160
    %1177 = vst [vmem:[#allocation15 + $0x8] sm:$0xff] %v1161
    %1178 = vst [vmem:[#allocation15 + $0x10] sm:$0xff] %v1162
    %1179 = vst [vmem:[#allocation15 + $0x18] sm:$0xff] %v1163
    %1180 = vst [vmem:[#allocation15 + $0x20] sm:$0xff] %v1164
    %1181 = vst [vmem:[#allocation15 + $0x28] sm:$0xff] %v1165
    %1182 = vst [vmem:[#allocation15 + $0x30] sm:$0xff] %v1166
    %1183 = vst [vmem:[#allocation15 + $0x38] sm:$0xff] %v1167
    %1184 = vst [vmem:[#allocation15 + $0x40] sm:$0xff] %v1168
    %1185 = vst [vmem:[#allocation15 + $0x48] sm:$0xff] %v1169
    %1186 = vst [vmem:[#allocation15 + $0x50] sm:$0xff] %v1170
    %1187 = vst [vmem:[#allocation15 + $0x58] sm:$0xff] %v1171
    %1188 = vst [vmem:[#allocation15 + $0x60] sm:$0xff] %v1172
    %1189 = vst [vmem:[#allocation15 + $0x68] sm:$0xff] %v1173
    %1190 = vst [vmem:[#allocation15 + $0x70] sm:$0xff] %v1174
    %1191 = vst [vmem:[#allocation15 + $0x78] sm:$0xff] %v1175
    // Predicated region
    $region34: #{tpu_custom_call.1} parent=1 // pred_check
      _
    $region35: #{tpu_custom_call.1} parent=1 // pred_check_branch
      %1193 = sbr.rel (0) target = $region37
    $region36: #{tpu_custom_call.1} parent=1 // pred_region
      %s1195 = ssub.s32 2048, 2048
      %1196 = vsyncadd [#allocation8], %s1195
      %s1197 = sshll.u32 [#allocation14], 4
      %s1198 = int_to_ptr.vmem [resolvable:$true] %s1197
      %1203 = dma.vmem_to_hbm [thread:$0]  %s1198, 2048, %s6, [#allocation8], 128, 128, 8
    $region37: #{tpu_custom_call.1} parent=1 // pred_fallthru
      _
    // Predicated region
    $region38: #{tpu_custom_call.1} parent=1 // pred_check
      _
    $region39: #{tpu_custom_call.1} parent=1 // pred_check_branch
      %1205 = sbr.rel (0) target = $region41
    $region40: #{tpu_custom_call.1} parent=1 // pred_region
      %s1207 = ssub.s32 2048, 2048
      %1208 = vsyncadd [#allocation16], %s1207
      %s1209 = sshll.u32 [#allocation15], 4
      %s1210 = int_to_ptr.vmem [resolvable:$true] %s1209
      %1215 = dma.vmem_to_hbm [thread:$0]  %s1210, 2048, %s7, [#allocation16], 128, 128, 8
    $region41: #{tpu_custom_call.1} parent=1 // pred_fallthru
      _
    // Predicated region
    $region42: #{tpu_custom_call.1} parent=1 // pred_check
      _
    $region43: #{tpu_custom_call.1} parent=1 // pred_check_branch
      %1217 = sbr.rel (0) target = $region45
    $region44: #{tpu_custom_call.1} parent=1 // pred_region
      %1218 = dma.done [#allocation8], 2048
    $region45: #{tpu_custom_call.1} parent=1 // pred_fallthru
      _
    // Predicated region
    $region46: #{tpu_custom_call.1} parent=1 // pred_check
      _
    $region47: #{tpu_custom_call.1} parent=1 // pred_check_branch
      %1220 = sbr.rel (0) target = $region49
    $region48: #{tpu_custom_call.1} parent=1 // pred_region
      %1221 = dma.done [#allocation16], 2048
    $region49: #{tpu_custom_call.1} parent=1 // pred_fallthru
      _
    %1222 = vsyncpa [#allocation7], 1
    %1223 = vsyncpa [#allocation10], 1
    %1224 = vsyncpa [#allocation13], 1
    %1225 = vsyncpa [#allocation8], 1
    %1226 = vsyncpa [#allocation16], 1

</llo_original>
